<compile_context>
chip_gen: v7x
topology: tpu7x:2x2x1
jax: 0.10.0
libtpu: 0.0.40
codegen_flags: <defaults>
</compile_context>

<pallas_src>
import jax
import jax.numpy as jnp
from jax import lax
from jax.experimental import pallas as pl
from jax.experimental.pallas import tpu as pltpu


# ------------------------------ configuration -------------------------------

CFG_NETWORK = {
    "critic_cnn": {
        "kernel_sizes": [4, 3],
        "layer_sizes": [8, 16],
        "stride_sizes": [2, 1],
        "hidden_size": 32,
        "activation": "elu",
        "layernorm": False,
    }
}
OBS_SHAPE = (4, 16, 16)  # (C, H, W), PyTorch convention

_CNN = CFG_NETWORK["critic_cnn"]
assert len(_CNN["kernel_sizes"]) == 2
# TODO(synk): layernorm=True branch of the reference CNN is not implemented.
assert not _CNN.get("layernorm", False)

K1, K2 = _CNN["kernel_sizes"]
C1, C2 = _CNN["layer_sizes"]
S1, S2 = _CNN["stride_sizes"]
HIDDEN = _CNN["hidden_size"]
C_IN, H_IN, W_IN = OBS_SHAPE

OH1 = (H_IN - K1) // S1 + 1            # 7
OW1 = (W_IN - K1) // S1 + 1            # 7
OH2 = (OH1 - K2) // S2 + 1             # 5
OW2 = (OW1 - K2) // S2 + 1             # 5
P1 = OH1 * OW1                         # 49 conv1 output positions / sample
D1 = K1 * K1 * C_IN                    # 64 conv1 patch length

# The in-kernel shift-trick conv needs stride 1 (the strided first conv is
# lowered to patches in the wrapper instead).
assert S2 == 1, "second conv must have stride 1 for the in-kernel shift trick"

_MAX_SHIFT = (K2 - 1) * OW1 + (K2 - 1)          # 16
PAD1 = ((P1 + _MAX_SHIFT + 7) // 8) * 8         # 72: conv1 staging rows (+ zero pad)
PAD2 = ((P1 + 7) // 8) * 8                      # 56: conv2 staging rows


# ------------------------------ Pallas kernel --------------------------------

def _elu(x):
    # ELU(alpha=1): x if x > 0 else exp(x) - 1; min() keeps exp() finite on the
    # (unselected) positive branch.
    return jnp.where(x > 0.0, x, jnp.exp(jnp.minimum(x, 0.0)) - 1.0)


def _cnn_critic_kernel(cols1_ref, w1_ref, b1_ref, w2_ref, b2_ref,
                       wfc_ref, bfc_ref, wv_ref, bv_ref,
                       o_ref, y1_buf, y2_buf):
    """Whole CNNCritic forward for one batch sample; everything stays in VMEM."""
    # --- conv1 (+bias, ELU) as one GEMM over pre-extracted patches -----------
    y1 = _elu(jnp.dot(cols1_ref[...], w1_ref[...],
                      preferred_element_type=jnp.float32) + b1_ref[...])     # (49, 8)

    # Stage conv1 output (row = h*OW1 + w) in VMEM, zero tail rows so shifted
    # slices below never read garbage.
    y1_buf[...] = jnp.zeros_like(y1_buf)
    y1_buf[0:P1, :] = y1

    # --- conv2 (+bias, ELU): shift-trick accumulation over the K2*K2 taps ----
    # Output row m = r*OW1 + c needs input row m + i*OW1 + j for tap (i, j).
    # Rows with r >= OH2 or c >= OW2 are junk and are never read downstream.
    acc2 = jnp.zeros((P1, C2), dtype=jnp.float32)
    for i in range(K2):
        for j in range(K2):
            tap = i * K2 + j
            shift = i * OW1 + j
            acc2 = acc2 + jnp.dot(y1_buf[shift:shift + P1, :],
                                  w2_ref[tap * C1:(tap + 1) * C1, :],
                                  preferred_element_type=jnp.float32)
    y2_buf[...] = jnp.zeros_like(y2_buf)
    y2_buf[0:P1, :] = _elu(acc2 + b2_ref[...])                               # (49, 16)

    # --- fc (+bias, ELU): PyTorch's NCHW flatten is folded into the packed
    # weights, so we accumulate one (1,C2)@(C2,HIDDEN) GEMM per valid tap.
    accf = jnp.zeros((1, HIDDEN), dtype=jnp.float32)
    for r in range(OH2):
        for c in range(OW2):
            p = r * OW2 + c
            row = r * OW1 + c
            accf = accf + jnp.dot(y2_buf[row:row + 1, :],
                                  wfc_ref[p * C2:(p + 1) * C2, :],
                                  preferred_element_type=jnp.float32)
    feats = _elu(accf + bfc_ref[...])                                        # (1, 32)

    # --- value head (fused): only this (1,1) result leaves VMEM --------------
    o_ref[...] = jnp.sum(feats * wv_ref[...], axis=1, keepdims=True) + bv_ref[...]


# ------------------------------- wrapper (JAX) --------------------------------

def _im2col(x_nhwc, k, stride):
    """(N,H,W,C) -> (N, oh*ow, k*k*C) patches, columns ordered (ki, kj, ic)."""
    n, h, w, c = x_nhwc.shape
    oh = (h - k) // stride + 1
    ow = (w - k) // stride + 1
    cols = []
    for i in range(k):
        for j in range(k):
            cols.append(x_nhwc[:, i:i + stride * oh:stride,
                               j:j + stride * ow:stride, :])
    cols = jnp.concatenate(cols, axis=-1)              # (N, oh, ow, k*k*C)
    return cols.reshape(n, oh * ow, k * k * c)


def cnn_critic_forward(packed, x_nchw):
    """CNNCritic forward: (N, C, H, W) float32 -> (N, 1)."""
    n = x_nchw.shape[0]
    x = jnp.transpose(x_nchw, (0, 2, 3, 1)).astype(jnp.float32)   # NHWC
    cols1 = _im2col(x, K1, S1)                                    # (N, 49, 64)

    out = pl.pallas_call(
        _cnn_critic_kernel,
        out_shape=jax.ShapeDtypeStruct((n, 1, 1), jnp.float32),
        grid=(n,),
        in_specs=[
            pl.BlockSpec((None, P1, D1), lambda b: (b, 0, 0)),        # per-sample patches
            pl.BlockSpec((D1, C1), lambda b: (0, 0)),                 # conv1 weight
            pl.BlockSpec((1, C1), lambda b: (0, 0)),                  # conv1 bias
            pl.BlockSpec((K2 * K2 * C1, C2), lambda b: (0, 0)),       # conv2 weight (packed)
            pl.BlockSpec((1, C2), lambda b: (0, 0)),                  # conv2 bias
            pl.BlockSpec((OH2 * OW2 * C2, HIDDEN), lambda b: (0, 0)), # fc weight (packed)
            pl.BlockSpec((1, HIDDEN), lambda b: (0, 0)),              # fc bias
            pl.BlockSpec((1, HIDDEN), lambda b: (0, 0)),              # value weight (row)
            pl.BlockSpec((1, 1), lambda b: (0, 0)),                   # value bias
        ],
        out_specs=pl.BlockSpec((None, 1, 1), lambda b: (b, 0, 0)),
        scratch_shapes=[
            pltpu.VMEM((PAD1, C1), jnp.float32),   # conv1 staging (+ zero pad rows)
            pltpu.VMEM((PAD2, C2), jnp.float32),   # conv2 staging
        ],
        compiler_params=pltpu.CompilerParams(
            dimension_semantics=("parallel",)),    # v7x: the 2 TCs split the batch
    )(cols1, packed["w1"], packed["b1"], packed["w2"], packed["b2"],
      packed["wfc"], packed["bfc"], packed["wv"], packed["bv"])
    return out.reshape(n, 1)


# ------------------------------ params & packing ------------------------------

def init_params(key):
    """Parameters in PyTorch layout: conv (OC, IC, KH, KW); fc rows in NCHW-flatten order."""
    keys = jax.random.split(key, 8)

    def dense(k, shape, fan_in):
        return jax.random.normal(k, shape, jnp.float32) / jnp.sqrt(fan_in)

    flat = C2 * OH2 * OW2
    return {
        "conv1_w": dense(keys[0], (C1, C_IN, K1, K1), C_IN * K1 * K1),
        "conv1_b": 0.01 * jax.random.normal(keys[1], (C1,), jnp.float32),
        "conv2_w": dense(keys[2], (C2, C1, K2, K2), C1 * K2 * K2),
        "conv2_b": 0.01 * jax.random.normal(keys[3], (C2,), jnp.float32),
        "fc_w": dense(keys[4], (flat, HIDDEN), flat),   # rows ordered (c, h, w)
        "fc_b": 0.01 * jax.random.normal(keys[5], (HIDDEN,), jnp.float32),
        "val_w": dense(keys[6], (HIDDEN, 1), HIDDEN),
        "val_b": 0.01 * jax.random.normal(keys[7], (1,), jnp.float32),
    }


def pack_params(params):
    """One-time repack so the kernel sees GEMM-ready 2-D operands (done at init)."""
    # conv weights -> im2col layout: row = (ki*KW + kj)*IC + ic
    w1 = jnp.transpose(params["conv1_w"], (2, 3, 1, 0)).reshape(K1 * K1 * C_IN, C1)
    w2 = jnp.transpose(params["conv2_w"], (2, 3, 1, 0)).reshape(K2 * K2 * C1, C2)
    # fc rows come in PyTorch NCHW-flatten order (c2, r, c); fold the flatten /
    # permute into the weights: new row = (r*OW2 + c)*C2 + c2.
    wfc = params["fc_w"].reshape(C2, OH2, OW2, HIDDEN)
    wfc = jnp.transpose(wfc, (1, 2, 0, 3)).reshape(OH2 * OW2 * C2, HIDDEN)
    return {
        "w1": w1.astype(jnp.float32),
        "b1": params["conv1_b"].reshape(1, C1).astype(jnp.float32),
        "w2": w2.astype(jnp.float32),
        "b2": params["conv2_b"].reshape(1, C2).astype(jnp.float32),
        "wfc": wfc.astype(jnp.float32),
        "bfc": params["fc_b"].reshape(1, HIDDEN).astype(jnp.float32),
        "wv": params["val_w"].reshape(1, HIDDEN).astype(jnp.float32),
        "bv": params["val_b"].reshape(1, 1).astype(jnp.float32),
    }


def reference_forward(params, x_nchw):
    """Pure-JAX reference reproducing the PyTorch module (for validation)."""
    elu = lambda v: jnp.where(v > 0, v, jnp.expm1(v))
    dn = ("NCHW", "OIHW", "NCHW")
    y = lax.conv_general_dilated(x_nchw, params["conv1_w"], (S1, S1), "VALID",
                                 dimension_numbers=dn)
    y = elu(y + params["conv1_b"][None, :, None, None])
    y = lax.conv_general_dilated(y, params["conv2_w"], (S2, S2), "VALID",
                                 dimension_numbers=dn)
    y = elu(y + params["conv2_b"][None, :, None, None])
    y = y.reshape(y.shape[0], -1)                    # NCHW flatten == nn.Flatten
    y = elu(y @ params["fc_w"] + params["fc_b"])
    return y @ params["val_w"] + params["val_b"]


# ------------------------------------ main ------------------------------------

if __name__ == "__main__":
    root = jax.random.PRNGKey(0)
    k_in, k_param = jax.random.split(root)

    batch = 2
    x = jax.random.normal(k_in, (batch,) + OBS_SHAPE, jnp.float32)  # (2, 4, 16, 16) NCHW
    params = init_params(k_param)
    packed = pack_params(params)

    values = jax.jit(cnn_critic_forward)(packed, x)
    values = jax.block_until_ready(values)

    assert values.shape == (batch, 1), values.shape
    assert bool(jnp.all(jnp.isfinite(values)))

    ref = reference_forward(params, x)
    assert bool(jnp.allclose(values, ref, rtol=1e-3, atol=1e-3)), (values, ref)
    print("KERNEL_OK")
</pallas_src>

<mosaic_0001>
module attributes {stable_mosaic.version = 11 : i64} {
  func.func @_cnn_critic_kernel(%arg0: i32, %arg1: memref<1x49x64xf32, #tpu.memory_space<vmem>>, %arg2: memref<64x8xf32, #tpu.memory_space<vmem>>, %arg3: memref<1x8xf32, #tpu.memory_space<vmem>>, %arg4: memref<72x16xf32, #tpu.memory_space<vmem>>, %arg5: memref<1x16xf32, #tpu.memory_space<vmem>>, %arg6: memref<400x32xf32, #tpu.memory_space<vmem>>, %arg7: memref<1x32xf32, #tpu.memory_space<vmem>>, %arg8: memref<1x32xf32, #tpu.memory_space<vmem>>, %arg9: memref<1x1xf32, #tpu.memory_space<vmem>>, %arg10: memref<1x1x1xf32, #tpu.memory_space<vmem>>, %arg11: memref<72x8xf32, #tpu.memory_space<vmem>>, %arg12: memref<56x16xf32, #tpu.memory_space<vmem>>) attributes {dimension_semantics = [#tpu.dimension_semantics<parallel>], iteration_bounds = array<i64: 2>, scalar_prefetch = 0 : i64, scratch_operands = 2 : i64, tpu.core_type = #tpu.core_type<tc>, window_params = [{transform_indices = @transform_0, window_bounds = array<i64: 1, 49, 64>}, {pipeline_mode = #tpu.pipeline_mode<synchronous>, transform_indices = @transform_1, window_bounds = array<i64: 64, 8>}, {pipeline_mode = #tpu.pipeline_mode<synchronous>, transform_indices = @transform_2, window_bounds = array<i64: 1, 8>}, {pipeline_mode = #tpu.pipeline_mode<synchronous>, transform_indices = @transform_3, window_bounds = array<i64: 72, 16>}, {pipeline_mode = #tpu.pipeline_mode<synchronous>, transform_indices = @transform_4, window_bounds = array<i64: 1, 16>}, {pipeline_mode = #tpu.pipeline_mode<synchronous>, transform_indices = @transform_5, window_bounds = array<i64: 400, 32>}, {pipeline_mode = #tpu.pipeline_mode<synchronous>, transform_indices = @transform_6, window_bounds = array<i64: 1, 32>}, {pipeline_mode = #tpu.pipeline_mode<synchronous>, transform_indices = @transform_7, window_bounds = array<i64: 1, 32>}, {pipeline_mode = #tpu.pipeline_mode<synchronous>, transform_indices = @transform_8, window_bounds = array<i64: 1, 1>}, {transform_indices = @transform_9, window_bounds = array<i64: 1, 1, 1>}]} {
    %c0 = arith.constant 0 : index
    %c0_0 = arith.constant 0 : index
    %c0_1 = arith.constant 0 : index
    %0 = vector.load %arg1[%c0, %c0_0, %c0_1] : memref<1x49x64xf32, #tpu.memory_space<vmem>>, vector<1x49x64xf32>
    %1 = vector.shape_cast %0 : vector<1x49x64xf32> to vector<49x64xf32>
    %c0_2 = arith.constant 0 : index
    %c0_3 = arith.constant 0 : index
    %2 = vector.load %arg2[%c0_2, %c0_3] : memref<64x8xf32, #tpu.memory_space<vmem>>, vector<64x8xf32>
    %cst = arith.constant dense<0.000000e+00> : vector<49x8xf32>
    %3 = tpu.matmul %1, %2, %cst {dimension_numbers = #tpu.dot_dimension_numbers<[1], [0], [0], [1], [0, 0, 1, 1], [], []>} : vector<49x64xf32>, vector<64x8xf32>, vector<49x8xf32> -> vector<49x8xf32>
    %c0_4 = arith.constant 0 : index
    %c0_5 = arith.constant 0 : index
    %4 = vector.load %arg3[%c0_4, %c0_5] : memref<1x8xf32, #tpu.memory_space<vmem>>, vector<1x8xf32>
    %5 = vector.broadcast %4 : vector<1x8xf32> to vector<49x8xf32>
    %6 = arith.addf %3, %5 : vector<49x8xf32>
    %cst_6 = arith.constant 0.000000e+00 : f32
    %7 = vector.broadcast %cst_6 : f32 to vector<49x8xf32>
    %8 = arith.cmpf ogt, %6, %7 : vector<49x8xf32>
    %cst_7 = arith.constant 0.000000e+00 : f32
    %9 = vector.broadcast %cst_7 : f32 to vector<49x8xf32>
    %10 = arith.minimumf %6, %9 : vector<49x8xf32>
    %11 = math.exp %10 : vector<49x8xf32>
    %cst_8 = arith.constant 1.000000e+00 : f32
    %12 = vector.broadcast %cst_8 : f32 to vector<49x8xf32>
    %13 = arith.subf %11, %12 : vector<49x8xf32>
    %14 = arith.select %8, %6, %13 : vector<49x8xi1>, vector<49x8xf32>
    %cst_9 = arith.constant 0.000000e+00 : f32
    %15 = vector.broadcast %cst_9 : f32 to vector<72x8xf32>
    %c0_10 = arith.constant 0 : index
    %c0_11 = arith.constant 0 : index
    %16 = vector.load %arg11[%c0_10, %c0_11] : memref<72x8xf32, #tpu.memory_space<vmem>>, vector<72x8xf32>
    tpu.vector_store %arg11[%c0_10, %c0_11], %15 {strides = array<i32>} : memref<72x8xf32, #tpu.memory_space<vmem>>, vector<72x8xf32>,
    %c0_12 = arith.constant 0 : index
    %c0_13 = arith.constant 0 : index
    %17 = vector.load %arg11[%c0_12, %c0_13] : memref<72x8xf32, #tpu.memory_space<vmem>>, vector<49x8xf32>
    tpu.vector_store %arg11[%c0_12, %c0_13], %14 {strides = array<i32>} : memref<72x8xf32, #tpu.memory_space<vmem>>, vector<49x8xf32>,
    %cst_14 = arith.constant 0.000000e+00 : f32
    %18 = vector.broadcast %cst_14 : f32 to vector<49x16xf32>
    %c0_15 = arith.constant 0 : index
    %c0_16 = arith.constant 0 : index
    %19 = vector.load %arg11[%c0_15, %c0_16] : memref<72x8xf32, #tpu.memory_space<vmem>>, vector<49x8xf32>
    %c0_17 = arith.constant 0 : index
    %c0_18 = arith.constant 0 : index
    %20 = vector.load %arg4[%c0_17, %c0_18] : memref<72x16xf32, #tpu.memory_space<vmem>>, vector<8x16xf32>
    %cst_19 = arith.constant dense<0.000000e+00> : vector<49x16xf32>
    %21 = tpu.matmul %19, %20, %cst_19 {dimension_numbers = #tpu.dot_dimension_numbers<[1], [0], [0], [1], [0, 0, 1, 1], [], []>} : vector<49x8xf32>, vector<8x16xf32>, vector<49x16xf32> -> vector<49x16xf32>
    %22 = arith.addf %18, %21 : vector<49x16xf32>
    %c1 = arith.constant 1 : index
    %c0_20 = arith.constant 0 : index
    %23 = vector.load %arg11[%c1, %c0_20] : memref<72x8xf32, #tpu.memory_space<vmem>>, vector<49x8xf32>
    %c8 = arith.constant 8 : index
    %c0_21 = arith.constant 0 : index
    %24 = vector.load %arg4[%c8, %c0_21] : memref<72x16xf32, #tpu.memory_space<vmem>>, vector<8x16xf32>
    %cst_22 = arith.constant dense<0.000000e+00> : vector<49x16xf32>
    %25 = tpu.matmul %23, %24, %cst_22 {dimension_numbers = #tpu.dot_dimension_numbers<[1], [0], [0], [1], [0, 0, 1, 1], [], []>} : vector<49x8xf32>, vector<8x16xf32>, vector<49x16xf32> -> vector<49x16xf32>
    %26 = arith.addf %22, %25 : vector<49x16xf32>
    %c2 = arith.constant 2 : index
    %c0_23 = arith.constant 0 : index
    %27 = vector.load %arg11[%c2, %c0_23] : memref<72x8xf32, #tpu.memory_space<vmem>>, vector<49x8xf32>
    %c16 = arith.constant 16 : index
    %c0_24 = arith.constant 0 : index
    %28 = vector.load %arg4[%c16, %c0_24] : memref<72x16xf32, #tpu.memory_space<vmem>>, vector<8x16xf32>
    %cst_25 = arith.constant dense<0.000000e+00> : vector<49x16xf32>
    %29 = tpu.matmul %27, %28, %cst_25 {dimension_numbers = #tpu.dot_dimension_numbers<[1], [0], [0], [1], [0, 0, 1, 1], [], []>} : vector<49x8xf32>, vector<8x16xf32>, vector<49x16xf32> -> vector<49x16xf32>
    %30 = arith.addf %26, %29 : vector<49x16xf32>
    %c7 = arith.constant 7 : index
    %c0_26 = arith.constant 0 : index
    %31 = vector.load %arg11[%c7, %c0_26] : memref<72x8xf32, #tpu.memory_space<vmem>>, vector<49x8xf32>
    %c24 = arith.constant 24 : index
    %c0_27 = arith.constant 0 : index
    %32 = vector.load %arg4[%c24, %c0_27] : memref<72x16xf32, #tpu.memory_space<vmem>>, vector<8x16xf32>
    %cst_28 = arith.constant dense<0.000000e+00> : vector<49x16xf32>
    %33 = tpu.matmul %31, %32, %cst_28 {dimension_numbers = #tpu.dot_dimension_numbers<[1], [0], [0], [1], [0, 0, 1, 1], [], []>} : vector<49x8xf32>, vector<8x16xf32>, vector<49x16xf32> -> vector<49x16xf32>
    %34 = arith.addf %30, %33 : vector<49x16xf32>
    %c8_29 = arith.constant 8 : index
    %c0_30 = arith.constant 0 : index
    %35 = vector.load %arg11[%c8_29, %c0_30] : memref<72x8xf32, #tpu.memory_space<vmem>>, vector<49x8xf32>
    %c32 = arith.constant 32 : index
    %c0_31 = arith.constant 0 : index
    %36 = vector.load %arg4[%c32, %c0_31] : memref<72x16xf32, #tpu.memory_space<vmem>>, vector<8x16xf32>
    %cst_32 = arith.constant dense<0.000000e+00> : vector<49x16xf32>
    %37 = tpu.matmul %35, %36, %cst_32 {dimension_numbers = #tpu.dot_dimension_numbers<[1], [0], [0], [1], [0, 0, 1, 1], [], []>} : vector<49x8xf32>, vector<8x16xf32>, vector<49x16xf32> -> vector<49x16xf32>
    %38 = arith.addf %34, %37 : vector<49x16xf32>
    %c9 = arith.constant 9 : index
    %c0_33 = arith.constant 0 : index
    %39 = vector.load %arg11[%c9, %c0_33] : memref<72x8xf32, #tpu.memory_space<vmem>>, vector<49x8xf32>
    %c40 = arith.constant 40 : index
    %c0_34 = arith.constant 0 : index
    %40 = vector.load %arg4[%c40, %c0_34] : memref<72x16xf32, #tpu.memory_space<vmem>>, vector<8x16xf32>
    %cst_35 = arith.constant dense<0.000000e+00> : vector<49x16xf32>
    %41 = tpu.matmul %39, %40, %cst_35 {dimension_numbers = #tpu.dot_dimension_numbers<[1], [0], [0], [1], [0, 0, 1, 1], [], []>} : vector<49x8xf32>, vector<8x16xf32>, vector<49x16xf32> -> vector<49x16xf32>
    %42 = arith.addf %38, %41 : vector<49x16xf32>
    %c14 = arith.constant 14 : index
    %c0_36 = arith.constant 0 : index
    %43 = vector.load %arg11[%c14, %c0_36] : memref<72x8xf32, #tpu.memory_space<vmem>>, vector<49x8xf32>
    %c48 = arith.constant 48 : index
    %c0_37 = arith.constant 0 : index
    %44 = vector.load %arg4[%c48, %c0_37] : memref<72x16xf32, #tpu.memory_space<vmem>>, vector<8x16xf32>
    %cst_38 = arith.constant dense<0.000000e+00> : vector<49x16xf32>
    %45 = tpu.matmul %43, %44, %cst_38 {dimension_numbers = #tpu.dot_dimension_numbers<[1], [0], [0], [1], [0, 0, 1, 1], [], []>} : vector<49x8xf32>, vector<8x16xf32>, vector<49x16xf32> -> vector<49x16xf32>
    %46 = arith.addf %42, %45 : vector<49x16xf32>
    %c15 = arith.constant 15 : index
    %c0_39 = arith.constant 0 : index
    %47 = vector.load %arg11[%c15, %c0_39] : memref<72x8xf32, #tpu.memory_space<vmem>>, vector<49x8xf32>
    %c56 = arith.constant 56 : index
    %c0_40 = arith.constant 0 : index
    %48 = vector.load %arg4[%c56, %c0_40] : memref<72x16xf32, #tpu.memory_space<vmem>>, vector<8x16xf32>
    %cst_41 = arith.constant dense<0.000000e+00> : vector<49x16xf32>
    %49 = tpu.matmul %47, %48, %cst_41 {dimension_numbers = #tpu.dot_dimension_numbers<[1], [0], [0], [1], [0, 0, 1, 1], [], []>} : vector<49x8xf32>, vector<8x16xf32>, vector<49x16xf32> -> vector<49x16xf32>
    %50 = arith.addf %46, %49 : vector<49x16xf32>
    %c16_42 = arith.constant 16 : index
    %c0_43 = arith.constant 0 : index
    %51 = vector.load %arg11[%c16_42, %c0_43] : memref<72x8xf32, #tpu.memory_space<vmem>>, vector<49x8xf32>
    %c64 = arith.constant 64 : index
    %c0_44 = arith.constant 0 : index
    %52 = vector.load %arg4[%c64, %c0_44] : memref<72x16xf32, #tpu.memory_space<vmem>>, vector<8x16xf32>
    %cst_45 = arith.constant dense<0.000000e+00> : vector<49x16xf32>
    %53 = tpu.matmul %51, %52, %cst_45 {dimension_numbers = #tpu.dot_dimension_numbers<[1], [0], [0], [1], [0, 0, 1, 1], [], []>} : vector<49x8xf32>, vector<8x16xf32>, vector<49x16xf32> -> vector<49x16xf32>
    %54 = arith.addf %50, %53 : vector<49x16xf32>
    %cst_46 = arith.constant 0.000000e+00 : f32
    %55 = vector.broadcast %cst_46 : f32 to vector<56x16xf32>
    %c0_47 = arith.constant 0 : index
    %c0_48 = arith.constant 0 : index
    %56 = vector.load %arg12[%c0_47, %c0_48] : memref<56x16xf32, #tpu.memory_space<vmem>>, vector<56x16xf32>
    tpu.vector_store %arg12[%c0_47, %c0_48], %55 {strides = array<i32>} : memref<56x16xf32, #tpu.memory_space<vmem>>, vector<56x16xf32>,
    %c0_49 = arith.constant 0 : index
    %c0_50 = arith.constant 0 : index
    %57 = vector.load %arg5[%c0_49, %c0_50] : memref<1x16xf32, #tpu.memory_space<vmem>>, vector<1x16xf32>
    %58 = vector.broadcast %57 : vector<1x16xf32> to vector<49x16xf32>
    %59 = arith.addf %54, %58 : vector<49x16xf32>
    %cst_51 = arith.constant 0.000000e+00 : f32
    %60 = vector.broadcast %cst_51 : f32 to vector<49x16xf32>
    %61 = arith.cmpf ogt, %59, %60 : vector<49x16xf32>
    %cst_52 = arith.constant 0.000000e+00 : f32
    %62 = vector.broadcast %cst_52 : f32 to vector<49x16xf32>
    %63 = arith.minimumf %59, %62 : vector<49x16xf32>
    %64 = math.exp %63 : vector<49x16xf32>
    %cst_53 = arith.constant 1.000000e+00 : f32
    %65 = vector.broadcast %cst_53 : f32 to vector<49x16xf32>
    %66 = arith.subf %64, %65 : vector<49x16xf32>
    %67 = arith.select %61, %59, %66 : vector<49x16xi1>, vector<49x16xf32>
    %c0_54 = arith.constant 0 : index
    %c0_55 = arith.constant 0 : index
    %68 = vector.load %arg12[%c0_54, %c0_55] : memref<56x16xf32, #tpu.memory_space<vmem>>, vector<49x16xf32>
    tpu.vector_store %arg12[%c0_54, %c0_55], %67 {strides = array<i32>} : memref<56x16xf32, #tpu.memory_space<vmem>>, vector<49x16xf32>,
    %cst_56 = arith.constant 0.000000e+00 : f32
    %69 = vector.broadcast %cst_56 : f32 to vector<1x32xf32>
    %c0_57 = arith.constant 0 : index
    %c0_58 = arith.constant 0 : index
    %70 = vector.load %arg12[%c0_57, %c0_58] : memref<56x16xf32, #tpu.memory_space<vmem>>, vector<1x16xf32>
    %c0_59 = arith.constant 0 : index
    %c0_60 = arith.constant 0 : index
    %71 = vector.load %arg6[%c0_59, %c0_60] : memref<400x32xf32, #tpu.memory_space<vmem>>, vector<16x32xf32>
    %cst_61 = arith.constant dense<0.000000e+00> : vector<1x32xf32>
    %72 = tpu.matmul %70, %71, %cst_61 {dimension_numbers = #tpu.dot_dimension_numbers<[1], [0], [0], [1], [0, 0, 1, 1], [], []>} : vector<1x16xf32>, vector<16x32xf32>, vector<1x32xf32> -> vector<1x32xf32>
    %73 = arith.addf %69, %72 : vector<1x32xf32>
    %c1_62 = arith.constant 1 : index
    %c0_63 = arith.constant 0 : index
    %74 = vector.load %arg12[%c1_62, %c0_63] : memref<56x16xf32, #tpu.memory_space<vmem>>, vector<1x16xf32>
    %c16_64 = arith.constant 16 : index
    %c0_65 = arith.constant 0 : index
    %75 = vector.load %arg6[%c16_64, %c0_65] : memref<400x32xf32, #tpu.memory_space<vmem>>, vector<16x32xf32>
    %cst_66 = arith.constant dense<0.000000e+00> : vector<1x32xf32>
    %76 = tpu.matmul %74, %75, %cst_66 {dimension_numbers = #tpu.dot_dimension_numbers<[1], [0], [0], [1], [0, 0, 1, 1], [], []>} : vector<1x16xf32>, vector<16x32xf32>, vector<1x32xf32> -> vector<1x32xf32>
    %77 = arith.addf %73, %76 : vector<1x32xf32>
    %c2_67 = arith.constant 2 : index
    %c0_68 = arith.constant 0 : index
    %78 = vector.load %arg12[%c2_67, %c0_68] : memref<56x16xf32, #tpu.memory_space<vmem>>, vector<1x16xf32>
    %c32_69 = arith.constant 32 : index
    %c0_70 = arith.constant 0 : index
    %79 = vector.load %arg6[%c32_69, %c0_70] : memref<400x32xf32, #tpu.memory_space<vmem>>, vector<16x32xf32>
    %cst_71 = arith.constant dense<0.000000e+00> : vector<1x32xf32>
    %80 = tpu.matmul %78, %79, %cst_71 {dimension_numbers = #tpu.dot_dimension_numbers<[1], [0], [0], [1], [0, 0, 1, 1], [], []>} : vector<1x16xf32>, vector<16x32xf32>, vector<1x32xf32> -> vector<1x32xf32>
    %81 = arith.addf %77, %80 : vector<1x32xf32>
    %c3 = arith.constant 3 : index
    %c0_72 = arith.constant 0 : index
    %82 = vector.load %arg12[%c3, %c0_72] : memref<56x16xf32, #tpu.memory_space<vmem>>, vector<1x16xf32>
    %c48_73 = arith.constant 48 : index
    %c0_74 = arith.constant 0 : index
    %83 = vector.load %arg6[%c48_73, %c0_74] : memref<400x32xf32, #tpu.memory_space<vmem>>, vector<16x32xf32>
    %cst_75 = arith.constant dense<0.000000e+00> : vector<1x32xf32>
    %84 = tpu.matmul %82, %83, %cst_75 {dimension_numbers = #tpu.dot_dimension_numbers<[1], [0], [0], [1], [0, 0, 1, 1], [], []>} : vector<1x16xf32>, vector<16x32xf32>, vector<1x32xf32> -> vector<1x32xf32>
    %85 = arith.addf %81, %84 : vector<1x32xf32>
    %c4 = arith.constant 4 : index
    %c0_76 = arith.constant 0 : index
    %86 = vector.load %arg12[%c4, %c0_76] : memref<56x16xf32, #tpu.memory_space<vmem>>, vector<1x16xf32>
    %c64_77 = arith.constant 64 : index
    %c0_78 = arith.constant 0 : index
    %87 = vector.load %arg6[%c64_77, %c0_78] : memref<400x32xf32, #tpu.memory_space<vmem>>, vector<16x32xf32>
    %cst_79 = arith.constant dense<0.000000e+00> : vector<1x32xf32>
    %88 = tpu.matmul %86, %87, %cst_79 {dimension_numbers = #tpu.dot_dimension_numbers<[1], [0], [0], [1], [0, 0, 1, 1], [], []>} : vector<1x16xf32>, vector<16x32xf32>, vector<1x32xf32> -> vector<1x32xf32>
    %89 = arith.addf %85, %88 : vector<1x32xf32>
    %c7_80 = arith.constant 7 : index
    %c0_81 = arith.constant 0 : index
    %90 = vector.load %arg12[%c7_80, %c0_81] : memref<56x16xf32, #tpu.memory_space<vmem>>, vector<1x16xf32>
    %c80 = arith.constant 80 : index
    %c0_82 = arith.constant 0 : index
    %91 = vector.load %arg6[%c80, %c0_82] : memref<400x32xf32, #tpu.memory_space<vmem>>, vector<16x32xf32>
    %cst_83 = arith.constant dense<0.000000e+00> : vector<1x32xf32>
    %92 = tpu.matmul %90, %91, %cst_83 {dimension_numbers = #tpu.dot_dimension_numbers<[1], [0], [0], [1], [0, 0, 1, 1], [], []>} : vector<1x16xf32>, vector<16x32xf32>, vector<1x32xf32> -> vector<1x32xf32>
    %93 = arith.addf %89, %92 : vector<1x32xf32>
    %c8_84 = arith.constant 8 : index
    %c0_85 = arith.constant 0 : index
    %94 = vector.load %arg12[%c8_84, %c0_85] : memref<56x16xf32, #tpu.memory_space<vmem>>, vector<1x16xf32>
    %c96 = arith.constant 96 : index
    %c0_86 = arith.constant 0 : index
    %95 = vector.load %arg6[%c96, %c0_86] : memref<400x32xf32, #tpu.memory_space<vmem>>, vector<16x32xf32>
    %cst_87 = arith.constant dense<0.000000e+00> : vector<1x32xf32>
    %96 = tpu.matmul %94, %95, %cst_87 {dimension_numbers = #tpu.dot_dimension_numbers<[1], [0], [0], [1], [0, 0, 1, 1], [], []>} : vector<1x16xf32>, vector<16x32xf32>, vector<1x32xf32> -> vector<1x32xf32>
    %97 = arith.addf %93, %96 : vector<1x32xf32>
    %c9_88 = arith.constant 9 : index
    %c0_89 = arith.constant 0 : index
    %98 = vector.load %arg12[%c9_88, %c0_89] : memref<56x16xf32, #tpu.memory_space<vmem>>, vector<1x16xf32>
    %c112 = arith.constant 112 : index
    %c0_90 = arith.constant 0 : index
    %99 = vector.load %arg6[%c112, %c0_90] : memref<400x32xf32, #tpu.memory_space<vmem>>, vector<16x32xf32>
    %cst_91 = arith.constant dense<0.000000e+00> : vector<1x32xf32>
    %100 = tpu.matmul %98, %99, %cst_91 {dimension_numbers = #tpu.dot_dimension_numbers<[1], [0], [0], [1], [0, 0, 1, 1], [], []>} : vector<1x16xf32>, vector<16x32xf32>, vector<1x32xf32> -> vector<1x32xf32>
    %101 = arith.addf %97, %100 : vector<1x32xf32>
    %c10 = arith.constant 10 : index
    %c0_92 = arith.constant 0 : index
    %102 = vector.load %arg12[%c10, %c0_92] : memref<56x16xf32, #tpu.memory_space<vmem>>, vector<1x16xf32>
    %c128 = arith.constant 128 : index
    %c0_93 = arith.constant 0 : index
    %103 = vector.load %arg6[%c128, %c0_93] : memref<400x32xf32, #tpu.memory_space<vmem>>, vector<16x32xf32>
    %cst_94 = arith.constant dense<0.000000e+00> : vector<1x32xf32>
    %104 = tpu.matmul %102, %103, %cst_94 {dimension_numbers = #tpu.dot_dimension_numbers<[1], [0], [0], [1], [0, 0, 1, 1], [], []>} : vector<1x16xf32>, vector<16x32xf32>, vector<1x32xf32> -> vector<1x32xf32>
    %105 = arith.addf %101, %104 : vector<1x32xf32>
    %c11 = arith.constant 11 : index
    %c0_95 = arith.constant 0 : index
    %106 = vector.load %arg12[%c11, %c0_95] : memref<56x16xf32, #tpu.memory_space<vmem>>, vector<1x16xf32>
    %c144 = arith.constant 144 : index
    %c0_96 = arith.constant 0 : index
    %107 = vector.load %arg6[%c144, %c0_96] : memref<400x32xf32, #tpu.memory_space<vmem>>, vector<16x32xf32>
    %cst_97 = arith.constant dense<0.000000e+00> : vector<1x32xf32>
    %108 = tpu.matmul %106, %107, %cst_97 {dimension_numbers = #tpu.dot_dimension_numbers<[1], [0], [0], [1], [0, 0, 1, 1], [], []>} : vector<1x16xf32>, vector<16x32xf32>, vector<1x32xf32> -> vector<1x32xf32>
    %109 = arith.addf %105, %108 : vector<1x32xf32>
    %c14_98 = arith.constant 14 : index
    %c0_99 = arith.constant 0 : index
    %110 = vector.load %arg12[%c14_98, %c0_99] : memref<56x16xf32, #tpu.memory_space<vmem>>, vector<1x16xf32>
    %c160 = arith.constant 160 : index
    %c0_100 = arith.constant 0 : index
    %111 = vector.load %arg6[%c160, %c0_100] : memref<400x32xf32, #tpu.memory_space<vmem>>, vector<16x32xf32>
    %cst_101 = arith.constant dense<0.000000e+00> : vector<1x32xf32>
    %112 = tpu.matmul %110, %111, %cst_101 {dimension_numbers = #tpu.dot_dimension_numbers<[1], [0], [0], [1], [0, 0, 1, 1], [], []>} : vector<1x16xf32>, vector<16x32xf32>, vector<1x32xf32> -> vector<1x32xf32>
    %113 = arith.addf %109, %112 : vector<1x32xf32>
    %c15_102 = arith.constant 15 : index
    %c0_103 = arith.constant 0 : index
    %114 = vector.load %arg12[%c15_102, %c0_103] : memref<56x16xf32, #tpu.memory_space<vmem>>, vector<1x16xf32>
    %c176 = arith.constant 176 : index
    %c0_104 = arith.constant 0 : index
    %115 = vector.load %arg6[%c176, %c0_104] : memref<400x32xf32, #tpu.memory_space<vmem>>, vector<16x32xf32>
    %cst_105 = arith.constant dense<0.000000e+00> : vector<1x32xf32>
    %116 = tpu.matmul %114, %115, %cst_105 {dimension_numbers = #tpu.dot_dimension_numbers<[1], [0], [0], [1], [0, 0, 1, 1], [], []>} : vector<1x16xf32>, vector<16x32xf32>, vector<1x32xf32> -> vector<1x32xf32>
    %117 = arith.addf %113, %116 : vector<1x32xf32>
    %c16_106 = arith.constant 16 : index
    %c0_107 = arith.constant 0 : index
    %118 = vector.load %arg12[%c16_106, %c0_107] : memref<56x16xf32, #tpu.memory_space<vmem>>, vector<1x16xf32>
    %c192 = arith.constant 192 : index
    %c0_108 = arith.constant 0 : index
    %119 = vector.load %arg6[%c192, %c0_108] : memref<400x32xf32, #tpu.memory_space<vmem>>, vector<16x32xf32>
    %cst_109 = arith.constant dense<0.000000e+00> : vector<1x32xf32>
    %120 = tpu.matmul %118, %119, %cst_109 {dimension_numbers = #tpu.dot_dimension_numbers<[1], [0], [0], [1], [0, 0, 1, 1], [], []>} : vector<1x16xf32>, vector<16x32xf32>, vector<1x32xf32> -> vector<1x32xf32>
    %121 = arith.addf %117, %120 : vector<1x32xf32>
    %c17 = arith.constant 17 : index
    %c0_110 = arith.constant 0 : index
    %122 = vector.load %arg12[%c17, %c0_110] : memref<56x16xf32, #tpu.memory_space<vmem>>, vector<1x16xf32>
    %c208 = arith.constant 208 : index
    %c0_111 = arith.constant 0 : index
    %123 = vector.load %arg6[%c208, %c0_111] : memref<400x32xf32, #tpu.memory_space<vmem>>, vector<16x32xf32>
    %cst_112 = arith.constant dense<0.000000e+00> : vector<1x32xf32>
    %124 = tpu.matmul %122, %123, %cst_112 {dimension_numbers = #tpu.dot_dimension_numbers<[1], [0], [0], [1], [0, 0, 1, 1], [], []>} : vector<1x16xf32>, vector<16x32xf32>, vector<1x32xf32> -> vector<1x32xf32>
    %125 = arith.addf %121, %124 : vector<1x32xf32>
    %c18 = arith.constant 18 : index
    %c0_113 = arith.constant 0 : index
    %126 = vector.load %arg12[%c18, %c0_113] : memref<56x16xf32, #tpu.memory_space<vmem>>, vector<1x16xf32>
    %c224 = arith.constant 224 : index
    %c0_114 = arith.constant 0 : index
    %127 = vector.load %arg6[%c224, %c0_114] : memref<400x32xf32, #tpu.memory_space<vmem>>, vector<16x32xf32>
    %cst_115 = arith.constant dense<0.000000e+00> : vector<1x32xf32>
    %128 = tpu.matmul %126, %127, %cst_115 {dimension_numbers = #tpu.dot_dimension_numbers<[1], [0], [0], [1], [0, 0, 1, 1], [], []>} : vector<1x16xf32>, vector<16x32xf32>, vector<1x32xf32> -> vector<1x32xf32>
    %129 = arith.addf %125, %128 : vector<1x32xf32>
    %c21 = arith.constant 21 : index
    %c0_116 = arith.constant 0 : index
    %130 = vector.load %arg12[%c21, %c0_116] : memref<56x16xf32, #tpu.memory_space<vmem>>, vector<1x16xf32>
    %c240 = arith.constant 240 : index
    %c0_117 = arith.constant 0 : index
    %131 = vector.load %arg6[%c240, %c0_117] : memref<400x32xf32, #tpu.memory_space<vmem>>, vector<16x32xf32>
    %cst_118 = arith.constant dense<0.000000e+00> : vector<1x32xf32>
    %132 = tpu.matmul %130, %131, %cst_118 {dimension_numbers = #tpu.dot_dimension_numbers<[1], [0], [0], [1], [0, 0, 1, 1], [], []>} : vector<1x16xf32>, vector<16x32xf32>, vector<1x32xf32> -> vector<1x32xf32>
    %133 = arith.addf %129, %132 : vector<1x32xf32>
    %c22 = arith.constant 22 : index
    %c0_119 = arith.constant 0 : index
    %134 = vector.load %arg12[%c22, %c0_119] : memref<56x16xf32, #tpu.memory_space<vmem>>, vector<1x16xf32>
    %c256 = arith.constant 256 : index
    %c0_120 = arith.constant 0 : index
    %135 = vector.load %arg6[%c256, %c0_120] : memref<400x32xf32, #tpu.memory_space<vmem>>, vector<16x32xf32>
    %cst_121 = arith.constant dense<0.000000e+00> : vector<1x32xf32>
    %136 = tpu.matmul %134, %135, %cst_121 {dimension_numbers = #tpu.dot_dimension_numbers<[1], [0], [0], [1], [0, 0, 1, 1], [], []>} : vector<1x16xf32>, vector<16x32xf32>, vector<1x32xf32> -> vector<1x32xf32>
    %137 = arith.addf %133, %136 : vector<1x32xf32>
    %c23 = arith.constant 23 : index
    %c0_122 = arith.constant 0 : index
    %138 = vector.load %arg12[%c23, %c0_122] : memref<56x16xf32, #tpu.memory_space<vmem>>, vector<1x16xf32>
    %c272 = arith.constant 272 : index
    %c0_123 = arith.constant 0 : index
    %139 = vector.load %arg6[%c272, %c0_123] : memref<400x32xf32, #tpu.memory_space<vmem>>, vector<16x32xf32>
    %cst_124 = arith.constant dense<0.000000e+00> : vector<1x32xf32>
    %140 = tpu.matmul %138, %139, %cst_124 {dimension_numbers = #tpu.dot_dimension_numbers<[1], [0], [0], [1], [0, 0, 1, 1], [], []>} : vector<1x16xf32>, vector<16x32xf32>, vector<1x32xf32> -> vector<1x32xf32>
    %141 = arith.addf %137, %140 : vector<1x32xf32>
    %c24_125 = arith.constant 24 : index
    %c0_126 = arith.constant 0 : index
    %142 = vector.load %arg12[%c24_125, %c0_126] : memref<56x16xf32, #tpu.memory_space<vmem>>, vector<1x16xf32>
    %c288 = arith.constant 288 : index
    %c0_127 = arith.constant 0 : index
    %143 = vector.load %arg6[%c288, %c0_127] : memref<400x32xf32, #tpu.memory_space<vmem>>, vector<16x32xf32>
    %cst_128 = arith.constant dense<0.000000e+00> : vector<1x32xf32>
    %144 = tpu.matmul %142, %143, %cst_128 {dimension_numbers = #tpu.dot_dimension_numbers<[1], [0], [0], [1], [0, 0, 1, 1], [], []>} : vector<1x16xf32>, vector<16x32xf32>, vector<1x32xf32> -> vector<1x32xf32>
    %145 = arith.addf %141, %144 : vector<1x32xf32>
    %c25 = arith.constant 25 : index
    %c0_129 = arith.constant 0 : index
    %146 = vector.load %arg12[%c25, %c0_129] : memref<56x16xf32, #tpu.memory_space<vmem>>, vector<1x16xf32>
    %c304 = arith.constant 304 : index
    %c0_130 = arith.constant 0 : index
    %147 = vector.load %arg6[%c304, %c0_130] : memref<400x32xf32, #tpu.memory_space<vmem>>, vector<16x32xf32>
    %cst_131 = arith.constant dense<0.000000e+00> : vector<1x32xf32>
    %148 = tpu.matmul %146, %147, %cst_131 {dimension_numbers = #tpu.dot_dimension_numbers<[1], [0], [0], [1], [0, 0, 1, 1], [], []>} : vector<1x16xf32>, vector<16x32xf32>, vector<1x32xf32> -> vector<1x32xf32>
    %149 = arith.addf %145, %148 : vector<1x32xf32>
    %c28 = arith.constant 28 : index
    %c0_132 = arith.constant 0 : index
    %150 = vector.load %arg12[%c28, %c0_132] : memref<56x16xf32, #tpu.memory_space<vmem>>, vector<1x16xf32>
    %c320 = arith.constant 320 : index
    %c0_133 = arith.constant 0 : index
    %151 = vector.load %arg6[%c320, %c0_133] : memref<400x32xf32, #tpu.memory_space<vmem>>, vector<16x32xf32>
    %cst_134 = arith.constant dense<0.000000e+00> : vector<1x32xf32>
    %152 = tpu.matmul %150, %151, %cst_134 {dimension_numbers = #tpu.dot_dimension_numbers<[1], [0], [0], [1], [0, 0, 1, 1], [], []>} : vector<1x16xf32>, vector<16x32xf32>, vector<1x32xf32> -> vector<1x32xf32>
    %153 = arith.addf %149, %152 : vector<1x32xf32>
    %c29 = arith.constant 29 : index
    %c0_135 = arith.constant 0 : index
    %154 = vector.load %arg12[%c29, %c0_135] : memref<56x16xf32, #tpu.memory_space<vmem>>, vector<1x16xf32>
    %c336 = arith.constant 336 : index
    %c0_136 = arith.constant 0 : index
    %155 = vector.load %arg6[%c336, %c0_136] : memref<400x32xf32, #tpu.memory_space<vmem>>, vector<16x32xf32>
    %cst_137 = arith.constant dense<0.000000e+00> : vector<1x32xf32>
    %156 = tpu.matmul %154, %155, %cst_137 {dimension_numbers = #tpu.dot_dimension_numbers<[1], [0], [0], [1], [0, 0, 1, 1], [], []>} : vector<1x16xf32>, vector<16x32xf32>, vector<1x32xf32> -> vector<1x32xf32>
    %157 = arith.addf %153, %156 : vector<1x32xf32>
    %c30 = arith.constant 30 : index
    %c0_138 = arith.constant 0 : index
    %158 = vector.load %arg12[%c30, %c0_138] : memref<56x16xf32, #tpu.memory_space<vmem>>, vector<1x16xf32>
    %c352 = arith.constant 352 : index
    %c0_139 = arith.constant 0 : index
    %159 = vector.load %arg6[%c352, %c0_139] : memref<400x32xf32, #tpu.memory_space<vmem>>, vector<16x32xf32>
    %cst_140 = arith.constant dense<0.000000e+00> : vector<1x32xf32>
    %160 = tpu.matmul %158, %159, %cst_140 {dimension_numbers = #tpu.dot_dimension_numbers<[1], [0], [0], [1], [0, 0, 1, 1], [], []>} : vector<1x16xf32>, vector<16x32xf32>, vector<1x32xf32> -> vector<1x32xf32>
    %161 = arith.addf %157, %160 : vector<1x32xf32>
    %c31 = arith.constant 31 : index
    %c0_141 = arith.constant 0 : index
    %162 = vector.load %arg12[%c31, %c0_141] : memref<56x16xf32, #tpu.memory_space<vmem>>, vector<1x16xf32>
    %c368 = arith.constant 368 : index
    %c0_142 = arith.constant 0 : index
    %163 = vector.load %arg6[%c368, %c0_142] : memref<400x32xf32, #tpu.memory_space<vmem>>, vector<16x32xf32>
    %cst_143 = arith.constant dense<0.000000e+00> : vector<1x32xf32>
    %164 = tpu.matmul %162, %163, %cst_143 {dimension_numbers = #tpu.dot_dimension_numbers<[1], [0], [0], [1], [0, 0, 1, 1], [], []>} : vector<1x16xf32>, vector<16x32xf32>, vector<1x32xf32> -> vector<1x32xf32>
    %165 = arith.addf %161, %164 : vector<1x32xf32>
    %c32_144 = arith.constant 32 : index
    %c0_145 = arith.constant 0 : index
    %166 = vector.load %arg12[%c32_144, %c0_145] : memref<56x16xf32, #tpu.memory_space<vmem>>, vector<1x16xf32>
    %c384 = arith.constant 384 : index
    %c0_146 = arith.constant 0 : index
    %167 = vector.load %arg6[%c384, %c0_146] : memref<400x32xf32, #tpu.memory_space<vmem>>, vector<16x32xf32>
    %cst_147 = arith.constant dense<0.000000e+00> : vector<1x32xf32>
    %168 = tpu.matmul %166, %167, %cst_147 {dimension_numbers = #tpu.dot_dimension_numbers<[1], [0], [0], [1], [0, 0, 1, 1], [], []>} : vector<1x16xf32>, vector<16x32xf32>, vector<1x32xf32> -> vector<1x32xf32>
    %169 = arith.addf %165, %168 : vector<1x32xf32>
    %c0_148 = arith.constant 0 : index
    %c0_149 = arith.constant 0 : index
    %170 = vector.load %arg7[%c0_148, %c0_149] : memref<1x32xf32, #tpu.memory_space<vmem>>, vector<1x32xf32>
    %171 = arith.addf %169, %170 : vector<1x32xf32>
    %cst_150 = arith.constant 0.000000e+00 : f32
    %172 = vector.broadcast %cst_150 : f32 to vector<1x32xf32>
    %173 = arith.cmpf ogt, %171, %172 : vector<1x32xf32>
    %cst_151 = arith.constant 0.000000e+00 : f32
    %174 = vector.broadcast %cst_151 : f32 to vector<1x32xf32>
    %175 = arith.minimumf %171, %174 : vector<1x32xf32>
    %176 = math.exp %175 : vector<1x32xf32>
    %cst_152 = arith.constant 1.000000e+00 : f32
    %177 = vector.broadcast %cst_152 : f32 to vector<1x32xf32>
    %178 = arith.subf %176, %177 : vector<1x32xf32>
    %179 = arith.select %173, %171, %178 : vector<1x32xi1>, vector<1x32xf32>
    %c0_153 = arith.constant 0 : index
    %c0_154 = arith.constant 0 : index
    %180 = vector.load %arg8[%c0_153, %c0_154] : memref<1x32xf32, #tpu.memory_space<vmem>>, vector<1x32xf32>
    %181 = arith.mulf %179, %180 : vector<1x32xf32>
    %cst_155 = arith.constant dense<0.000000e+00> : vector<1xf32>
    %182 = vector.multi_reduction <add>, %181, %cst_155 [1] : vector<1x32xf32> to vector<1xf32>
    %183 = vector.shape_cast %182 : vector<1xf32> to vector<1x1xf32>
    %c0_156 = arith.constant 0 : index
    %c0_157 = arith.constant 0 : index
    %184 = vector.load %arg9[%c0_156, %c0_157] : memref<1x1xf32, #tpu.memory_space<vmem>>, vector<1x1xf32>
    %185 = arith.addf %183, %184 : vector<1x1xf32>
    %c0_158 = arith.constant 0 : index
    %c0_159 = arith.constant 0 : index
    %c0_160 = arith.constant 0 : index
    %186 = vector.load %arg10[%c0_158, %c0_159, %c0_160] : memref<1x1x1xf32, #tpu.memory_space<vmem>>, vector<1x1x1xf32>
    %187 = vector.shape_cast %186 : vector<1x1x1xf32> to vector<1x1xf32>
    %188 = vector.shape_cast %185 : vector<1x1xf32> to vector<1x1x1xf32>
    tpu.vector_store %arg10[%c0_158, %c0_159, %c0_160], %188 {strides = array<i32>} : memref<1x1x1xf32, #tpu.memory_space<vmem>>, vector<1x1x1xf32>,
    return
  }
  func.func @transform_0(%arg0: i32) -> (i32, i32, i32) {
    %c0_i32 = arith.constant 0 : i32
    %c0_i32_0 = arith.constant 0 : i32
    %c0_i32_1 = arith.constant 0 : i32
    return %arg0, %c0_i32, %c0_i32_0 : i32, i32, i32
  }
  func.func @transform_1(%arg0: i32) -> (i32, i32) {
    %c0_i32 = arith.constant 0 : i32
    %c0_i32_0 = arith.constant 0 : i32
    %c0_i32_1 = arith.constant 0 : i32
    return %c0_i32, %c0_i32_0 : i32, i32
  }
  func.func @transform_2(%arg0: i32) -> (i32, i32) {
    %c0_i32 = arith.constant 0 : i32
    %c0_i32_0 = arith.constant 0 : i32
    %c0_i32_1 = arith.constant 0 : i32
    return %c0_i32, %c0_i32_0 : i32, i32
  }
  func.func @transform_3(%arg0: i32) -> (i32, i32) {
    %c0_i32 = arith.constant 0 : i32
    %c0_i32_0 = arith.constant 0 : i32
    %c0_i32_1 = arith.constant 0 : i32
    return %c0_i32, %c0_i32_0 : i32, i32
  }
  func.func @transform_4(%arg0: i32) -> (i32, i32) {
    %c0_i32 = arith.constant 0 : i32
    %c0_i32_0 = arith.constant 0 : i32
    %c0_i32_1 = arith.constant 0 : i32
    return %c0_i32, %c0_i32_0 : i32, i32
  }
  func.func @transform_5(%arg0: i32) -> (i32, i32) {
    %c0_i32 = arith.constant 0 : i32
    %c0_i32_0 = arith.constant 0 : i32
    %c0_i32_1 = arith.constant 0 : i32
    return %c0_i32, %c0_i32_0 : i32, i32
  }
  func.func @transform_6(%arg0: i32) -> (i32, i32) {
    %c0_i32 = arith.constant 0 : i32
    %c0_i32_0 = arith.constant 0 : i32
    %c0_i32_1 = arith.constant 0 : i32
    return %c0_i32, %c0_i32_0 : i32, i32
  }
  func.func @transform_7(%arg0: i32) -> (i32, i32) {
    %c0_i32 = arith.constant 0 : i32
    %c0_i32_0 = arith.constant 0 : i32
    %c0_i32_1 = arith.constant 0 : i32
    return %c0_i32, %c0_i32_0 : i32, i32
  }
  func.func @transform_8(%arg0: i32) -> (i32, i32) {
    %c0_i32 = arith.constant 0 : i32
    %c0_i32_0 = arith.constant 0 : i32
    %c0_i32_1 = arith.constant 0 : i32
    return %c0_i32, %c0_i32_0 : i32, i32
  }
  func.func @transform_9(%arg0: i32) -> (i32, i32, i32) {
    %c0_i32 = arith.constant 0 : i32
    %c0_i32_0 = arith.constant 0 : i32
    %c0_i32_1 = arith.constant 0 : i32
    return %arg0, %c0_i32, %c0_i32_0 : i32, i32, i32
  }
}

</mosaic_0001>

<llo_original>
// kernel: cnn_critic_forward.1
$region0: #{cnn_critic_forward.1}
  #allocation0 [shape = 'u32[]', space=smem, size = 0x4, offset = 0x4, fixed_abs, tag = 'smem constant byte address 0x4 - core index']
  #allocation1 [shape = 'u32[144,128]{1,0:T(1,128)}', space=vmem, size = 0x12000, scoped, tag = 'internal scratch']
  #allocation2 [shape = 'f32[72,8]{1,0:T(8,128)}', space=vmem, size = 0x9000, scoped, tag = 'scratch operand']
  #allocation3 [shape = 'f32[56,16]{1,0:T(8,128)}', space=vmem, size = 0x7000, scoped, tag = 'scratch operand']
  #allocation4 [shape = 'f32[1,1]{1,0:T(1,128)S(1)}', space=vmem, size = 0x200, scoped, tag = 'scoped memory for cnn_critic_forward.1']
  %s0 = inlined_call_operand.vmem [shape: f32[2,49,64], index: 0, kind: input, shape index: {}]
  %s1 = inlined_call_operand.vmem [shape: f32[64,8], index: 1, kind: input, shape index: {}]
  %s2 = inlined_call_operand.vmem [shape: f32[1,8], index: 2, kind: input, shape index: {}]
  %s3 = inlined_call_operand.vmem [shape: f32[72,16], index: 3, kind: input, shape index: {}]
  %s4 = inlined_call_operand.vmem [shape: f32[1,16], index: 4, kind: input, shape index: {}]
  %s5 = inlined_call_operand.vmem [shape: f32[400,32], index: 5, kind: input, shape index: {}]
  %s6 = inlined_call_operand.vmem [shape: f32[1,32], index: 6, kind: input, shape index: {}]
  %s7 = inlined_call_operand.vmem [shape: f32[1,32], index: 7, kind: input, shape index: {}]
  %s8 = inlined_call_operand.<no memory space> [shape: f32[1,1], index: 8, kind: input, shape index: {}]
  %s9 = inlined_call_operand.vmem [shape: f32[2,1,1], index: 9, kind: output, shape index: {}]
  %s10 = sld [smem:[#allocation0]]
  $region69: #{cnn_critic_forward.1} parent=0
    _
  %s12 = ssub.s32 1, %s10
  %s13 = scalar_select 0, %s12, %s10
  %v14 = vstv %s8
  %15 = vst [vmem:[#allocation4] sm:$0x1] %v14
  loop: start=0, step=1, limit=4
  $region2: #{cnn_critic_forward.1} parent=0 // loop_pre_header
    _
  $region3: #{cnn_critic_forward.1} parent=0 // loop_header
    %s17 = sphi 0, %s21
    %p18 = scmp.ge.s32.totalorder %s17, 4
    %s27 = sphi 0, %s29
    %s30 = sphi 0, %s27
    %s31 = sphi 0, %s30
    %s47 = sphi 0, %s31
    %s51 = sphi 0, %s51
    %s53 = sphi 0, %s51
    %s54 = sphi 0, %s53
    %s68 = sphi 0, %s54
    %s72 = sphi 0, %s72
    %s74 = sphi 0, %s72
    %s75 = sphi 0, %s74
    %s89 = sphi 0, %s75
    %s93 = sphi 0, %s93
    %s95 = sphi 0, %s93
    %s96 = sphi 0, %s95
    %s110 = sphi 0, %s96
    %s114 = sphi 0, %s114
    %s116 = sphi 0, %s114
    %s117 = sphi 0, %s116
    %s131 = sphi 0, %s117
    %s135 = sphi 0, %s135
    %s137 = sphi 0, %s135
    %s138 = sphi 0, %s137
    %s152 = sphi 0, %s138
    %s156 = sphi 0, %s156
    %s158 = sphi 0, %s156
    %s159 = sphi 0, %s158
    %s173 = sphi 0, %s159
    %s177 = sphi 0, %s177
    %s179 = sphi 0, %s177
    %s180 = sphi 0, %s179
    %s194 = sphi 0, %s180
    %s198 = sphi 0, %s198
    %s200 = sphi 0, %s198
    %s201 = sphi 0, %s200
    %s215 = sphi 0, %s201
    %s221 = sphi 0, %s223
    %s224 = sphi 0, %s221
    %s225 = sphi 0, %s224
    %s241 = sphi 0, %s225
  $region4: #{cnn_critic_forward.1} parent=0 // loop_header_branch
    %20 = sbr.rel (%p18) target = $region8
  $region5: #{cnn_critic_forward.1} parent=0 // loop_body
    %s22 = ssub.s32 %s17, 1
    %s23 = ssub.s32 %s17, 2
    %s24 = sadd.s32 %s17, 1
    %s25 = ssub.s32 %s17, %s24
    %p26 = scmp.eq.s32.totalorder %s25, 0
    %s28 = sadd.s32 %s27, 1
    %s29 = scalar_select %p26, %s27, %s28
    %p32 = pneg %p26
    %p33 = scmp.eq.s32.totalorder %s17, 1
    %p34 = por %p32, %p33
    %p35 = scmp.ne.s32.totalorder %s27, %s30
    %p36 = scmp.eq.s32.totalorder %s17, 0
    %p37 = por %p35, %p36
    %p38 = scmp.ne.s32.totalorder %s27, %s30
    %p39 = scmp.eq.s32.totalorder %s22, 1
    %p40 = por %p38, %p39
    %p41 = scmp.ne.s32.totalorder %s30, %s31
    %p42 = scmp.eq.s32.totalorder %s22, 0
    %p43 = por %p41, %p42
    %p44 = scmp.ne.s32.totalorder %s30, %s31
    %p45 = scmp.eq.s32.totalorder %s23, 1
    %p46 = por %p44, %p45
    %p48 = scmp.ne.s32.totalorder %s31, %s47
    %p49 = scmp.eq.s32.totalorder %s23, 0
    %p50 = por %p48, %p49
    %s52 = sadd.s32 %s51, 1
    %p55 = scmp.eq.s32.totalorder %s17, 1
    %p56 = scmp.ne.s32.totalorder %s51, %s53
    %p57 = scmp.eq.s32.totalorder %s17, 0
    %p58 = por %p56, %p57
    %p59 = scmp.ne.s32.totalorder %s51, %s53
    %p60 = scmp.eq.s32.totalorder %s22, 1
    %p61 = por %p59, %p60
    %p62 = scmp.ne.s32.totalorder %s53, %s54
    %p63 = scmp.eq.s32.totalorder %s22, 0
    %p64 = por %p62, %p63
    %p65 = scmp.ne.s32.totalorder %s53, %s54
    %p66 = scmp.eq.s32.totalorder %s23, 1
    %p67 = por %p65, %p66
    %p69 = scmp.ne.s32.totalorder %s54, %s68
    %p70 = scmp.eq.s32.totalorder %s23, 0
    %p71 = por %p69, %p70
    %s73 = sadd.s32 %s72, 1
    %p76 = scmp.eq.s32.totalorder %s17, 1
    %p77 = scmp.ne.s32.totalorder %s72, %s74
    %p78 = scmp.eq.s32.totalorder %s17, 0
    %p79 = por %p77, %p78
    %p80 = scmp.ne.s32.totalorder %s72, %s74
    %p81 = scmp.eq.s32.totalorder %s22, 1
    %p82 = por %p80, %p81
    %p83 = scmp.ne.s32.totalorder %s74, %s75
    %p84 = scmp.eq.s32.totalorder %s22, 0
    %p85 = por %p83, %p84
    %p86 = scmp.ne.s32.totalorder %s74, %s75
    %p87 = scmp.eq.s32.totalorder %s23, 1
    %p88 = por %p86, %p87
    %p90 = scmp.ne.s32.totalorder %s75, %s89
    %p91 = scmp.eq.s32.totalorder %s23, 0
    %p92 = por %p90, %p91
    %s94 = sadd.s32 %s93, 1
    %p97 = scmp.eq.s32.totalorder %s17, 1
    %p98 = scmp.ne.s32.totalorder %s93, %s95
    %p99 = scmp.eq.s32.totalorder %s17, 0
    %p100 = por %p98, %p99
    %p101 = scmp.ne.s32.totalorder %s93, %s95
    %p102 = scmp.eq.s32.totalorder %s22, 1
    %p103 = por %p101, %p102
    %p104 = scmp.ne.s32.totalorder %s95, %s96
    %p105 = scmp.eq.s32.totalorder %s22, 0
    %p106 = por %p104, %p105
    %p107 = scmp.ne.s32.totalorder %s95, %s96
    %p108 = scmp.eq.s32.totalorder %s23, 1
    %p109 = por %p107, %p108
    %p111 = scmp.ne.s32.totalorder %s96, %s110
    %p112 = scmp.eq.s32.totalorder %s23, 0
    %p113 = por %p111, %p112
    %s115 = sadd.s32 %s114, 1
    %p118 = scmp.eq.s32.totalorder %s17, 1
    %p119 = scmp.ne.s32.totalorder %s114, %s116
    %p120 = scmp.eq.s32.totalorder %s17, 0
    %p121 = por %p119, %p120
    %p122 = scmp.ne.s32.totalorder %s114, %s116
    %p123 = scmp.eq.s32.totalorder %s22, 1
    %p124 = por %p122, %p123
    %p125 = scmp.ne.s32.totalorder %s116, %s117
    %p126 = scmp.eq.s32.totalorder %s22, 0
    %p127 = por %p125, %p126
    %p128 = scmp.ne.s32.totalorder %s116, %s117
    %p129 = scmp.eq.s32.totalorder %s23, 1
    %p130 = por %p128, %p129
    %p132 = scmp.ne.s32.totalorder %s117, %s131
    %p133 = scmp.eq.s32.totalorder %s23, 0
    %p134 = por %p132, %p133
    %s136 = sadd.s32 %s135, 1
    %p139 = scmp.eq.s32.totalorder %s17, 1
    %p140 = scmp.ne.s32.totalorder %s135, %s137
    %p141 = scmp.eq.s32.totalorder %s17, 0
    %p142 = por %p140, %p141
    %p143 = scmp.ne.s32.totalorder %s135, %s137
    %p144 = scmp.eq.s32.totalorder %s22, 1
    %p145 = por %p143, %p144
    %p146 = scmp.ne.s32.totalorder %s137, %s138
    %p147 = scmp.eq.s32.totalorder %s22, 0
    %p148 = por %p146, %p147
    %p149 = scmp.ne.s32.totalorder %s137, %s138
    %p150 = scmp.eq.s32.totalorder %s23, 1
    %p151 = por %p149, %p150
    %p153 = scmp.ne.s32.totalorder %s138, %s152
    %p154 = scmp.eq.s32.totalorder %s23, 0
    %p155 = por %p153, %p154
    %s157 = sadd.s32 %s156, 1
    %p160 = scmp.eq.s32.totalorder %s17, 1
    %p161 = scmp.ne.s32.totalorder %s156, %s158
    %p162 = scmp.eq.s32.totalorder %s17, 0
    %p163 = por %p161, %p162
    %p164 = scmp.ne.s32.totalorder %s156, %s158
    %p165 = scmp.eq.s32.totalorder %s22, 1
    %p166 = por %p164, %p165
    %p167 = scmp.ne.s32.totalorder %s158, %s159
    %p168 = scmp.eq.s32.totalorder %s22, 0
    %p169 = por %p167, %p168
    %p170 = scmp.ne.s32.totalorder %s158, %s159
    %p171 = scmp.eq.s32.totalorder %s23, 1
    %p172 = por %p170, %p171
    %p174 = scmp.ne.s32.totalorder %s159, %s173
    %p175 = scmp.eq.s32.totalorder %s23, 0
    %p176 = por %p174, %p175
    %s178 = sadd.s32 %s177, 1
    %p181 = scmp.eq.s32.totalorder %s17, 1
    %p182 = scmp.ne.s32.totalorder %s177, %s179
    %p183 = scmp.eq.s32.totalorder %s17, 0
    %p184 = por %p182, %p183
    %p185 = scmp.ne.s32.totalorder %s177, %s179
    %p186 = scmp.eq.s32.totalorder %s22, 1
    %p187 = por %p185, %p186
    %p188 = scmp.ne.s32.totalorder %s179, %s180
    %p189 = scmp.eq.s32.totalorder %s22, 0
    %p190 = por %p188, %p189
    %p191 = scmp.ne.s32.totalorder %s179, %s180
    %p192 = scmp.eq.s32.totalorder %s23, 1
    %p193 = por %p191, %p192
    %p195 = scmp.ne.s32.totalorder %s180, %s194
    %p196 = scmp.eq.s32.totalorder %s23, 0
    %p197 = por %p195, %p196
    %s199 = sadd.s32 %s198, 1
    %p202 = scmp.eq.s32.totalorder %s17, 1
    %p203 = scmp.ne.s32.totalorder %s198, %s200
    %p204 = scmp.eq.s32.totalorder %s17, 0
    %p205 = por %p203, %p204
    %p206 = scmp.ne.s32.totalorder %s198, %s200
    %p207 = scmp.eq.s32.totalorder %s22, 1
    %p208 = por %p206, %p207
    %p209 = scmp.ne.s32.totalorder %s200, %s201
    %p210 = scmp.eq.s32.totalorder %s22, 0
    %p211 = por %p209, %p210
    %p212 = scmp.ne.s32.totalorder %s200, %s201
    %p213 = scmp.eq.s32.totalorder %s23, 1
    %p214 = por %p212, %p213
    %p216 = scmp.ne.s32.totalorder %s201, %s215
    %p217 = scmp.eq.s32.totalorder %s23, 0
    %p218 = por %p216, %p217
    %s219 = ssub.s32 %s17, %s24
    %p220 = scmp.eq.s32.totalorder %s219, 0
    %s222 = sadd.s32 %s221, 1
    %s223 = scalar_select %p220, %s221, %s222
    %p226 = pneg %p220
    %p227 = scmp.eq.s32.totalorder %s17, 1
    %p228 = por %p226, %p227
    %p229 = scmp.ne.s32.totalorder %s221, %s224
    %p230 = scmp.eq.s32.totalorder %s17, 0
    %p231 = por %p229, %p230
    %p232 = scmp.ne.s32.totalorder %s221, %s224
    %p233 = scmp.eq.s32.totalorder %s22, 1
    %p234 = por %p232, %p233
    %p235 = scmp.ne.s32.totalorder %s224, %s225
    %p236 = scmp.eq.s32.totalorder %s22, 0
    %p237 = por %p235, %p236
    %p238 = scmp.ne.s32.totalorder %s224, %s225
    %p239 = scmp.eq.s32.totalorder %s23, 1
    %p240 = por %p238, %p239
    %p242 = scmp.ne.s32.totalorder %s225, %s241
    %p243 = scmp.eq.s32.totalorder %s23, 0
    %p244 = por %p242, %p243
    %p245 = scmp.le.s32.totalorder 1, %s17
    %p246 = scmp.lt.s32.totalorder %s17, 3
    %p247 = pnand %p245, %p246
    %p248 = pneg %p247
    // Predicated region
    $region9: #{cnn_critic_forward.1} parent=5 // pred_check
      _
    $region10: #{cnn_critic_forward.1} parent=5 // pred_check_branch
      %250 = sbr.rel (%p247) target = $region12
    $region11: #{cnn_critic_forward.1} parent=5 // pred_region
      %s251 = ssub.s32 %s17, 1
      // Predicated region
      $region13: #{cnn_critic_forward.1} parent=11 // pred_check
        %p252 = pneg %p64
      $region14: #{cnn_critic_forward.1} parent=11 // pred_check_branch
        %254 = sbr.rel (%p252) target = $region16
      $region15: #{cnn_critic_forward.1} parent=11 // pred_region
        _
      $region16: #{cnn_critic_forward.1} parent=11 // pred_fallthru
        _
      // Predicated region
      $region17: #{cnn_critic_forward.1} parent=11 // pred_check
        %p255 = pneg %p85
      $region18: #{cnn_critic_forward.1} parent=11 // pred_check_branch
        %257 = sbr.rel (%p255) target = $region20
      $region19: #{cnn_critic_forward.1} parent=11 // pred_region
        _
      $region20: #{cnn_critic_forward.1} parent=11 // pred_fallthru
        _
      // Predicated region
      $region21: #{cnn_critic_forward.1} parent=11 // pred_check
        %p258 = pneg %p106
      $region22: #{cnn_critic_forward.1} parent=11 // pred_check_branch
        %260 = sbr.rel (%p258) target = $region24
      $region23: #{cnn_critic_forward.1} parent=11 // pred_region
        _
      $region24: #{cnn_critic_forward.1} parent=11 // pred_fallthru
        _
      // Predicated region
      $region25: #{cnn_critic_forward.1} parent=11 // pred_check
        %p261 = pneg %p127
      $region26: #{cnn_critic_forward.1} parent=11 // pred_check_branch
        %263 = sbr.rel (%p261) target = $region28
      $region27: #{cnn_critic_forward.1} parent=11 // pred_region
        _
      $region28: #{cnn_critic_forward.1} parent=11 // pred_fallthru
        _
      // Predicated region
      $region29: #{cnn_critic_forward.1} parent=11 // pred_check
        %p264 = pneg %p148
      $region30: #{cnn_critic_forward.1} parent=11 // pred_check_branch
        %266 = sbr.rel (%p264) target = $region32
      $region31: #{cnn_critic_forward.1} parent=11 // pred_region
        _
      $region32: #{cnn_critic_forward.1} parent=11 // pred_fallthru
        _
      // Predicated region
      $region33: #{cnn_critic_forward.1} parent=11 // pred_check
        %p267 = pneg %p169
      $region34: #{cnn_critic_forward.1} parent=11 // pred_check_branch
        %269 = sbr.rel (%p267) target = $region36
      $region35: #{cnn_critic_forward.1} parent=11 // pred_region
        _
      $region36: #{cnn_critic_forward.1} parent=11 // pred_fallthru
        _
      // Predicated region
      $region37: #{cnn_critic_forward.1} parent=11 // pred_check
        %p270 = pneg %p190
      $region38: #{cnn_critic_forward.1} parent=11 // pred_check_branch
        %272 = sbr.rel (%p270) target = $region40
      $region39: #{cnn_critic_forward.1} parent=11 // pred_region
        _
      $region40: #{cnn_critic_forward.1} parent=11 // pred_fallthru
        _
      // Predicated region
      $region41: #{cnn_critic_forward.1} parent=11 // pred_check
        %p273 = pneg %p211
      $region42: #{cnn_critic_forward.1} parent=11 // pred_check_branch
        %275 = sbr.rel (%p273) target = $region44
      $region43: #{cnn_critic_forward.1} parent=11 // pred_region
        _
      $region44: #{cnn_critic_forward.1} parent=11 // pred_fallthru
        _
    $region12: #{cnn_critic_forward.1} parent=5 // pred_fallthru
      _
    %p276 = scmp.lt.s32.totalorder %s17, 2
    // Predicated region
    $region45: #{cnn_critic_forward.1} parent=5 // pred_check
      %p277 = pneg %p276
    $region46: #{cnn_critic_forward.1} parent=5 // pred_check_branch
      %279 = sbr.rel (%p277) target = $region48
    $region47: #{cnn_critic_forward.1} parent=5 // pred_region
      // Predicated region
      $region49: #{cnn_critic_forward.1} parent=47 // pred_check
        %p280 = pneg %p37
      $region50: #{cnn_critic_forward.1} parent=47 // pred_check_branch
        %282 = sbr.rel (%p280) target = $region52
      $region51: #{cnn_critic_forward.1} parent=47 // pred_region
        %p283 = scmp.lt.s32.totalorder %s17, 1
        %s284 = scalar_select %p283, %s17, 1
        %s285 = smul.addr %s284, 7
        %s286 = smul.addr %s285, 8
        %s287 = scalar_lea.vmem %s0, %s286
      $region52: #{cnn_critic_forward.1} parent=47 // pred_fallthru
        _
    $region48: #{cnn_critic_forward.1} parent=5 // pred_fallthru
      _
    %p288 = scmp.le.s32.totalorder 1, %s17
    %p289 = scmp.lt.s32.totalorder %s17, 3
    %p290 = pnand %p288, %p289
    %p291 = pneg %p290
    // Predicated region
    $region53: #{cnn_critic_forward.1} parent=5 // pred_check
      _
    $region54: #{cnn_critic_forward.1} parent=5 // pred_check_branch
      %293 = sbr.rel (%p290) target = $region56
    $region55: #{cnn_critic_forward.1} parent=5 // pred_region
      %s294 = ssub.s32 %s17, 1
      %p295 = scmp.lt.s32.totalorder %s22, 1
      %s296 = scalar_select %p295, %s22, 1
      %s297 = smul.addr %s296, 7
      %s298 = smul.addr %s297, 8
      %s299 = scalar_lea.vmem %s0, %s298
      %p300 = pneg %p43
      %p301 = pneg %p40
      %p302 = pneg %p64
      %p303 = pneg %p61
      %p304 = pneg %p85
      %p305 = pneg %p82
      %p306 = pneg %p106
      %p307 = pneg %p103
      %p308 = pneg %p127
      %p309 = pneg %p124
      %p310 = pneg %p148
      %p311 = pneg %p145
      %p312 = pneg %p169
      %p313 = pneg %p166
      %p314 = pneg %p190
      %p315 = pneg %p187
      %p316 = pneg %p211
      %p317 = pneg %p208
      %p318 = pneg %p237
      %p319 = pneg %p234
      %p320 = scmp.lt.s32.totalorder %s22, 1
      %s321 = scalar_select %p320, %s22, 1
      %s322 = scalar_lea.vmem %s9, %s321
      %p323 = scmp.lt.s32.totalorder %s22, 1
      %s324 = scalar_select %p323, %s22, 1
      %s325 = smul.addr %s324, 7
      %s326 = smul.addr %s325, 8
      %s327 = scalar_lea.vmem %s0, %s326
      %p328 = scmp.lt.s32.totalorder %s22, 1
      %s329 = scalar_select %p328, %s22, 1
      %s330 = scalar_lea.vmem %s9, %s329
      %v331 = vld [vmem:[%s327] sm:$0xff]
      %v332 = vld [vmem:[%s327 + $0x8] sm:$0xff]
      %v333 = vld [vmem:[%s327 + $0x10] sm:$0xff]
      %v334 = vld [vmem:[%s327 + $0x18] sm:$0xff]
      %v335 = vld [vmem:[%s327 + $0x20] sm:$0xff]
      %v336 = vld [vmem:[%s327 + $0x28] sm:$0xff]
      %v337 = vld [vmem:[%s327 + $0x30] sm:$0x1]
      %v338 = vld [vmem:[%s1] sm:$0xff]
      %v339 = vld [vmem:[%s1 + $0x8] sm:$0xff]
      %v340 = vld [vmem:[%s1 + $0x10] sm:$0xff]
      %v341 = vld [vmem:[%s1 + $0x18] sm:$0xff]
      %v342 = vld [vmem:[%s1 + $0x20] sm:$0xff]
      %v343 = vld [vmem:[%s1 + $0x28] sm:$0xff]
      %v344 = vld [vmem:[%s1 + $0x30] sm:$0xff]
      %v345 = vld [vmem:[%s1 + $0x38] sm:$0xff]
      %v346 = vld [vmem:[%s2] sm:$0x1]
      %v348 = vlaneseq
      %v349 = vshrl.u32 %v348, 7
      %v350 = vsub.s32 0, %v349
      %v351 = vrot.slane %v346, %v350
      %vm353 = vcmask 523264
      %v355 = vsel %vm353, %v331, 0
      %v358 = vsel %vm353, %v332, 0
      %v361 = vsel %vm353, %v333, 0
      %v364 = vsel %vm353, %v334, 0
      %v367 = vsel %vm353, %v335, 0
      %v370 = vsel %vm353, %v336, 0
      %v373 = vsel %vm353, %v337, 0
      %375 = vmatprep.subr.mxu0 0.0
      %376 = vmatpush1.msra.mxu0 %v338
      %377 = vmatprep.subr.mxu0 0.0
      %378 = vmatpush1.msra.mxu0 %v339
      %379 = vmatprep.subr.mxu0 0.0
      %380 = vmatpush1.msra.mxu0 %v340
      %381 = vmatprep.subr.mxu0 0.0
      %382 = vmatpush1.msra.mxu0 %v341
      %383 = vmatprep.subr.mxu0 0.0
      %384 = vmatpush1.msra.mxu0 %v342
      %385 = vmatprep.subr.mxu0 0.0
      %386 = vmatpush1.msra.mxu0 %v343
      %387 = vmatprep.subr.mxu0 0.0
      %388 = vmatpush1.msra.mxu0 %v344
      %389 = vmatprep.subr.mxu0 0.0
      %390 = vmatpush1.msra.mxu0 %v345
      %391 = vmatprep.subr.mxu0 0.0
      %392 = vmatpush1.msra.mxu0 0.0
      %393 = vmatprep.subr.mxu0 0.0
      %394 = vmatpush1.msra.mxu0 0.0
      %395 = vmatprep.subr.mxu0 0.0
      %396 = vmatpush1.msra.mxu0 0.0
      %397 = vmatprep.subr.mxu0 0.0
      %398 = vmatpush1.msra.mxu0 0.0
      %399 = vmatprep.subr.mxu0 0.0
      %400 = vmatpush1.msra.mxu0 0.0
      %401 = vmatprep.subr.mxu0 0.0
      %402 = vmatpush1.msra.mxu0 0.0
      %403 = vmatprep.subr.mxu0 0.0
      %404 = vmatpush1.msra.mxu0 0.0
      %405 = vmatprep.subr.mxu0 0.0
      %406 = vmatpush1.msra.mxu0 0.0
      %407 = vmatprep.subr.mxu0 0.0
      %408 = vmatpush1.msra.mxu0 0.0
      %409 = vmatprep.subr.mxu0 0.0
      %410 = vmatpush1.msra.mxu0 0.0
      %411 = vmatprep.subr.mxu0 0.0
      %412 = vmatpush1.msra.mxu0 0.0
      %413 = vmatprep.subr.mxu0 0.0
      %414 = vmatpush1.msra.mxu0 0.0
      %415 = vmatprep.subr.mxu0 0.0
      %416 = vmatpush1.msra.mxu0 0.0
      %417 = vmatprep.subr.mxu0 0.0
      %418 = vmatpush1.msra.mxu0 0.0
      %419 = vmatprep.subr.mxu0 0.0
      %420 = vmatpush1.msra.mxu0 0.0
      %421 = vmatprep.subr.mxu0 0.0
      %422 = vmatpush1.msra.mxu0 0.0
      %423 = vmatprep.subr.mxu0 0.0
      %424 = vmatpush1.msra.mxu0 0.0
      %425 = vmatprep.subr.mxu0 0.0
      %426 = vmatpush1.msra.mxu0 0.0
      %427 = vmatprep.subr.mxu0 0.0
      %428 = vmatpush1.msra.mxu0 0.0
      %429 = vmatprep.subr.mxu0 0.0
      %430 = vmatpush1.msra.mxu0 0.0
      %431 = vmatprep.subr.mxu0 0.0
      %432 = vmatpush1.msra.mxu0 0.0
      %433 = vmatprep.subr.mxu0 0.0
      %434 = vmatpush1.msra.mxu0 0.0
      %435 = vmatprep.subr.mxu0 0.0
      %436 = vmatpush1.msra.mxu0 0.0
      %437 = vmatprep.subr.mxu0 0.0
      %438 = vmatpush1.msra.mxu0 0.0
      %439 = vmatprep.mubr.f32.mxu0 0.0
      %440 = vmatmul.mubr.f32.gmra.mrb[0].mxu0 %v355
      %v441 = vpop.f32.mrb[0].mxu0
      %v442 = vadd.f32 %v351, %v441
      %v443 = vpop.f32.mrb[0].mxu0
      %444 = vmatprep.mubr.f32.mxu0 0.0
      %445 = vmatmul.mubr.f32.gmra.mrb[0].mxu0 %v358
      %v446 = vpop.f32.mrb[0].mxu0
      %v447 = vadd.f32 %v351, %v446
      %v448 = vpop.f32.mrb[0].mxu0
      %449 = vmatprep.mubr.f32.mxu0 0.0
      %450 = vmatmul.mubr.f32.gmra.mrb[0].mxu0 %v361
      %v451 = vpop.f32.mrb[0].mxu0
      %v452 = vadd.f32 %v351, %v451
      %v453 = vpop.f32.mrb[0].mxu0
      %454 = vmatprep.mubr.f32.mxu0 0.0
      %455 = vmatmul.mubr.f32.gmra.mrb[0].mxu0 %v364
      %v456 = vpop.f32.mrb[0].mxu0
      %v457 = vadd.f32 %v351, %v456
      %v458 = vpop.f32.mrb[0].mxu0
      %459 = vmatprep.mubr.f32.mxu0 0.0
      %460 = vmatmul.mubr.f32.gmra.mrb[0].mxu0 %v367
      %v461 = vpop.f32.mrb[0].mxu0
      %v462 = vadd.f32 %v351, %v461
      %v463 = vpop.f32.mrb[0].mxu0
      %464 = vmatprep.mubr.f32.mxu0 0.0
      %465 = vmatmul.mubr.f32.gmra.mrb[0].mxu0 %v370
      %v466 = vpop.f32.mrb[0].mxu0
      %v467 = vadd.f32 %v351, %v466
      %v468 = vpop.f32.mrb[0].mxu0
      %469 = vmatprep.mubr.f32.mxu0 0.0
      %470 = vmatmul.mubr.f32.gmra.mrb[0].mxu0 %v373
      %v471 = vpop.f32.mrb[0].mxu0
      %v472 = vadd.f32 %v351, %v471
      %v473 = vpop.f32.mrb[0].mxu0
      %474 = vdwg.mxu0
      %vm475 = vcmp.gt.f32.partialorder %v442, 0.0
      %vm476 = vcmp.gt.f32.partialorder %v447, 0.0
      %vm477 = vcmp.gt.f32.partialorder %v452, 0.0
      %vm478 = vcmp.gt.f32.partialorder %v457, 0.0
      %vm479 = vcmp.gt.f32.partialorder %v462, 0.0
      %vm480 = vcmp.gt.f32.partialorder %v467, 0.0
      %vm481 = vcmp.gt.f32.partialorder %v472, 0.0
      %v482 = vmin.f32 %v442, 0.0
      %v483 = vmin.f32 %v447, 0.0
      %v484 = vmin.f32 %v452, 0.0
      %v485 = vmin.f32 %v457, 0.0
      %v486 = vmin.f32 %v462, 0.0
      %v487 = vmin.f32 %v467, 0.0
      %v488 = vmin.f32 %v472, 0.0
      %v489 = vmul.f32 %v482, 1.442695
      %v490 = vpow.pop %v489
      %v491 = vmul.f32 %v483, 1.442695
      %v492 = vpow.pop %v491
      %v493 = vmul.f32 %v484, 1.442695
      %v494 = vpow.pop %v493
      %v495 = vmul.f32 %v485, 1.442695
      %v496 = vpow.pop %v495
      %v497 = vmul.f32 %v486, 1.442695
      %v498 = vpow.pop %v497
      %v499 = vmul.f32 %v487, 1.442695
      %v500 = vpow.pop %v499
      %v501 = vmul.f32 %v488, 1.442695
      %v502 = vpow.pop %v501
      %v503 = vsub.f32 %v490, 1.0
      %v504 = vsub.f32 %v492, 1.0
      %v505 = vsub.f32 %v494, 1.0
      %v506 = vsub.f32 %v496, 1.0
      %v507 = vsub.f32 %v498, 1.0
      %v508 = vsub.f32 %v500, 1.0
      %v509 = vsub.f32 %v502, 1.0
      %v510 = vsel %vm475, %v442, %v503
      %v511 = vsel %vm476, %v447, %v504
      %v512 = vsel %vm477, %v452, %v505
      %v513 = vsel %vm478, %v457, %v506
      %v514 = vsel %vm479, %v462, %v507
      %v515 = vsel %vm480, %v467, %v508
      %v516 = vsel %vm481, %v472, %v509
      %vm517 = vcmask 64512
      %518 = vst.msk [vmem:[#allocation2] sm:$0xff] %vm517, 0.0
      %519 = vst.msk [vmem:[#allocation2 + $0x8] sm:$0xff] %vm517, 0.0
      %520 = vst.msk [vmem:[#allocation2 + $0x10] sm:$0xff] %vm517, 0.0
      %521 = vst.msk [vmem:[#allocation2 + $0x18] sm:$0xff] %vm517, 0.0
      %522 = vst.msk [vmem:[#allocation2 + $0x20] sm:$0xff] %vm517, 0.0
      %523 = vst.msk [vmem:[#allocation2 + $0x28] sm:$0xff] %vm517, 0.0
      %524 = vst.msk [vmem:[#allocation2 + $0x30] sm:$0xff] %vm517, 0.0
      %525 = vst.msk [vmem:[#allocation2 + $0x38] sm:$0xff] %vm517, 0.0
      %526 = vst.msk [vmem:[#allocation2 + $0x40] sm:$0xff] %vm517, 0.0
      %527 = vst.msk [vmem:[#allocation2] sm:$0xff] %vm517, %v510
      %528 = vst.msk [vmem:[#allocation2 + $0x8] sm:$0xff] %vm517, %v511
      %529 = vst.msk [vmem:[#allocation2 + $0x10] sm:$0xff] %vm517, %v512
      %530 = vst.msk [vmem:[#allocation2 + $0x18] sm:$0xff] %vm517, %v513
      %531 = vst.msk [vmem:[#allocation2 + $0x20] sm:$0xff] %vm517, %v514
      %532 = vst.msk [vmem:[#allocation2 + $0x28] sm:$0xff] %vm517, %v515
      %vm533 = vcmask 57344
      %534 = vst.msk [vmem:[#allocation2 + $0x30] sm:$0x1] %vm533, %v516
      %v535 = vld [vmem:[#allocation2] sm:$0xff]
      %v536 = vld [vmem:[#allocation2 + $0x8] sm:$0xff]
      %v537 = vld [vmem:[#allocation2 + $0x10] sm:$0xff]
      %v538 = vld [vmem:[#allocation2 + $0x18] sm:$0xff]
      %v539 = vld [vmem:[#allocation2 + $0x20] sm:$0xff]
      %v540 = vld [vmem:[#allocation2 + $0x28] sm:$0xff]
      %v541 = vld [vmem:[#allocation2 + $0x30] sm:$0x1]
      %v542 = vld [vmem:[%s3] sm:$0xff]
      %v543 = vld [vmem:[#allocation2 + $0x1] sm:$0xff]
      %v544 = vld [vmem:[#allocation2 + $0x9] sm:$0xff]
      %v545 = vld [vmem:[#allocation2 + $0x11] sm:$0xff]
      %v546 = vld [vmem:[#allocation2 + $0x19] sm:$0xff]
      %v547 = vld [vmem:[#allocation2 + $0x21] sm:$0xff]
      %v548 = vld [vmem:[#allocation2 + $0x29] sm:$0xff]
      %v549 = vld [vmem:[#allocation2 + $0x31] sm:$0x1]
      %v550 = vld [vmem:[%s3 + $0x8] sm:$0xff]
      %v552 = vsel %vm517, %v543, 0
      %v555 = vsel %vm517, %v544, 0
      %v558 = vsel %vm517, %v545, 0
      %v561 = vsel %vm517, %v546, 0
      %v564 = vsel %vm517, %v547, 0
      %v567 = vsel %vm517, %v548, 0
      %v570 = vsel %vm517, %v549, 0
      %572 = vmatprep.subr.mxu0 0.0
      %573 = vmatpush1.msra.mxu0 %v550
      %574 = vmatprep.subr.mxu0 0.0
      %575 = vmatpush1.msra.mxu0 0.0
      %576 = vmatprep.subr.mxu0 0.0
      %577 = vmatpush1.msra.mxu0 0.0
      %578 = vmatprep.subr.mxu0 0.0
      %579 = vmatpush1.msra.mxu0 0.0
      %580 = vmatprep.subr.mxu0 0.0
      %581 = vmatpush1.msra.mxu0 0.0
      %582 = vmatprep.subr.mxu0 0.0
      %583 = vmatpush1.msra.mxu0 0.0
      %584 = vmatprep.subr.mxu0 0.0
      %585 = vmatpush1.msra.mxu0 0.0
      %586 = vmatprep.subr.mxu0 0.0
      %587 = vmatpush1.msra.mxu0 0.0
      %588 = vmatprep.subr.mxu0 0.0
      %589 = vmatpush1.msra.mxu0 0.0
      %590 = vmatprep.subr.mxu0 0.0
      %591 = vmatpush1.msra.mxu0 0.0
      %592 = vmatprep.subr.mxu0 0.0
      %593 = vmatpush1.msra.mxu0 0.0
      %594 = vmatprep.subr.mxu0 0.0
      %595 = vmatpush1.msra.mxu0 0.0
      %596 = vmatprep.subr.mxu0 0.0
      %597 = vmatpush1.msra.mxu0 0.0
      %598 = vmatprep.subr.mxu0 0.0
      %599 = vmatpush1.msra.mxu0 0.0
      %600 = vmatprep.subr.mxu0 0.0
      %601 = vmatpush1.msra.mxu0 0.0
      %602 = vmatprep.subr.mxu0 0.0
      %603 = vmatpush1.msra.mxu0 0.0
      %604 = vmatprep.subr.mxu0 0.0
      %605 = vmatpush1.msra.mxu0 0.0
      %606 = vmatprep.subr.mxu0 0.0
      %607 = vmatpush1.msra.mxu0 0.0
      %608 = vmatprep.subr.mxu0 0.0
      %609 = vmatpush1.msra.mxu0 0.0
      %610 = vmatprep.subr.mxu0 0.0
      %611 = vmatpush1.msra.mxu0 0.0
      %612 = vmatprep.subr.mxu0 0.0
      %613 = vmatpush1.msra.mxu0 0.0
      %614 = vmatprep.subr.mxu0 0.0
      %615 = vmatpush1.msra.mxu0 0.0
      %616 = vmatprep.subr.mxu0 0.0
      %617 = vmatpush1.msra.mxu0 0.0
      %618 = vmatprep.subr.mxu0 0.0
      %619 = vmatpush1.msra.mxu0 0.0
      %620 = vmatprep.subr.mxu0 0.0
      %621 = vmatpush1.msra.mxu0 0.0
      %622 = vmatprep.subr.mxu0 0.0
      %623 = vmatpush1.msra.mxu0 0.0
      %624 = vmatprep.subr.mxu0 0.0
      %625 = vmatpush1.msra.mxu0 0.0
      %626 = vmatprep.subr.mxu0 0.0
      %627 = vmatpush1.msra.mxu0 0.0
      %628 = vmatprep.subr.mxu0 0.0
      %629 = vmatpush1.msra.mxu0 0.0
      %630 = vmatprep.subr.mxu0 0.0
      %631 = vmatpush1.msra.mxu0 0.0
      %632 = vmatprep.subr.mxu0 0.0
      %633 = vmatpush1.msra.mxu0 0.0
      %634 = vmatprep.subr.mxu0 0.0
      %635 = vmatpush1.msra.mxu0 0.0
      %636 = vmatprep.mubr.f32.mxu0 0.0
      %637 = vmatmul.mubr.f32.gmra.mrb[0].mxu0 %v552
      %v638 = vpop.f32.mrb[0].mxu0
      %v639 = vadd.f32 0.0, %v638
      %v640 = vpop.f32.mrb[0].mxu0
      %641 = vmatprep.mubr.f32.mxu0 0.0
      %642 = vmatmul.mubr.f32.gmra.mrb[0].mxu0 %v555
      %v643 = vpop.f32.mrb[0].mxu0
      %v644 = vadd.f32 0.0, %v643
      %v645 = vpop.f32.mrb[0].mxu0
      %646 = vmatprep.mubr.f32.mxu0 0.0
      %647 = vmatmul.mubr.f32.gmra.mrb[0].mxu0 %v558
      %v648 = vpop.f32.mrb[0].mxu0
      %v649 = vadd.f32 0.0, %v648
      %v650 = vpop.f32.mrb[0].mxu0
      %651 = vmatprep.mubr.f32.mxu0 0.0
      %652 = vmatmul.mubr.f32.gmra.mrb[0].mxu0 %v561
      %v653 = vpop.f32.mrb[0].mxu0
      %v654 = vadd.f32 0.0, %v653
      %v655 = vpop.f32.mrb[0].mxu0
      %656 = vmatprep.mubr.f32.mxu0 0.0
      %657 = vmatmul.mubr.f32.gmra.mrb[0].mxu0 %v564
      %v658 = vpop.f32.mrb[0].mxu0
      %v659 = vadd.f32 0.0, %v658
      %v660 = vpop.f32.mrb[0].mxu0
      %661 = vmatprep.mubr.f32.mxu0 0.0
      %662 = vmatmul.mubr.f32.gmra.mrb[0].mxu0 %v567
      %v663 = vpop.f32.mrb[0].mxu0
      %v664 = vadd.f32 0.0, %v663
      %v665 = vpop.f32.mrb[0].mxu0
      %666 = vmatprep.mubr.f32.mxu0 0.0
      %667 = vmatmul.mubr.f32.gmra.mrb[0].mxu0 %v570
      %v668 = vpop.f32.mrb[0].mxu0
      %v669 = vadd.f32 0.0, %v668
      %v670 = vpop.f32.mrb[0].mxu0
      %671 = vdwg.mxu0
      %v673 = vsel %vm517, %v535, 0
      %v676 = vsel %vm517, %v536, 0
      %v679 = vsel %vm517, %v537, 0
      %v682 = vsel %vm517, %v538, 0
      %v685 = vsel %vm517, %v539, 0
      %v688 = vsel %vm517, %v540, 0
      %v691 = vsel %vm517, %v541, 0
      %693 = vmatprep.subr.mxu0 0.0
      %694 = vmatpush1.msra.mxu0 %v542
      %695 = vmatprep.subr.mxu0 0.0
      %696 = vmatpush1.msra.mxu0 0.0
      %697 = vmatprep.subr.mxu0 0.0
      %698 = vmatpush1.msra.mxu0 0.0
      %699 = vmatprep.subr.mxu0 0.0
      %700 = vmatpush1.msra.mxu0 0.0
      %701 = vmatprep.subr.mxu0 0.0
      %702 = vmatpush1.msra.mxu0 0.0
      %703 = vmatprep.subr.mxu0 0.0
      %704 = vmatpush1.msra.mxu0 0.0
      %705 = vmatprep.subr.mxu0 0.0
      %706 = vmatpush1.msra.mxu0 0.0
      %707 = vmatprep.subr.mxu0 0.0
      %708 = vmatpush1.msra.mxu0 0.0
      %709 = vmatprep.subr.mxu0 0.0
      %710 = vmatpush1.msra.mxu0 0.0
      %711 = vmatprep.subr.mxu0 0.0
      %712 = vmatpush1.msra.mxu0 0.0
      %713 = vmatprep.subr.mxu0 0.0
      %714 = vmatpush1.msra.mxu0 0.0
      %715 = vmatprep.subr.mxu0 0.0
      %716 = vmatpush1.msra.mxu0 0.0
      %717 = vmatprep.subr.mxu0 0.0
      %718 = vmatpush1.msra.mxu0 0.0
      %719 = vmatprep.subr.mxu0 0.0
      %720 = vmatpush1.msra.mxu0 0.0
      %721 = vmatprep.subr.mxu0 0.0
      %722 = vmatpush1.msra.mxu0 0.0
      %723 = vmatprep.subr.mxu0 0.0
      %724 = vmatpush1.msra.mxu0 0.0
      %725 = vmatprep.subr.mxu0 0.0
      %726 = vmatpush1.msra.mxu0 0.0
      %727 = vmatprep.subr.mxu0 0.0
      %728 = vmatpush1.msra.mxu0 0.0
      %729 = vmatprep.subr.mxu0 0.0
      %730 = vmatpush1.msra.mxu0 0.0
      %731 = vmatprep.subr.mxu0 0.0
      %732 = vmatpush1.msra.mxu0 0.0
      %733 = vmatprep.subr.mxu0 0.0
      %734 = vmatpush1.msra.mxu0 0.0
      %735 = vmatprep.subr.mxu0 0.0
      %736 = vmatpush1.msra.mxu0 0.0
      %737 = vmatprep.subr.mxu0 0.0
      %738 = vmatpush1.msra.mxu0 0.0
      %739 = vmatprep.subr.mxu0 0.0
      %740 = vmatpush1.msra.mxu0 0.0
      %741 = vmatprep.subr.mxu0 0.0
      %742 = vmatpush1.msra.mxu0 0.0
      %743 = vmatprep.subr.mxu0 0.0
      %744 = vmatpush1.msra.mxu0 0.0
      %745 = vmatprep.subr.mxu0 0.0
      %746 = vmatpush1.msra.mxu0 0.0
      %747 = vmatprep.subr.mxu0 0.0
      %748 = vmatpush1.msra.mxu0 0.0
      %749 = vmatprep.subr.mxu0 0.0
      %750 = vmatpush1.msra.mxu0 0.0
      %751 = vmatprep.subr.mxu0 0.0
      %752 = vmatpush1.msra.mxu0 0.0
      %753 = vmatprep.subr.mxu0 0.0
      %754 = vmatpush1.msra.mxu0 0.0
      %755 = vmatprep.subr.mxu0 0.0
      %756 = vmatpush1.msra.mxu0 0.0
      %757 = vmatprep.mubr.f32.mxu0 0.0
      %758 = vmatmul.mubr.f32.gmra.mrb[0].mxu0 %v673
      %v759 = vpop.f32.mrb[0].mxu0
      %v760 = vadd.f32 %v639, %v759
      %v761 = vpop.f32.mrb[0].mxu0
      %762 = vmatprep.mubr.f32.mxu0 0.0
      %763 = vmatmul.mubr.f32.gmra.mrb[0].mxu0 %v676
      %v764 = vpop.f32.mrb[0].mxu0
      %v765 = vadd.f32 %v644, %v764
      %v766 = vpop.f32.mrb[0].mxu0
      %767 = vmatprep.mubr.f32.mxu0 0.0
      %768 = vmatmul.mubr.f32.gmra.mrb[0].mxu0 %v679
      %v769 = vpop.f32.mrb[0].mxu0
      %v770 = vadd.f32 %v649, %v769
      %v771 = vpop.f32.mrb[0].mxu0
      %772 = vmatprep.mubr.f32.mxu0 0.0
      %773 = vmatmul.mubr.f32.gmra.mrb[0].mxu0 %v682
      %v774 = vpop.f32.mrb[0].mxu0
      %v775 = vadd.f32 %v654, %v774
      %v776 = vpop.f32.mrb[0].mxu0
      %777 = vmatprep.mubr.f32.mxu0 0.0
      %778 = vmatmul.mubr.f32.gmra.mrb[0].mxu0 %v685
      %v779 = vpop.f32.mrb[0].mxu0
      %v780 = vadd.f32 %v659, %v779
      %v781 = vpop.f32.mrb[0].mxu0
      %782 = vmatprep.mubr.f32.mxu0 0.0
      %783 = vmatmul.mubr.f32.gmra.mrb[0].mxu0 %v688
      %v784 = vpop.f32.mrb[0].mxu0
      %v785 = vadd.f32 %v664, %v784
      %v786 = vpop.f32.mrb[0].mxu0
      %787 = vmatprep.mubr.f32.mxu0 0.0
      %788 = vmatmul.mubr.f32.gmra.mrb[0].mxu0 %v691
      %v789 = vpop.f32.mrb[0].mxu0
      %v790 = vadd.f32 %v669, %v789
      %v791 = vpop.f32.mrb[0].mxu0
      %792 = vdwg.mxu0
      %v793 = vld [vmem:[#allocation2 + $0x2] sm:$0xff]
      %v794 = vld [vmem:[#allocation2 + $0xa] sm:$0xff]
      %v795 = vld [vmem:[#allocation2 + $0x12] sm:$0xff]
      %v796 = vld [vmem:[#allocation2 + $0x1a] sm:$0xff]
      %v797 = vld [vmem:[#allocation2 + $0x22] sm:$0xff]
      %v798 = vld [vmem:[#allocation2 + $0x2a] sm:$0xff]
      %v799 = vld [vmem:[#allocation2 + $0x32] sm:$0x1]
      %v800 = vld [vmem:[%s3 + $0x10] sm:$0xff]
      %v802 = vsel %vm517, %v793, 0
      %v805 = vsel %vm517, %v794, 0
      %v808 = vsel %vm517, %v795, 0
      %v811 = vsel %vm517, %v796, 0
      %v814 = vsel %vm517, %v797, 0
      %v817 = vsel %vm517, %v798, 0
      %v820 = vsel %vm517, %v799, 0
      %822 = vmatprep.subr.mxu0 0.0
      %823 = vmatpush1.msra.mxu0 %v800
      %824 = vmatprep.subr.mxu0 0.0
      %825 = vmatpush1.msra.mxu0 0.0
      %826 = vmatprep.subr.mxu0 0.0
      %827 = vmatpush1.msra.mxu0 0.0
      %828 = vmatprep.subr.mxu0 0.0
      %829 = vmatpush1.msra.mxu0 0.0
      %830 = vmatprep.subr.mxu0 0.0
      %831 = vmatpush1.msra.mxu0 0.0
      %832 = vmatprep.subr.mxu0 0.0
      %833 = vmatpush1.msra.mxu0 0.0
      %834 = vmatprep.subr.mxu0 0.0
      %835 = vmatpush1.msra.mxu0 0.0
      %836 = vmatprep.subr.mxu0 0.0
      %837 = vmatpush1.msra.mxu0 0.0
      %838 = vmatprep.subr.mxu0 0.0
      %839 = vmatpush1.msra.mxu0 0.0
      %840 = vmatprep.subr.mxu0 0.0
      %841 = vmatpush1.msra.mxu0 0.0
      %842 = vmatprep.subr.mxu0 0.0
      %843 = vmatpush1.msra.mxu0 0.0
      %844 = vmatprep.subr.mxu0 0.0
      %845 = vmatpush1.msra.mxu0 0.0
      %846 = vmatprep.subr.mxu0 0.0
      %847 = vmatpush1.msra.mxu0 0.0
      %848 = vmatprep.subr.mxu0 0.0
      %849 = vmatpush1.msra.mxu0 0.0
      %850 = vmatprep.subr.mxu0 0.0
      %851 = vmatpush1.msra.mxu0 0.0
      %852 = vmatprep.subr.mxu0 0.0
      %853 = vmatpush1.msra.mxu0 0.0
      %854 = vmatprep.subr.mxu0 0.0
      %855 = vmatpush1.msra.mxu0 0.0
      %856 = vmatprep.subr.mxu0 0.0
      %857 = vmatpush1.msra.mxu0 0.0
      %858 = vmatprep.subr.mxu0 0.0
      %859 = vmatpush1.msra.mxu0 0.0
      %860 = vmatprep.subr.mxu0 0.0
      %861 = vmatpush1.msra.mxu0 0.0
      %862 = vmatprep.subr.mxu0 0.0
      %863 = vmatpush1.msra.mxu0 0.0
      %864 = vmatprep.subr.mxu0 0.0
      %865 = vmatpush1.msra.mxu0 0.0
      %866 = vmatprep.subr.mxu0 0.0
      %867 = vmatpush1.msra.mxu0 0.0
      %868 = vmatprep.subr.mxu0 0.0
      %869 = vmatpush1.msra.mxu0 0.0
      %870 = vmatprep.subr.mxu0 0.0
      %871 = vmatpush1.msra.mxu0 0.0
      %872 = vmatprep.subr.mxu0 0.0
      %873 = vmatpush1.msra.mxu0 0.0
      %874 = vmatprep.subr.mxu0 0.0
      %875 = vmatpush1.msra.mxu0 0.0
      %876 = vmatprep.subr.mxu0 0.0
      %877 = vmatpush1.msra.mxu0 0.0
      %878 = vmatprep.subr.mxu0 0.0
      %879 = vmatpush1.msra.mxu0 0.0
      %880 = vmatprep.subr.mxu0 0.0
      %881 = vmatpush1.msra.mxu0 0.0
      %882 = vmatprep.subr.mxu0 0.0
      %883 = vmatpush1.msra.mxu0 0.0
      %884 = vmatprep.subr.mxu0 0.0
      %885 = vmatpush1.msra.mxu0 0.0
      %886 = vmatprep.mubr.f32.mxu0 0.0
      %887 = vmatmul.mubr.f32.gmra.mrb[0].mxu0 %v802
      %v888 = vpop.f32.mrb[0].mxu0
      %v889 = vadd.f32 0.0, %v888
      %v890 = vpop.f32.mrb[0].mxu0
      %891 = vmatprep.mubr.f32.mxu0 0.0
      %892 = vmatmul.mubr.f32.gmra.mrb[0].mxu0 %v805
      %v893 = vpop.f32.mrb[0].mxu0
      %v894 = vadd.f32 0.0, %v893
      %v895 = vpop.f32.mrb[0].mxu0
      %896 = vmatprep.mubr.f32.mxu0 0.0
      %897 = vmatmul.mubr.f32.gmra.mrb[0].mxu0 %v808
      %v898 = vpop.f32.mrb[0].mxu0
      %v899 = vadd.f32 0.0, %v898
      %v900 = vpop.f32.mrb[0].mxu0
      %901 = vmatprep.mubr.f32.mxu0 0.0
      %902 = vmatmul.mubr.f32.gmra.mrb[0].mxu0 %v811
      %v903 = vpop.f32.mrb[0].mxu0
      %v904 = vadd.f32 0.0, %v903
      %v905 = vpop.f32.mrb[0].mxu0
      %906 = vmatprep.mubr.f32.mxu0 0.0
      %907 = vmatmul.mubr.f32.gmra.mrb[0].mxu0 %v814
      %v908 = vpop.f32.mrb[0].mxu0
      %v909 = vadd.f32 0.0, %v908
      %v910 = vpop.f32.mrb[0].mxu0
      %911 = vmatprep.mubr.f32.mxu0 0.0
      %912 = vmatmul.mubr.f32.gmra.mrb[0].mxu0 %v817
      %v913 = vpop.f32.mrb[0].mxu0
      %v914 = vadd.f32 0.0, %v913
      %v915 = vpop.f32.mrb[0].mxu0
      %916 = vmatprep.mubr.f32.mxu0 0.0
      %917 = vmatmul.mubr.f32.gmra.mrb[0].mxu0 %v820
      %v918 = vpop.f32.mrb[0].mxu0
      %v919 = vadd.f32 0.0, %v918
      %v920 = vpop.f32.mrb[0].mxu0
      %921 = vdwg.mxu0
      %v922 = vadd.f32 %v760, %v889
      %v923 = vadd.f32 %v765, %v894
      %v924 = vadd.f32 %v770, %v899
      %v925 = vadd.f32 %v775, %v904
      %v926 = vadd.f32 %v780, %v909
      %v927 = vadd.f32 %v785, %v914
      %v928 = vadd.f32 %v790, %v919
      %v929 = vld [vmem:[#allocation2 + $0x7] sm:$0xff]
      %v930 = vld [vmem:[#allocation2 + $0xf] sm:$0xff]
      %v931 = vld [vmem:[#allocation2 + $0x17] sm:$0xff]
      %v932 = vld [vmem:[#allocation2 + $0x1f] sm:$0xff]
      %v933 = vld [vmem:[#allocation2 + $0x27] sm:$0xff]
      %v934 = vld [vmem:[#allocation2 + $0x2f] sm:$0xff]
      %v935 = vld [vmem:[#allocation2 + $0x37] sm:$0x1]
      %v936 = vld [vmem:[%s3 + $0x18] sm:$0xff]
      %v938 = vsel %vm517, %v929, 0
      %v941 = vsel %vm517, %v930, 0
      %v944 = vsel %vm517, %v931, 0
      %v947 = vsel %vm517, %v932, 0
      %v950 = vsel %vm517, %v933, 0
      %v953 = vsel %vm517, %v934, 0
      %v956 = vsel %vm517, %v935, 0
      %958 = vmatprep.subr.mxu0 0.0
      %959 = vmatpush1.msra.mxu0 %v936
      %960 = vmatprep.subr.mxu0 0.0
      %961 = vmatpush1.msra.mxu0 0.0
      %962 = vmatprep.subr.mxu0 0.0
      %963 = vmatpush1.msra.mxu0 0.0
      %964 = vmatprep.subr.mxu0 0.0
      %965 = vmatpush1.msra.mxu0 0.0
      %966 = vmatprep.subr.mxu0 0.0
      %967 = vmatpush1.msra.mxu0 0.0
      %968 = vmatprep.subr.mxu0 0.0
      %969 = vmatpush1.msra.mxu0 0.0
      %970 = vmatprep.subr.mxu0 0.0
      %971 = vmatpush1.msra.mxu0 0.0
      %972 = vmatprep.subr.mxu0 0.0
      %973 = vmatpush1.msra.mxu0 0.0
      %974 = vmatprep.subr.mxu0 0.0
      %975 = vmatpush1.msra.mxu0 0.0
      %976 = vmatprep.subr.mxu0 0.0
      %977 = vmatpush1.msra.mxu0 0.0
      %978 = vmatprep.subr.mxu0 0.0
      %979 = vmatpush1.msra.mxu0 0.0
      %980 = vmatprep.subr.mxu0 0.0
      %981 = vmatpush1.msra.mxu0 0.0
      %982 = vmatprep.subr.mxu0 0.0
      %983 = vmatpush1.msra.mxu0 0.0
      %984 = vmatprep.subr.mxu0 0.0
      %985 = vmatpush1.msra.mxu0 0.0
      %986 = vmatprep.subr.mxu0 0.0
      %987 = vmatpush1.msra.mxu0 0.0
      %988 = vmatprep.subr.mxu0 0.0
      %989 = vmatpush1.msra.mxu0 0.0
      %990 = vmatprep.subr.mxu0 0.0
      %991 = vmatpush1.msra.mxu0 0.0
      %992 = vmatprep.subr.mxu0 0.0
      %993 = vmatpush1.msra.mxu0 0.0
      %994 = vmatprep.subr.mxu0 0.0
      %995 = vmatpush1.msra.mxu0 0.0
      %996 = vmatprep.subr.mxu0 0.0
      %997 = vmatpush1.msra.mxu0 0.0
      %998 = vmatprep.subr.mxu0 0.0
      %999 = vmatpush1.msra.mxu0 0.0
      %1000 = vmatprep.subr.mxu0 0.0
      %1001 = vmatpush1.msra.mxu0 0.0
      %1002 = vmatprep.subr.mxu0 0.0
      %1003 = vmatpush1.msra.mxu0 0.0
      %1004 = vmatprep.subr.mxu0 0.0
      %1005 = vmatpush1.msra.mxu0 0.0
      %1006 = vmatprep.subr.mxu0 0.0
      %1007 = vmatpush1.msra.mxu0 0.0
      %1008 = vmatprep.subr.mxu0 0.0
      %1009 = vmatpush1.msra.mxu0 0.0
      %1010 = vmatprep.subr.mxu0 0.0
      %1011 = vmatpush1.msra.mxu0 0.0
      %1012 = vmatprep.subr.mxu0 0.0
      %1013 = vmatpush1.msra.mxu0 0.0
      %1014 = vmatprep.subr.mxu0 0.0
      %1015 = vmatpush1.msra.mxu0 0.0
      %1016 = vmatprep.subr.mxu0 0.0
      %1017 = vmatpush1.msra.mxu0 0.0
      %1018 = vmatprep.subr.mxu0 0.0
      %1019 = vmatpush1.msra.mxu0 0.0
      %1020 = vmatprep.subr.mxu0 0.0
      %1021 = vmatpush1.msra.mxu0 0.0
      %1022 = vmatprep.mubr.f32.mxu0 0.0
      %1023 = vmatmul.mubr.f32.gmra.mrb[0].mxu0 %v938
      %v1024 = vpop.f32.mrb[0].mxu0
      %v1025 = vadd.f32 0.0, %v1024
      %v1026 = vpop.f32.mrb[0].mxu0
      %1027 = vmatprep.mubr.f32.mxu0 0.0
      %1028 = vmatmul.mubr.f32.gmra.mrb[0].mxu0 %v941
      %v1029 = vpop.f32.mrb[0].mxu0
      %v1030 = vadd.f32 0.0, %v1029
      %v1031 = vpop.f32.mrb[0].mxu0
      %1032 = vmatprep.mubr.f32.mxu0 0.0
      %1033 = vmatmul.mubr.f32.gmra.mrb[0].mxu0 %v944
      %v1034 = vpop.f32.mrb[0].mxu0
      %v1035 = vadd.f32 0.0, %v1034
      %v1036 = vpop.f32.mrb[0].mxu0
      %1037 = vmatprep.mubr.f32.mxu0 0.0
      %1038 = vmatmul.mubr.f32.gmra.mrb[0].mxu0 %v947
      %v1039 = vpop.f32.mrb[0].mxu0
      %v1040 = vadd.f32 0.0, %v1039
      %v1041 = vpop.f32.mrb[0].mxu0
      %1042 = vmatprep.mubr.f32.mxu0 0.0
      %1043 = vmatmul.mubr.f32.gmra.mrb[0].mxu0 %v950
      %v1044 = vpop.f32.mrb[0].mxu0
      %v1045 = vadd.f32 0.0, %v1044
      %v1046 = vpop.f32.mrb[0].mxu0
      %1047 = vmatprep.mubr.f32.mxu0 0.0
      %1048 = vmatmul.mubr.f32.gmra.mrb[0].mxu0 %v953
      %v1049 = vpop.f32.mrb[0].mxu0
      %v1050 = vadd.f32 0.0, %v1049
      %v1051 = vpop.f32.mrb[0].mxu0
      %1052 = vmatprep.mubr.f32.mxu0 0.0
      %1053 = vmatmul.mubr.f32.gmra.mrb[0].mxu0 %v956
      %v1054 = vpop.f32.mrb[0].mxu0
      %v1055 = vadd.f32 0.0, %v1054
      %v1056 = vpop.f32.mrb[0].mxu0
      %1057 = vdwg.mxu0
      %v1058 = vadd.f32 %v922, %v1025
      %v1059 = vadd.f32 %v923, %v1030
      %v1060 = vadd.f32 %v924, %v1035
      %v1061 = vadd.f32 %v925, %v1040
      %v1062 = vadd.f32 %v926, %v1045
      %v1063 = vadd.f32 %v927, %v1050
      %v1064 = vadd.f32 %v928, %v1055
      %v1065 = vld [vmem:[#allocation2 + $0x8] sm:$0xff]
      %v1066 = vld [vmem:[#allocation2 + $0x10] sm:$0xff]
      %v1067 = vld [vmem:[#allocation2 + $0x18] sm:$0xff]
      %v1068 = vld [vmem:[#allocation2 + $0x20] sm:$0xff]
      %v1069 = vld [vmem:[#allocation2 + $0x28] sm:$0xff]
      %v1070 = vld [vmem:[#allocation2 + $0x30] sm:$0xff]
      %v1071 = vld [vmem:[#allocation2 + $0x38] sm:$0x1]
      %v1072 = vld [vmem:[%s3 + $0x20] sm:$0xff]
      %v1074 = vsel %vm517, %v1065, 0
      %v1077 = vsel %vm517, %v1066, 0
      %v1080 = vsel %vm517, %v1067, 0
      %v1083 = vsel %vm517, %v1068, 0
      %v1086 = vsel %vm517, %v1069, 0
      %v1089 = vsel %vm517, %v1070, 0
      %v1092 = vsel %vm517, %v1071, 0
      %1094 = vmatprep.subr.mxu0 0.0
      %1095 = vmatpush1.msra.mxu0 %v1072
      %1096 = vmatprep.subr.mxu0 0.0
      %1097 = vmatpush1.msra.mxu0 0.0
      %1098 = vmatprep.subr.mxu0 0.0
      %1099 = vmatpush1.msra.mxu0 0.0
      %1100 = vmatprep.subr.mxu0 0.0
      %1101 = vmatpush1.msra.mxu0 0.0
      %1102 = vmatprep.subr.mxu0 0.0
      %1103 = vmatpush1.msra.mxu0 0.0
      %1104 = vmatprep.subr.mxu0 0.0
      %1105 = vmatpush1.msra.mxu0 0.0
      %1106 = vmatprep.subr.mxu0 0.0
      %1107 = vmatpush1.msra.mxu0 0.0
      %1108 = vmatprep.subr.mxu0 0.0
      %1109 = vmatpush1.msra.mxu0 0.0
      %1110 = vmatprep.subr.mxu0 0.0
      %1111 = vmatpush1.msra.mxu0 0.0
      %1112 = vmatprep.subr.mxu0 0.0
      %1113 = vmatpush1.msra.mxu0 0.0
      %1114 = vmatprep.subr.mxu0 0.0
      %1115 = vmatpush1.msra.mxu0 0.0
      %1116 = vmatprep.subr.mxu0 0.0
      %1117 = vmatpush1.msra.mxu0 0.0
      %1118 = vmatprep.subr.mxu0 0.0
      %1119 = vmatpush1.msra.mxu0 0.0
      %1120 = vmatprep.subr.mxu0 0.0
      %1121 = vmatpush1.msra.mxu0 0.0
      %1122 = vmatprep.subr.mxu0 0.0
      %1123 = vmatpush1.msra.mxu0 0.0
      %1124 = vmatprep.subr.mxu0 0.0
      %1125 = vmatpush1.msra.mxu0 0.0
      %1126 = vmatprep.subr.mxu0 0.0
      %1127 = vmatpush1.msra.mxu0 0.0
      %1128 = vmatprep.subr.mxu0 0.0
      %1129 = vmatpush1.msra.mxu0 0.0
      %1130 = vmatprep.subr.mxu0 0.0
      %1131 = vmatpush1.msra.mxu0 0.0
      %1132 = vmatprep.subr.mxu0 0.0
      %1133 = vmatpush1.msra.mxu0 0.0
      %1134 = vmatprep.subr.mxu0 0.0
      %1135 = vmatpush1.msra.mxu0 0.0
      %1136 = vmatprep.subr.mxu0 0.0
      %1137 = vmatpush1.msra.mxu0 0.0
      %1138 = vmatprep.subr.mxu0 0.0
      %1139 = vmatpush1.msra.mxu0 0.0
      %1140 = vmatprep.subr.mxu0 0.0
      %1141 = vmatpush1.msra.mxu0 0.0
      %1142 = vmatprep.subr.mxu0 0.0
      %1143 = vmatpush1.msra.mxu0 0.0
      %1144 = vmatprep.subr.mxu0 0.0
      %1145 = vmatpush1.msra.mxu0 0.0
      %1146 = vmatprep.subr.mxu0 0.0
      %1147 = vmatpush1.msra.mxu0 0.0
      %1148 = vmatprep.subr.mxu0 0.0
      %1149 = vmatpush1.msra.mxu0 0.0
      %1150 = vmatprep.subr.mxu0 0.0
      %1151 = vmatpush1.msra.mxu0 0.0
      %1152 = vmatprep.subr.mxu0 0.0
      %1153 = vmatpush1.msra.mxu0 0.0
      %1154 = vmatprep.subr.mxu0 0.0
      %1155 = vmatpush1.msra.mxu0 0.0
      %1156 = vmatprep.subr.mxu0 0.0
      %1157 = vmatpush1.msra.mxu0 0.0
      %1158 = vmatprep.mubr.f32.mxu0 0.0
      %1159 = vmatmul.mubr.f32.gmra.mrb[0].mxu0 %v1074
      %v1160 = vpop.f32.mrb[0].mxu0
      %v1161 = vadd.f32 0.0, %v1160
      %v1162 = vpop.f32.mrb[0].mxu0
      %1163 = vmatprep.mubr.f32.mxu0 0.0
      %1164 = vmatmul.mubr.f32.gmra.mrb[0].mxu0 %v1077
      %v1165 = vpop.f32.mrb[0].mxu0
      %v1166 = vadd.f32 0.0, %v1165
      %v1167 = vpop.f32.mrb[0].mxu0
      %1168 = vmatprep.mubr.f32.mxu0 0.0
      %1169 = vmatmul.mubr.f32.gmra.mrb[0].mxu0 %v1080
      %v1170 = vpop.f32.mrb[0].mxu0
      %v1171 = vadd.f32 0.0, %v1170
      %v1172 = vpop.f32.mrb[0].mxu0
      %1173 = vmatprep.mubr.f32.mxu0 0.0
      %1174 = vmatmul.mubr.f32.gmra.mrb[0].mxu0 %v1083
      %v1175 = vpop.f32.mrb[0].mxu0
      %v1176 = vadd.f32 0.0, %v1175
      %v1177 = vpop.f32.mrb[0].mxu0
      %1178 = vmatprep.mubr.f32.mxu0 0.0
      %1179 = vmatmul.mubr.f32.gmra.mrb[0].mxu0 %v1086
      %v1180 = vpop.f32.mrb[0].mxu0
      %v1181 = vadd.f32 0.0, %v1180
      %v1182 = vpop.f32.mrb[0].mxu0
      %1183 = vmatprep.mubr.f32.mxu0 0.0
      %1184 = vmatmul.mubr.f32.gmra.mrb[0].mxu0 %v1089
      %v1185 = vpop.f32.mrb[0].mxu0
      %v1186 = vadd.f32 0.0, %v1185
      %v1187 = vpop.f32.mrb[0].mxu0
      %1188 = vmatprep.mubr.f32.mxu0 0.0
      %1189 = vmatmul.mubr.f32.gmra.mrb[0].mxu0 %v1092
      %v1190 = vpop.f32.mrb[0].mxu0
      %v1191 = vadd.f32 0.0, %v1190
      %v1192 = vpop.f32.mrb[0].mxu0
      %1193 = vdwg.mxu0
      %v1194 = vadd.f32 %v1058, %v1161
      %v1195 = vadd.f32 %v1059, %v1166
      %v1196 = vadd.f32 %v1060, %v1171
      %v1197 = vadd.f32 %v1061, %v1176
      %v1198 = vadd.f32 %v1062, %v1181
      %v1199 = vadd.f32 %v1063, %v1186
      %v1200 = vadd.f32 %v1064, %v1191
      %v1201 = vld [vmem:[#allocation2 + $0x9] sm:$0xff]
      %v1202 = vld [vmem:[#allocation2 + $0x11] sm:$0xff]
      %v1203 = vld [vmem:[#allocation2 + $0x19] sm:$0xff]
      %v1204 = vld [vmem:[#allocation2 + $0x21] sm:$0xff]
      %v1205 = vld [vmem:[#allocation2 + $0x29] sm:$0xff]
      %v1206 = vld [vmem:[#allocation2 + $0x31] sm:$0xff]
      %v1207 = vld [vmem:[#allocation2 + $0x39] sm:$0x1]
      %v1208 = vld [vmem:[%s3 + $0x28] sm:$0xff]
      %v1210 = vsel %vm517, %v1201, 0
      %v1213 = vsel %vm517, %v1202, 0
      %v1216 = vsel %vm517, %v1203, 0
      %v1219 = vsel %vm517, %v1204, 0
      %v1222 = vsel %vm517, %v1205, 0
      %v1225 = vsel %vm517, %v1206, 0
      %v1228 = vsel %vm517, %v1207, 0
      %1230 = vmatprep.subr.mxu0 0.0
      %1231 = vmatpush1.msra.mxu0 %v1208
      %1232 = vmatprep.subr.mxu0 0.0
      %1233 = vmatpush1.msra.mxu0 0.0
      %1234 = vmatprep.subr.mxu0 0.0
      %1235 = vmatpush1.msra.mxu0 0.0
      %1236 = vmatprep.subr.mxu0 0.0
      %1237 = vmatpush1.msra.mxu0 0.0
      %1238 = vmatprep.subr.mxu0 0.0
      %1239 = vmatpush1.msra.mxu0 0.0
      %1240 = vmatprep.subr.mxu0 0.0
      %1241 = vmatpush1.msra.mxu0 0.0
      %1242 = vmatprep.subr.mxu0 0.0
      %1243 = vmatpush1.msra.mxu0 0.0
      %1244 = vmatprep.subr.mxu0 0.0
      %1245 = vmatpush1.msra.mxu0 0.0
      %1246 = vmatprep.subr.mxu0 0.0
      %1247 = vmatpush1.msra.mxu0 0.0
      %1248 = vmatprep.subr.mxu0 0.0
      %1249 = vmatpush1.msra.mxu0 0.0
      %1250 = vmatprep.subr.mxu0 0.0
      %1251 = vmatpush1.msra.mxu0 0.0
      %1252 = vmatprep.subr.mxu0 0.0
      %1253 = vmatpush1.msra.mxu0 0.0
      %1254 = vmatprep.subr.mxu0 0.0
      %1255 = vmatpush1.msra.mxu0 0.0
      %1256 = vmatprep.subr.mxu0 0.0
      %1257 = vmatpush1.msra.mxu0 0.0
      %1258 = vmatprep.subr.mxu0 0.0
      %1259 = vmatpush1.msra.mxu0 0.0
      %1260 = vmatprep.subr.mxu0 0.0
      %1261 = vmatpush1.msra.mxu0 0.0
      %1262 = vmatprep.subr.mxu0 0.0
      %1263 = vmatpush1.msra.mxu0 0.0
      %1264 = vmatprep.subr.mxu0 0.0
      %1265 = vmatpush1.msra.mxu0 0.0
      %1266 = vmatprep.subr.mxu0 0.0
      %1267 = vmatpush1.msra.mxu0 0.0
      %1268 = vmatprep.subr.mxu0 0.0
      %1269 = vmatpush1.msra.mxu0 0.0
      %1270 = vmatprep.subr.mxu0 0.0
      %1271 = vmatpush1.msra.mxu0 0.0
      %1272 = vmatprep.subr.mxu0 0.0
      %1273 = vmatpush1.msra.mxu0 0.0
      %1274 = vmatprep.subr.mxu0 0.0
      %1275 = vmatpush1.msra.mxu0 0.0
      %1276 = vmatprep.subr.mxu0 0.0
      %1277 = vmatpush1.msra.mxu0 0.0
      %1278 = vmatprep.subr.mxu0 0.0
      %1279 = vmatpush1.msra.mxu0 0.0
      %1280 = vmatprep.subr.mxu0 0.0
      %1281 = vmatpush1.msra.mxu0 0.0
      %1282 = vmatprep.subr.mxu0 0.0
      %1283 = vmatpush1.msra.mxu0 0.0
      %1284 = vmatprep.subr.mxu0 0.0
      %1285 = vmatpush1.msra.mxu0 0.0
      %1286 = vmatprep.subr.mxu0 0.0
      %1287 = vmatpush1.msra.mxu0 0.0
      %1288 = vmatprep.subr.mxu0 0.0
      %1289 = vmatpush1.msra.mxu0 0.0
      %1290 = vmatprep.subr.mxu0 0.0
      %1291 = vmatpush1.msra.mxu0 0.0
      %1292 = vmatprep.subr.mxu0 0.0
      %1293 = vmatpush1.msra.mxu0 0.0
      %1294 = vmatprep.mubr.f32.mxu0 0.0
      %1295 = vmatmul.mubr.f32.gmra.mrb[0].mxu0 %v1210
      %v1296 = vpop.f32.mrb[0].mxu0
      %v1297 = vadd.f32 0.0, %v1296
      %v1298 = vpop.f32.mrb[0].mxu0
      %1299 = vmatprep.mubr.f32.mxu0 0.0
      %1300 = vmatmul.mubr.f32.gmra.mrb[0].mxu0 %v1213
      %v1301 = vpop.f32.mrb[0].mxu0
      %v1302 = vadd.f32 0.0, %v1301
      %v1303 = vpop.f32.mrb[0].mxu0
      %1304 = vmatprep.mubr.f32.mxu0 0.0
      %1305 = vmatmul.mubr.f32.gmra.mrb[0].mxu0 %v1216
      %v1306 = vpop.f32.mrb[0].mxu0
      %v1307 = vadd.f32 0.0, %v1306
      %v1308 = vpop.f32.mrb[0].mxu0
      %1309 = vmatprep.mubr.f32.mxu0 0.0
      %1310 = vmatmul.mubr.f32.gmra.mrb[0].mxu0 %v1219
      %v1311 = vpop.f32.mrb[0].mxu0
      %v1312 = vadd.f32 0.0, %v1311
      %v1313 = vpop.f32.mrb[0].mxu0
      %1314 = vmatprep.mubr.f32.mxu0 0.0
      %1315 = vmatmul.mubr.f32.gmra.mrb[0].mxu0 %v1222
      %v1316 = vpop.f32.mrb[0].mxu0
      %v1317 = vadd.f32 0.0, %v1316
      %v1318 = vpop.f32.mrb[0].mxu0
      %1319 = vmatprep.mubr.f32.mxu0 0.0
      %1320 = vmatmul.mubr.f32.gmra.mrb[0].mxu0 %v1225
      %v1321 = vpop.f32.mrb[0].mxu0
      %v1322 = vadd.f32 0.0, %v1321
      %v1323 = vpop.f32.mrb[0].mxu0
      %1324 = vmatprep.mubr.f32.mxu0 0.0
      %1325 = vmatmul.mubr.f32.gmra.mrb[0].mxu0 %v1228
      %v1326 = vpop.f32.mrb[0].mxu0
      %v1327 = vadd.f32 0.0, %v1326
      %v1328 = vpop.f32.mrb[0].mxu0
      %1329 = vdwg.mxu0
      %v1330 = vadd.f32 %v1194, %v1297
      %v1331 = vadd.f32 %v1195, %v1302
      %v1332 = vadd.f32 %v1196, %v1307
      %v1333 = vadd.f32 %v1197, %v1312
      %v1334 = vadd.f32 %v1198, %v1317
      %v1335 = vadd.f32 %v1199, %v1322
      %v1336 = vadd.f32 %v1200, %v1327
      %v1337 = vld [vmem:[#allocation2 + $0xe] sm:$0xff]
      %v1338 = vld [vmem:[#allocation2 + $0x16] sm:$0xff]
      %v1339 = vld [vmem:[#allocation2 + $0x1e] sm:$0xff]
      %v1340 = vld [vmem:[#allocation2 + $0x26] sm:$0xff]
      %v1341 = vld [vmem:[#allocation2 + $0x2e] sm:$0xff]
      %v1342 = vld [vmem:[#allocation2 + $0x36] sm:$0xff]
      %v1343 = vld [vmem:[#allocation2 + $0x3e] sm:$0x1]
      %v1344 = vld [vmem:[%s3 + $0x30] sm:$0xff]
      %v1346 = vsel %vm517, %v1337, 0
      %v1349 = vsel %vm517, %v1338, 0
      %v1352 = vsel %vm517, %v1339, 0
      %v1355 = vsel %vm517, %v1340, 0
      %v1358 = vsel %vm517, %v1341, 0
      %v1361 = vsel %vm517, %v1342, 0
      %v1364 = vsel %vm517, %v1343, 0
      %1366 = vmatprep.subr.mxu0 0.0
      %1367 = vmatpush1.msra.mxu0 %v1344
      %1368 = vmatprep.subr.mxu0 0.0
      %1369 = vmatpush1.msra.mxu0 0.0
      %1370 = vmatprep.subr.mxu0 0.0
      %1371 = vmatpush1.msra.mxu0 0.0
      %1372 = vmatprep.subr.mxu0 0.0
      %1373 = vmatpush1.msra.mxu0 0.0
      %1374 = vmatprep.subr.mxu0 0.0
      %1375 = vmatpush1.msra.mxu0 0.0
      %1376 = vmatprep.subr.mxu0 0.0
      %1377 = vmatpush1.msra.mxu0 0.0
      %1378 = vmatprep.subr.mxu0 0.0
      %1379 = vmatpush1.msra.mxu0 0.0
      %1380 = vmatprep.subr.mxu0 0.0
      %1381 = vmatpush1.msra.mxu0 0.0
      %1382 = vmatprep.subr.mxu0 0.0
      %1383 = vmatpush1.msra.mxu0 0.0
      %1384 = vmatprep.subr.mxu0 0.0
      %1385 = vmatpush1.msra.mxu0 0.0
      %1386 = vmatprep.subr.mxu0 0.0
      %1387 = vmatpush1.msra.mxu0 0.0
      %1388 = vmatprep.subr.mxu0 0.0
      %1389 = vmatpush1.msra.mxu0 0.0
      %1390 = vmatprep.subr.mxu0 0.0
      %1391 = vmatpush1.msra.mxu0 0.0
      %1392 = vmatprep.subr.mxu0 0.0
      %1393 = vmatpush1.msra.mxu0 0.0
      %1394 = vmatprep.subr.mxu0 0.0
      %1395 = vmatpush1.msra.mxu0 0.0
      %1396 = vmatprep.subr.mxu0 0.0
      %1397 = vmatpush1.msra.mxu0 0.0
      %1398 = vmatprep.subr.mxu0 0.0
      %1399 = vmatpush1.msra.mxu0 0.0
      %1400 = vmatprep.subr.mxu0 0.0
      %1401 = vmatpush1.msra.mxu0 0.0
      %1402 = vmatprep.subr.mxu0 0.0
      %1403 = vmatpush1.msra.mxu0 0.0
      %1404 = vmatprep.subr.mxu0 0.0
      %1405 = vmatpush1.msra.mxu0 0.0
      %1406 = vmatprep.subr.mxu0 0.0
      %1407 = vmatpush1.msra.mxu0 0.0
      %1408 = vmatprep.subr.mxu0 0.0
      %1409 = vmatpush1.msra.mxu0 0.0
      %1410 = vmatprep.subr.mxu0 0.0
      %1411 = vmatpush1.msra.mxu0 0.0
      %1412 = vmatprep.subr.mxu0 0.0
      %1413 = vmatpush1.msra.mxu0 0.0
      %1414 = vmatprep.subr.mxu0 0.0
      %1415 = vmatpush1.msra.mxu0 0.0
      %1416 = vmatprep.subr.mxu0 0.0
      %1417 = vmatpush1.msra.mxu0 0.0
      %1418 = vmatprep.subr.mxu0 0.0
      %1419 = vmatpush1.msra.mxu0 0.0
      %1420 = vmatprep.subr.mxu0 0.0
      %1421 = vmatpush1.msra.mxu0 0.0
      %1422 = vmatprep.subr.mxu0 0.0
      %1423 = vmatpush1.msra.mxu0 0.0
      %1424 = vmatprep.subr.mxu0 0.0
      %1425 = vmatpush1.msra.mxu0 0.0
      %1426 = vmatprep.subr.mxu0 0.0
      %1427 = vmatpush1.msra.mxu0 0.0
      %1428 = vmatprep.subr.mxu0 0.0
      %1429 = vmatpush1.msra.mxu0 0.0
      %1430 = vmatprep.mubr.f32.mxu0 0.0
      %1431 = vmatmul.mubr.f32.gmra.mrb[0].mxu0 %v1346
      %v1432 = vpop.f32.mrb[0].mxu0
      %v1433 = vadd.f32 0.0, %v1432
      %v1434 = vpop.f32.mrb[0].mxu0
      %1435 = vmatprep.mubr.f32.mxu0 0.0
      %1436 = vmatmul.mubr.f32.gmra.mrb[0].mxu0 %v1349
      %v1437 = vpop.f32.mrb[0].mxu0
      %v1438 = vadd.f32 0.0, %v1437
      %v1439 = vpop.f32.mrb[0].mxu0
      %1440 = vmatprep.mubr.f32.mxu0 0.0
      %1441 = vmatmul.mubr.f32.gmra.mrb[0].mxu0 %v1352
      %v1442 = vpop.f32.mrb[0].mxu0
      %v1443 = vadd.f32 0.0, %v1442
      %v1444 = vpop.f32.mrb[0].mxu0
      %1445 = vmatprep.mubr.f32.mxu0 0.0
      %1446 = vmatmul.mubr.f32.gmra.mrb[0].mxu0 %v1355
      %v1447 = vpop.f32.mrb[0].mxu0
      %v1448 = vadd.f32 0.0, %v1447
      %v1449 = vpop.f32.mrb[0].mxu0
      %1450 = vmatprep.mubr.f32.mxu0 0.0
      %1451 = vmatmul.mubr.f32.gmra.mrb[0].mxu0 %v1358
      %v1452 = vpop.f32.mrb[0].mxu0
      %v1453 = vadd.f32 0.0, %v1452
      %v1454 = vpop.f32.mrb[0].mxu0
      %1455 = vmatprep.mubr.f32.mxu0 0.0
      %1456 = vmatmul.mubr.f32.gmra.mrb[0].mxu0 %v1361
      %v1457 = vpop.f32.mrb[0].mxu0
      %v1458 = vadd.f32 0.0, %v1457
      %v1459 = vpop.f32.mrb[0].mxu0
      %1460 = vmatprep.mubr.f32.mxu0 0.0
      %1461 = vmatmul.mubr.f32.gmra.mrb[0].mxu0 %v1364
      %v1462 = vpop.f32.mrb[0].mxu0
      %v1463 = vadd.f32 0.0, %v1462
      %v1464 = vpop.f32.mrb[0].mxu0
      %1465 = vdwg.mxu0
      %v1466 = vadd.f32 %v1330, %v1433
      %v1467 = vadd.f32 %v1331, %v1438
      %v1468 = vadd.f32 %v1332, %v1443
      %v1469 = vadd.f32 %v1333, %v1448
      %v1470 = vadd.f32 %v1334, %v1453
      %v1471 = vadd.f32 %v1335, %v1458
      %v1472 = vadd.f32 %v1336, %v1463
      %v1473 = vld [vmem:[#allocation2 + $0xf] sm:$0xff]
      %v1474 = vld [vmem:[#allocation2 + $0x17] sm:$0xff]
      %v1475 = vld [vmem:[#allocation2 + $0x1f] sm:$0xff]
      %v1476 = vld [vmem:[#allocation2 + $0x27] sm:$0xff]
      %v1477 = vld [vmem:[#allocation2 + $0x2f] sm:$0xff]
      %v1478 = vld [vmem:[#allocation2 + $0x37] sm:$0xff]
      %v1479 = vld [vmem:[#allocation2 + $0x3f] sm:$0x1]
      %v1480 = vld [vmem:[%s3 + $0x38] sm:$0xff]
      %v1482 = vsel %vm517, %v1473, 0
      %v1485 = vsel %vm517, %v1474, 0
      %v1488 = vsel %vm517, %v1475, 0
      %v1491 = vsel %vm517, %v1476, 0
      %v1494 = vsel %vm517, %v1477, 0
      %v1497 = vsel %vm517, %v1478, 0
      %v1500 = vsel %vm517, %v1479, 0
      %1502 = vmatprep.subr.mxu0 0.0
      %1503 = vmatpush1.msra.mxu0 %v1480
      %1504 = vmatprep.subr.mxu0 0.0
      %1505 = vmatpush1.msra.mxu0 0.0
      %1506 = vmatprep.subr.mxu0 0.0
      %1507 = vmatpush1.msra.mxu0 0.0
      %1508 = vmatprep.subr.mxu0 0.0
      %1509 = vmatpush1.msra.mxu0 0.0
      %1510 = vmatprep.subr.mxu0 0.0
      %1511 = vmatpush1.msra.mxu0 0.0
      %1512 = vmatprep.subr.mxu0 0.0
      %1513 = vmatpush1.msra.mxu0 0.0
      %1514 = vmatprep.subr.mxu0 0.0
      %1515 = vmatpush1.msra.mxu0 0.0
      %1516 = vmatprep.subr.mxu0 0.0
      %1517 = vmatpush1.msra.mxu0 0.0
      %1518 = vmatprep.subr.mxu0 0.0
      %1519 = vmatpush1.msra.mxu0 0.0
      %1520 = vmatprep.subr.mxu0 0.0
      %1521 = vmatpush1.msra.mxu0 0.0
      %1522 = vmatprep.subr.mxu0 0.0
      %1523 = vmatpush1.msra.mxu0 0.0
      %1524 = vmatprep.subr.mxu0 0.0
      %1525 = vmatpush1.msra.mxu0 0.0
      %1526 = vmatprep.subr.mxu0 0.0
      %1527 = vmatpush1.msra.mxu0 0.0
      %1528 = vmatprep.subr.mxu0 0.0
      %1529 = vmatpush1.msra.mxu0 0.0
      %1530 = vmatprep.subr.mxu0 0.0
      %1531 = vmatpush1.msra.mxu0 0.0
      %1532 = vmatprep.subr.mxu0 0.0
      %1533 = vmatpush1.msra.mxu0 0.0
      %1534 = vmatprep.subr.mxu0 0.0
      %1535 = vmatpush1.msra.mxu0 0.0
      %1536 = vmatprep.subr.mxu0 0.0
      %1537 = vmatpush1.msra.mxu0 0.0
      %1538 = vmatprep.subr.mxu0 0.0
      %1539 = vmatpush1.msra.mxu0 0.0
      %1540 = vmatprep.subr.mxu0 0.0
      %1541 = vmatpush1.msra.mxu0 0.0
      %1542 = vmatprep.subr.mxu0 0.0
      %1543 = vmatpush1.msra.mxu0 0.0
      %1544 = vmatprep.subr.mxu0 0.0
      %1545 = vmatpush1.msra.mxu0 0.0
      %1546 = vmatprep.subr.mxu0 0.0
      %1547 = vmatpush1.msra.mxu0 0.0
      %1548 = vmatprep.subr.mxu0 0.0
      %1549 = vmatpush1.msra.mxu0 0.0
      %1550 = vmatprep.subr.mxu0 0.0
      %1551 = vmatpush1.msra.mxu0 0.0
      %1552 = vmatprep.subr.mxu0 0.0
      %1553 = vmatpush1.msra.mxu0 0.0
      %1554 = vmatprep.subr.mxu0 0.0
      %1555 = vmatpush1.msra.mxu0 0.0
      %1556 = vmatprep.subr.mxu0 0.0
      %1557 = vmatpush1.msra.mxu0 0.0
      %1558 = vmatprep.subr.mxu0 0.0
      %1559 = vmatpush1.msra.mxu0 0.0
      %1560 = vmatprep.subr.mxu0 0.0
      %1561 = vmatpush1.msra.mxu0 0.0
      %1562 = vmatprep.subr.mxu0 0.0
      %1563 = vmatpush1.msra.mxu0 0.0
      %1564 = vmatprep.subr.mxu0 0.0
      %1565 = vmatpush1.msra.mxu0 0.0
      %1566 = vmatprep.mubr.f32.mxu0 0.0
      %1567 = vmatmul.mubr.f32.gmra.mrb[0].mxu0 %v1482
      %v1568 = vpop.f32.mrb[0].mxu0
      %v1569 = vadd.f32 0.0, %v1568
      %v1570 = vpop.f32.mrb[0].mxu0
      %1571 = vmatprep.mubr.f32.mxu0 0.0
      %1572 = vmatmul.mubr.f32.gmra.mrb[0].mxu0 %v1485
      %v1573 = vpop.f32.mrb[0].mxu0
      %v1574 = vadd.f32 0.0, %v1573
      %v1575 = vpop.f32.mrb[0].mxu0
      %1576 = vmatprep.mubr.f32.mxu0 0.0
      %1577 = vmatmul.mubr.f32.gmra.mrb[0].mxu0 %v1488
      %v1578 = vpop.f32.mrb[0].mxu0
      %v1579 = vadd.f32 0.0, %v1578
      %v1580 = vpop.f32.mrb[0].mxu0
      %1581 = vmatprep.mubr.f32.mxu0 0.0
      %1582 = vmatmul.mubr.f32.gmra.mrb[0].mxu0 %v1491
      %v1583 = vpop.f32.mrb[0].mxu0
      %v1584 = vadd.f32 0.0, %v1583
      %v1585 = vpop.f32.mrb[0].mxu0
      %1586 = vmatprep.mubr.f32.mxu0 0.0
      %1587 = vmatmul.mubr.f32.gmra.mrb[0].mxu0 %v1494
      %v1588 = vpop.f32.mrb[0].mxu0
      %v1589 = vadd.f32 0.0, %v1588
      %v1590 = vpop.f32.mrb[0].mxu0
      %1591 = vmatprep.mubr.f32.mxu0 0.0
      %1592 = vmatmul.mubr.f32.gmra.mrb[0].mxu0 %v1497
      %v1593 = vpop.f32.mrb[0].mxu0
      %v1594 = vadd.f32 0.0, %v1593
      %v1595 = vpop.f32.mrb[0].mxu0
      %1596 = vmatprep.mubr.f32.mxu0 0.0
      %1597 = vmatmul.mubr.f32.gmra.mrb[0].mxu0 %v1500
      %v1598 = vpop.f32.mrb[0].mxu0
      %v1599 = vadd.f32 0.0, %v1598
      %v1600 = vpop.f32.mrb[0].mxu0
      %1601 = vdwg.mxu0
      %v1602 = vadd.f32 %v1466, %v1569
      %v1603 = vadd.f32 %v1467, %v1574
      %v1604 = vadd.f32 %v1468, %v1579
      %v1605 = vadd.f32 %v1469, %v1584
      %v1606 = vadd.f32 %v1470, %v1589
      %v1607 = vadd.f32 %v1471, %v1594
      %v1608 = vadd.f32 %v1472, %v1599
      %v1609 = vld [vmem:[#allocation2 + $0x10] sm:$0xff]
      %v1610 = vld [vmem:[#allocation2 + $0x18] sm:$0xff]
      %v1611 = vld [vmem:[#allocation2 + $0x20] sm:$0xff]
      %v1612 = vld [vmem:[#allocation2 + $0x28] sm:$0xff]
      %v1613 = vld [vmem:[#allocation2 + $0x30] sm:$0xff]
      %v1614 = vld [vmem:[#allocation2 + $0x38] sm:$0xff]
      %v1615 = vld [vmem:[#allocation2 + $0x40] sm:$0x1]
      %v1616 = vld [vmem:[%s3 + $0x40] sm:$0xff]
      %v1618 = vsel %vm517, %v1609, 0
      %v1621 = vsel %vm517, %v1610, 0
      %v1624 = vsel %vm517, %v1611, 0
      %v1627 = vsel %vm517, %v1612, 0
      %v1630 = vsel %vm517, %v1613, 0
      %v1633 = vsel %vm517, %v1614, 0
      %v1636 = vsel %vm517, %v1615, 0
      %1638 = vmatprep.subr.mxu0 0.0
      %1639 = vmatpush1.msra.mxu0 %v1616
      %1640 = vmatprep.subr.mxu0 0.0
      %1641 = vmatpush1.msra.mxu0 0.0
      %1642 = vmatprep.subr.mxu0 0.0
      %1643 = vmatpush1.msra.mxu0 0.0
      %1644 = vmatprep.subr.mxu0 0.0
      %1645 = vmatpush1.msra.mxu0 0.0
      %1646 = vmatprep.subr.mxu0 0.0
      %1647 = vmatpush1.msra.mxu0 0.0
      %1648 = vmatprep.subr.mxu0 0.0
      %1649 = vmatpush1.msra.mxu0 0.0
      %1650 = vmatprep.subr.mxu0 0.0
      %1651 = vmatpush1.msra.mxu0 0.0
      %1652 = vmatprep.subr.mxu0 0.0
      %1653 = vmatpush1.msra.mxu0 0.0
      %1654 = vmatprep.subr.mxu0 0.0
      %1655 = vmatpush1.msra.mxu0 0.0
      %1656 = vmatprep.subr.mxu0 0.0
      %1657 = vmatpush1.msra.mxu0 0.0
      %1658 = vmatprep.subr.mxu0 0.0
      %1659 = vmatpush1.msra.mxu0 0.0
      %1660 = vmatprep.subr.mxu0 0.0
      %1661 = vmatpush1.msra.mxu0 0.0
      %1662 = vmatprep.subr.mxu0 0.0
      %1663 = vmatpush1.msra.mxu0 0.0
      %1664 = vmatprep.subr.mxu0 0.0
      %1665 = vmatpush1.msra.mxu0 0.0
      %1666 = vmatprep.subr.mxu0 0.0
      %1667 = vmatpush1.msra.mxu0 0.0
      %1668 = vmatprep.subr.mxu0 0.0
      %1669 = vmatpush1.msra.mxu0 0.0
      %1670 = vmatprep.subr.mxu0 0.0
      %1671 = vmatpush1.msra.mxu0 0.0
      %1672 = vmatprep.subr.mxu0 0.0
      %1673 = vmatpush1.msra.mxu0 0.0
      %1674 = vmatprep.subr.mxu0 0.0
      %1675 = vmatpush1.msra.mxu0 0.0
      %1676 = vmatprep.subr.mxu0 0.0
      %1677 = vmatpush1.msra.mxu0 0.0
      %1678 = vmatprep.subr.mxu0 0.0
      %1679 = vmatpush1.msra.mxu0 0.0
      %1680 = vmatprep.subr.mxu0 0.0
      %1681 = vmatpush1.msra.mxu0 0.0
      %1682 = vmatprep.subr.mxu0 0.0
      %1683 = vmatpush1.msra.mxu0 0.0
      %1684 = vmatprep.subr.mxu0 0.0
      %1685 = vmatpush1.msra.mxu0 0.0
      %1686 = vmatprep.subr.mxu0 0.0
      %1687 = vmatpush1.msra.mxu0 0.0
      %1688 = vmatprep.subr.mxu0 0.0
      %1689 = vmatpush1.msra.mxu0 0.0
      %1690 = vmatprep.subr.mxu0 0.0
      %1691 = vmatpush1.msra.mxu0 0.0
      %1692 = vmatprep.subr.mxu0 0.0
      %1693 = vmatpush1.msra.mxu0 0.0
      %1694 = vmatprep.subr.mxu0 0.0
      %1695 = vmatpush1.msra.mxu0 0.0
      %1696 = vmatprep.subr.mxu0 0.0
      %1697 = vmatpush1.msra.mxu0 0.0
      %1698 = vmatprep.subr.mxu0 0.0
      %1699 = vmatpush1.msra.mxu0 0.0
      %1700 = vmatprep.subr.mxu0 0.0
      %1701 = vmatpush1.msra.mxu0 0.0
      %1702 = vmatprep.mubr.f32.mxu0 0.0
      %1703 = vmatmul.mubr.f32.gmra.mrb[0].mxu0 %v1618
      %v1704 = vpop.f32.mrb[0].mxu0
      %v1705 = vadd.f32 0.0, %v1704
      %v1706 = vpop.f32.mrb[0].mxu0
      %1707 = vmatprep.mubr.f32.mxu0 0.0
      %1708 = vmatmul.mubr.f32.gmra.mrb[0].mxu0 %v1621
      %v1709 = vpop.f32.mrb[0].mxu0
      %v1710 = vadd.f32 0.0, %v1709
      %v1711 = vpop.f32.mrb[0].mxu0
      %1712 = vmatprep.mubr.f32.mxu0 0.0
      %1713 = vmatmul.mubr.f32.gmra.mrb[0].mxu0 %v1624
      %v1714 = vpop.f32.mrb[0].mxu0
      %v1715 = vadd.f32 0.0, %v1714
      %v1716 = vpop.f32.mrb[0].mxu0
      %1717 = vmatprep.mubr.f32.mxu0 0.0
      %1718 = vmatmul.mubr.f32.gmra.mrb[0].mxu0 %v1627
      %v1719 = vpop.f32.mrb[0].mxu0
      %v1720 = vadd.f32 0.0, %v1719
      %v1721 = vpop.f32.mrb[0].mxu0
      %1722 = vmatprep.mubr.f32.mxu0 0.0
      %1723 = vmatmul.mubr.f32.gmra.mrb[0].mxu0 %v1630
      %v1724 = vpop.f32.mrb[0].mxu0
      %v1725 = vadd.f32 0.0, %v1724
      %v1726 = vpop.f32.mrb[0].mxu0
      %1727 = vmatprep.mubr.f32.mxu0 0.0
      %1728 = vmatmul.mubr.f32.gmra.mrb[0].mxu0 %v1633
      %v1729 = vpop.f32.mrb[0].mxu0
      %v1730 = vadd.f32 0.0, %v1729
      %v1731 = vpop.f32.mrb[0].mxu0
      %1732 = vmatprep.mubr.f32.mxu0 0.0
      %1733 = vmatmul.mubr.f32.gmra.mrb[0].mxu0 %v1636
      %v1734 = vpop.f32.mrb[0].mxu0
      %v1735 = vadd.f32 0.0, %v1734
      %v1736 = vpop.f32.mrb[0].mxu0
      %1737 = vdwg.mxu0
      %v1738 = vadd.f32 %v1602, %v1705
      %v1739 = vadd.f32 %v1603, %v1710
      %v1740 = vadd.f32 %v1604, %v1715
      %v1741 = vadd.f32 %v1605, %v1720
      %v1742 = vadd.f32 %v1606, %v1725
      %v1743 = vadd.f32 %v1607, %v1730
      %v1744 = vadd.f32 %v1608, %v1735
      %vm1745 = vcmask 130048
      %1746 = vst.msk [vmem:[#allocation3] sm:$0xff] %vm1745, 0.0
      %1747 = vst.msk [vmem:[#allocation3 + $0x8] sm:$0xff] %vm1745, 0.0
      %1748 = vst.msk [vmem:[#allocation3 + $0x10] sm:$0xff] %vm1745, 0.0
      %1749 = vst.msk [vmem:[#allocation3 + $0x18] sm:$0xff] %vm1745, 0.0
      %1750 = vst.msk [vmem:[#allocation3 + $0x20] sm:$0xff] %vm1745, 0.0
      %1751 = vst.msk [vmem:[#allocation3 + $0x28] sm:$0xff] %vm1745, 0.0
      %1752 = vst.msk [vmem:[#allocation3 + $0x30] sm:$0xff] %vm1745, 0.0
      %v1753 = vld [vmem:[%s4] sm:$0x1]
      %v1755 = vlaneseq
      %v1756 = vshrl.u32 %v1755, 7
      %v1757 = vsub.s32 0, %v1756
      %v1758 = vrot.slane %v1753, %v1757
      %v1760 = vadd.f32 %v1738, %v1758
      %v1761 = vadd.f32 %v1739, %v1758
      %v1762 = vadd.f32 %v1740, %v1758
      %v1763 = vadd.f32 %v1741, %v1758
      %v1764 = vadd.f32 %v1742, %v1758
      %v1765 = vadd.f32 %v1743, %v1758
      %v1766 = vadd.f32 %v1744, %v1758
      %vm1767 = vcmp.gt.f32.partialorder %v1760, 0.0
      %vm1768 = vcmp.gt.f32.partialorder %v1761, 0.0
      %vm1769 = vcmp.gt.f32.partialorder %v1762, 0.0
      %vm1770 = vcmp.gt.f32.partialorder %v1763, 0.0
      %vm1771 = vcmp.gt.f32.partialorder %v1764, 0.0
      %vm1772 = vcmp.gt.f32.partialorder %v1765, 0.0
      %vm1773 = vcmp.gt.f32.partialorder %v1766, 0.0
      %v1774 = vmin.f32 %v1760, 0.0
      %v1775 = vmin.f32 %v1761, 0.0
      %v1776 = vmin.f32 %v1762, 0.0
      %v1777 = vmin.f32 %v1763, 0.0
      %v1778 = vmin.f32 %v1764, 0.0
      %v1779 = vmin.f32 %v1765, 0.0
      %v1780 = vmin.f32 %v1766, 0.0
      %v1781 = vmul.f32 %v1774, 1.442695
      %v1782 = vpow.pop %v1781
      %v1783 = vmul.f32 %v1775, 1.442695
      %v1784 = vpow.pop %v1783
      %v1785 = vmul.f32 %v1776, 1.442695
      %v1786 = vpow.pop %v1785
      %v1787 = vmul.f32 %v1777, 1.442695
      %v1788 = vpow.pop %v1787
      %v1789 = vmul.f32 %v1778, 1.442695
      %v1790 = vpow.pop %v1789
      %v1791 = vmul.f32 %v1779, 1.442695
      %v1792 = vpow.pop %v1791
      %v1793 = vmul.f32 %v1780, 1.442695
      %v1794 = vpow.pop %v1793
      %v1795 = vsub.f32 %v1782, 1.0
      %v1796 = vsub.f32 %v1784, 1.0
      %v1797 = vsub.f32 %v1786, 1.0
      %v1798 = vsub.f32 %v1788, 1.0
      %v1799 = vsub.f32 %v1790, 1.0
      %v1800 = vsub.f32 %v1792, 1.0
      %v1801 = vsub.f32 %v1794, 1.0
      %v1802 = vsel %vm1767, %v1760, %v1795
      %v1803 = vsel %vm1768, %v1761, %v1796
      %v1804 = vsel %vm1769, %v1762, %v1797
      %v1805 = vsel %vm1770, %v1763, %v1798
      %v1806 = vsel %vm1771, %v1764, %v1799
      %v1807 = vsel %vm1772, %v1765, %v1800
      %v1808 = vsel %vm1773, %v1766, %v1801
      %1809 = vst.msk [vmem:[#allocation3] sm:$0xff] %vm1745, %v1802
      %1810 = vst.msk [vmem:[#allocation3 + $0x8] sm:$0xff] %vm1745, %v1803
      %1811 = vst.msk [vmem:[#allocation3 + $0x10] sm:$0xff] %vm1745, %v1804
      %1812 = vst.msk [vmem:[#allocation3 + $0x18] sm:$0xff] %vm1745, %v1805
      %1813 = vst.msk [vmem:[#allocation3 + $0x20] sm:$0xff] %vm1745, %v1806
      %1814 = vst.msk [vmem:[#allocation3 + $0x28] sm:$0xff] %vm1745, %v1807
      %vm1815 = vcmask 122880
      %1816 = vst.msk [vmem:[#allocation3 + $0x30] sm:$0x1] %vm1815, %v1808
      %v1817 = vld [vmem:[#allocation3] sm:$0x1]
      %v1818 = vld [vmem:[%s5] sm:$0xff]
      %v1819 = vld [vmem:[%s5 + $0x8] sm:$0xff]
      %v1820 = vld [vmem:[#allocation3 + $0x1] sm:$0x1]
      %v1821 = vld [vmem:[%s5 + $0x10] sm:$0xff]
      %v1822 = vld [vmem:[%s5 + $0x18] sm:$0xff]
      %v1824 = vsel %vm1745, %v1820, 0
      %1826 = vmatprep.subr.mxu0 0.0
      %1827 = vmatpush1.msra.mxu0 %v1821
      %1828 = vmatprep.subr.mxu0 0.0
      %1829 = vmatpush1.msra.mxu0 %v1822
      %1830 = vmatprep.subr.mxu0 0.0
      %1831 = vmatpush1.msra.mxu0 0.0
      %1832 = vmatprep.subr.mxu0 0.0
      %1833 = vmatpush1.msra.mxu0 0.0
      %1834 = vmatprep.subr.mxu0 0.0
      %1835 = vmatpush1.msra.mxu0 0.0
      %1836 = vmatprep.subr.mxu0 0.0
      %1837 = vmatpush1.msra.mxu0 0.0
      %1838 = vmatprep.subr.mxu0 0.0
      %1839 = vmatpush1.msra.mxu0 0.0
      %1840 = vmatprep.subr.mxu0 0.0
      %1841 = vmatpush1.msra.mxu0 0.0
      %1842 = vmatprep.subr.mxu0 0.0
      %1843 = vmatpush1.msra.mxu0 0.0
      %1844 = vmatprep.subr.mxu0 0.0
      %1845 = vmatpush1.msra.mxu0 0.0
      %1846 = vmatprep.subr.mxu0 0.0
      %1847 = vmatpush1.msra.mxu0 0.0
      %1848 = vmatprep.subr.mxu0 0.0
      %1849 = vmatpush1.msra.mxu0 0.0
      %1850 = vmatprep.subr.mxu0 0.0
      %1851 = vmatpush1.msra.mxu0 0.0
      %1852 = vmatprep.subr.mxu0 0.0
      %1853 = vmatpush1.msra.mxu0 0.0
      %1854 = vmatprep.subr.mxu0 0.0
      %1855 = vmatpush1.msra.mxu0 0.0
      %1856 = vmatprep.subr.mxu0 0.0
      %1857 = vmatpush1.msra.mxu0 0.0
      %1858 = vmatprep.subr.mxu0 0.0
      %1859 = vmatpush1.msra.mxu0 0.0
      %1860 = vmatprep.subr.mxu0 0.0
      %1861 = vmatpush1.msra.mxu0 0.0
      %1862 = vmatprep.subr.mxu0 0.0
      %1863 = vmatpush1.msra.mxu0 0.0
      %1864 = vmatprep.subr.mxu0 0.0
      %1865 = vmatpush1.msra.mxu0 0.0
      %1866 = vmatprep.subr.mxu0 0.0
      %1867 = vmatpush1.msra.mxu0 0.0
      %1868 = vmatprep.subr.mxu0 0.0
      %1869 = vmatpush1.msra.mxu0 0.0
      %1870 = vmatprep.subr.mxu0 0.0
      %1871 = vmatpush1.msra.mxu0 0.0
      %1872 = vmatprep.subr.mxu0 0.0
      %1873 = vmatpush1.msra.mxu0 0.0
      %1874 = vmatprep.subr.mxu0 0.0
      %1875 = vmatpush1.msra.mxu0 0.0
      %1876 = vmatprep.subr.mxu0 0.0
      %1877 = vmatpush1.msra.mxu0 0.0
      %1878 = vmatprep.subr.mxu0 0.0
      %1879 = vmatpush1.msra.mxu0 0.0
      %1880 = vmatprep.subr.mxu0 0.0
      %1881 = vmatpush1.msra.mxu0 0.0
      %1882 = vmatprep.subr.mxu0 0.0
      %1883 = vmatpush1.msra.mxu0 0.0
      %1884 = vmatprep.subr.mxu0 0.0
      %1885 = vmatpush1.msra.mxu0 0.0
      %1886 = vmatprep.subr.mxu0 0.0
      %1887 = vmatpush1.msra.mxu0 0.0
      %1888 = vmatprep.subr.mxu0 0.0
      %1889 = vmatpush1.msra.mxu0 0.0
      %1890 = vmatprep.mubr.f32.mxu0 0.0
      %1891 = vmatmul.mubr.f32.gmra.mrb[0].mxu0 %v1824
      %v1892 = vpop.f32.mrb[0].mxu0
      %v1893 = vadd.f32 0.0, %v1892
      %v1894 = vpop.f32.mrb[0].mxu0
      %1895 = vdwg.mxu0
      %v1897 = vsel %vm1745, %v1817, 0
      %1899 = vmatprep.subr.mxu0 0.0
      %1900 = vmatpush1.msra.mxu0 %v1818
      %1901 = vmatprep.subr.mxu0 0.0
      %1902 = vmatpush1.msra.mxu0 %v1819
      %1903 = vmatprep.subr.mxu0 0.0
      %1904 = vmatpush1.msra.mxu0 0.0
      %1905 = vmatprep.subr.mxu0 0.0
      %1906 = vmatpush1.msra.mxu0 0.0
      %1907 = vmatprep.subr.mxu0 0.0
      %1908 = vmatpush1.msra.mxu0 0.0
      %1909 = vmatprep.subr.mxu0 0.0
      %1910 = vmatpush1.msra.mxu0 0.0
      %1911 = vmatprep.subr.mxu0 0.0
      %1912 = vmatpush1.msra.mxu0 0.0
      %1913 = vmatprep.subr.mxu0 0.0
      %1914 = vmatpush1.msra.mxu0 0.0
      %1915 = vmatprep.subr.mxu0 0.0
      %1916 = vmatpush1.msra.mxu0 0.0
      %1917 = vmatprep.subr.mxu0 0.0
      %1918 = vmatpush1.msra.mxu0 0.0
      %1919 = vmatprep.subr.mxu0 0.0
      %1920 = vmatpush1.msra.mxu0 0.0
      %1921 = vmatprep.subr.mxu0 0.0
      %1922 = vmatpush1.msra.mxu0 0.0
      %1923 = vmatprep.subr.mxu0 0.0
      %1924 = vmatpush1.msra.mxu0 0.0
      %1925 = vmatprep.subr.mxu0 0.0
      %1926 = vmatpush1.msra.mxu0 0.0
      %1927 = vmatprep.subr.mxu0 0.0
      %1928 = vmatpush1.msra.mxu0 0.0
      %1929 = vmatprep.subr.mxu0 0.0
      %1930 = vmatpush1.msra.mxu0 0.0
      %1931 = vmatprep.subr.mxu0 0.0
      %1932 = vmatpush1.msra.mxu0 0.0
      %1933 = vmatprep.subr.mxu0 0.0
      %1934 = vmatpush1.msra.mxu0 0.0
      %1935 = vmatprep.subr.mxu0 0.0
      %1936 = vmatpush1.msra.mxu0 0.0
      %1937 = vmatprep.subr.mxu0 0.0
      %1938 = vmatpush1.msra.mxu0 0.0
      %1939 = vmatprep.subr.mxu0 0.0
      %1940 = vmatpush1.msra.mxu0 0.0
      %1941 = vmatprep.subr.mxu0 0.0
      %1942 = vmatpush1.msra.mxu0 0.0
      %1943 = vmatprep.subr.mxu0 0.0
      %1944 = vmatpush1.msra.mxu0 0.0
      %1945 = vmatprep.subr.mxu0 0.0
      %1946 = vmatpush1.msra.mxu0 0.0
      %1947 = vmatprep.subr.mxu0 0.0
      %1948 = vmatpush1.msra.mxu0 0.0
      %1949 = vmatprep.subr.mxu0 0.0
      %1950 = vmatpush1.msra.mxu0 0.0
      %1951 = vmatprep.subr.mxu0 0.0
      %1952 = vmatpush1.msra.mxu0 0.0
      %1953 = vmatprep.subr.mxu0 0.0
      %1954 = vmatpush1.msra.mxu0 0.0
      %1955 = vmatprep.subr.mxu0 0.0
      %1956 = vmatpush1.msra.mxu0 0.0
      %1957 = vmatprep.subr.mxu0 0.0
      %1958 = vmatpush1.msra.mxu0 0.0
      %1959 = vmatprep.subr.mxu0 0.0
      %1960 = vmatpush1.msra.mxu0 0.0
      %1961 = vmatprep.subr.mxu0 0.0
      %1962 = vmatpush1.msra.mxu0 0.0
      %1963 = vmatprep.mubr.f32.mxu0 0.0
      %1964 = vmatmul.mubr.f32.gmra.mrb[0].mxu0 %v1897
      %v1965 = vpop.f32.mrb[0].mxu0
      %v1966 = vadd.f32 %v1893, %v1965
      %v1967 = vpop.f32.mrb[0].mxu0
      %1968 = vdwg.mxu0
      %v1969 = vld [vmem:[#allocation3 + $0x2] sm:$0x1]
      %v1970 = vld [vmem:[%s5 + $0x20] sm:$0xff]
      %v1971 = vld [vmem:[%s5 + $0x28] sm:$0xff]
      %v1973 = vsel %vm1745, %v1969, 0
      %1975 = vmatprep.subr.mxu0 0.0
      %1976 = vmatpush1.msra.mxu0 %v1970
      %1977 = vmatprep.subr.mxu0 0.0
      %1978 = vmatpush1.msra.mxu0 %v1971
      %1979 = vmatprep.subr.mxu0 0.0
      %1980 = vmatpush1.msra.mxu0 0.0
      %1981 = vmatprep.subr.mxu0 0.0
      %1982 = vmatpush1.msra.mxu0 0.0
      %1983 = vmatprep.subr.mxu0 0.0
      %1984 = vmatpush1.msra.mxu0 0.0
      %1985 = vmatprep.subr.mxu0 0.0
      %1986 = vmatpush1.msra.mxu0 0.0
      %1987 = vmatprep.subr.mxu0 0.0
      %1988 = vmatpush1.msra.mxu0 0.0
      %1989 = vmatprep.subr.mxu0 0.0
      %1990 = vmatpush1.msra.mxu0 0.0
      %1991 = vmatprep.subr.mxu0 0.0
      %1992 = vmatpush1.msra.mxu0 0.0
      %1993 = vmatprep.subr.mxu0 0.0
      %1994 = vmatpush1.msra.mxu0 0.0
      %1995 = vmatprep.subr.mxu0 0.0
      %1996 = vmatpush1.msra.mxu0 0.0
      %1997 = vmatprep.subr.mxu0 0.0
      %1998 = vmatpush1.msra.mxu0 0.0
      %1999 = vmatprep.subr.mxu0 0.0
      %2000 = vmatpush1.msra.mxu0 0.0
      %2001 = vmatprep.subr.mxu0 0.0
      %2002 = vmatpush1.msra.mxu0 0.0
      %2003 = vmatprep.subr.mxu0 0.0
      %2004 = vmatpush1.msra.mxu0 0.0
      %2005 = vmatprep.subr.mxu0 0.0
      %2006 = vmatpush1.msra.mxu0 0.0
      %2007 = vmatprep.subr.mxu0 0.0
      %2008 = vmatpush1.msra.mxu0 0.0
      %2009 = vmatprep.subr.mxu0 0.0
      %2010 = vmatpush1.msra.mxu0 0.0
      %2011 = vmatprep.subr.mxu0 0.0
      %2012 = vmatpush1.msra.mxu0 0.0
      %2013 = vmatprep.subr.mxu0 0.0
      %2014 = vmatpush1.msra.mxu0 0.0
      %2015 = vmatprep.subr.mxu0 0.0
      %2016 = vmatpush1.msra.mxu0 0.0
      %2017 = vmatprep.subr.mxu0 0.0
      %2018 = vmatpush1.msra.mxu0 0.0
      %2019 = vmatprep.subr.mxu0 0.0
      %2020 = vmatpush1.msra.mxu0 0.0
      %2021 = vmatprep.subr.mxu0 0.0
      %2022 = vmatpush1.msra.mxu0 0.0
      %2023 = vmatprep.subr.mxu0 0.0
      %2024 = vmatpush1.msra.mxu0 0.0
      %2025 = vmatprep.subr.mxu0 0.0
      %2026 = vmatpush1.msra.mxu0 0.0
      %2027 = vmatprep.subr.mxu0 0.0
      %2028 = vmatpush1.msra.mxu0 0.0
      %2029 = vmatprep.subr.mxu0 0.0
      %2030 = vmatpush1.msra.mxu0 0.0
      %2031 = vmatprep.subr.mxu0 0.0
      %2032 = vmatpush1.msra.mxu0 0.0
      %2033 = vmatprep.subr.mxu0 0.0
      %2034 = vmatpush1.msra.mxu0 0.0
      %2035 = vmatprep.subr.mxu0 0.0
      %2036 = vmatpush1.msra.mxu0 0.0
      %2037 = vmatprep.subr.mxu0 0.0
      %2038 = vmatpush1.msra.mxu0 0.0
      %2039 = vmatprep.mubr.f32.mxu0 0.0
      %2040 = vmatmul.mubr.f32.gmra.mrb[0].mxu0 %v1973
      %v2041 = vpop.f32.mrb[0].mxu0
      %v2042 = vadd.f32 0.0, %v2041
      %v2043 = vpop.f32.mrb[0].mxu0
      %2044 = vdwg.mxu0
      %v2045 = vadd.f32 %v1966, %v2042
      %v2046 = vld [vmem:[#allocation3 + $0x3] sm:$0x1]
      %v2047 = vld [vmem:[%s5 + $0x30] sm:$0xff]
      %v2048 = vld [vmem:[%s5 + $0x38] sm:$0xff]
      %v2050 = vsel %vm1745, %v2046, 0
      %2052 = vmatprep.subr.mxu0 0.0
      %2053 = vmatpush1.msra.mxu0 %v2047
      %2054 = vmatprep.subr.mxu0 0.0
      %2055 = vmatpush1.msra.mxu0 %v2048
      %2056 = vmatprep.subr.mxu0 0.0
      %2057 = vmatpush1.msra.mxu0 0.0
      %2058 = vmatprep.subr.mxu0 0.0
      %2059 = vmatpush1.msra.mxu0 0.0
      %2060 = vmatprep.subr.mxu0 0.0
      %2061 = vmatpush1.msra.mxu0 0.0
      %2062 = vmatprep.subr.mxu0 0.0
      %2063 = vmatpush1.msra.mxu0 0.0
      %2064 = vmatprep.subr.mxu0 0.0
      %2065 = vmatpush1.msra.mxu0 0.0
      %2066 = vmatprep.subr.mxu0 0.0
      %2067 = vmatpush1.msra.mxu0 0.0
      %2068 = vmatprep.subr.mxu0 0.0
      %2069 = vmatpush1.msra.mxu0 0.0
      %2070 = vmatprep.subr.mxu0 0.0
      %2071 = vmatpush1.msra.mxu0 0.0
      %2072 = vmatprep.subr.mxu0 0.0
      %2073 = vmatpush1.msra.mxu0 0.0
      %2074 = vmatprep.subr.mxu0 0.0
      %2075 = vmatpush1.msra.mxu0 0.0
      %2076 = vmatprep.subr.mxu0 0.0
      %2077 = vmatpush1.msra.mxu0 0.0
      %2078 = vmatprep.subr.mxu0 0.0
      %2079 = vmatpush1.msra.mxu0 0.0
      %2080 = vmatprep.subr.mxu0 0.0
      %2081 = vmatpush1.msra.mxu0 0.0
      %2082 = vmatprep.subr.mxu0 0.0
      %2083 = vmatpush1.msra.mxu0 0.0
      %2084 = vmatprep.subr.mxu0 0.0
      %2085 = vmatpush1.msra.mxu0 0.0
      %2086 = vmatprep.subr.mxu0 0.0
      %2087 = vmatpush1.msra.mxu0 0.0
      %2088 = vmatprep.subr.mxu0 0.0
      %2089 = vmatpush1.msra.mxu0 0.0
      %2090 = vmatprep.subr.mxu0 0.0
      %2091 = vmatpush1.msra.mxu0 0.0
      %2092 = vmatprep.subr.mxu0 0.0
      %2093 = vmatpush1.msra.mxu0 0.0
      %2094 = vmatprep.subr.mxu0 0.0
      %2095 = vmatpush1.msra.mxu0 0.0
      %2096 = vmatprep.subr.mxu0 0.0
      %2097 = vmatpush1.msra.mxu0 0.0
      %2098 = vmatprep.subr.mxu0 0.0
      %2099 = vmatpush1.msra.mxu0 0.0
      %2100 = vmatprep.subr.mxu0 0.0
      %2101 = vmatpush1.msra.mxu0 0.0
      %2102 = vmatprep.subr.mxu0 0.0
      %2103 = vmatpush1.msra.mxu0 0.0
      %2104 = vmatprep.subr.mxu0 0.0
      %2105 = vmatpush1.msra.mxu0 0.0
      %2106 = vmatprep.subr.mxu0 0.0
      %2107 = vmatpush1.msra.mxu0 0.0
      %2108 = vmatprep.subr.mxu0 0.0
      %2109 = vmatpush1.msra.mxu0 0.0
      %2110 = vmatprep.subr.mxu0 0.0
      %2111 = vmatpush1.msra.mxu0 0.0
      %2112 = vmatprep.subr.mxu0 0.0
      %2113 = vmatpush1.msra.mxu0 0.0
      %2114 = vmatprep.subr.mxu0 0.0
      %2115 = vmatpush1.msra.mxu0 0.0
      %2116 = vmatprep.mubr.f32.mxu0 0.0
      %2117 = vmatmul.mubr.f32.gmra.mrb[0].mxu0 %v2050
      %v2118 = vpop.f32.mrb[0].mxu0
      %v2119 = vadd.f32 0.0, %v2118
      %v2120 = vpop.f32.mrb[0].mxu0
      %2121 = vdwg.mxu0
      %v2122 = vadd.f32 %v2045, %v2119
      %v2123 = vld [vmem:[#allocation3 + $0x4] sm:$0x1]
      %v2124 = vld [vmem:[%s5 + $0x40] sm:$0xff]
      %v2125 = vld [vmem:[%s5 + $0x48] sm:$0xff]
      %v2127 = vsel %vm1745, %v2123, 0
      %2129 = vmatprep.subr.mxu0 0.0
      %2130 = vmatpush1.msra.mxu0 %v2124
      %2131 = vmatprep.subr.mxu0 0.0
      %2132 = vmatpush1.msra.mxu0 %v2125
      %2133 = vmatprep.subr.mxu0 0.0
      %2134 = vmatpush1.msra.mxu0 0.0
      %2135 = vmatprep.subr.mxu0 0.0
      %2136 = vmatpush1.msra.mxu0 0.0
      %2137 = vmatprep.subr.mxu0 0.0
      %2138 = vmatpush1.msra.mxu0 0.0
      %2139 = vmatprep.subr.mxu0 0.0
      %2140 = vmatpush1.msra.mxu0 0.0
      %2141 = vmatprep.subr.mxu0 0.0
      %2142 = vmatpush1.msra.mxu0 0.0
      %2143 = vmatprep.subr.mxu0 0.0
      %2144 = vmatpush1.msra.mxu0 0.0
      %2145 = vmatprep.subr.mxu0 0.0
      %2146 = vmatpush1.msra.mxu0 0.0
      %2147 = vmatprep.subr.mxu0 0.0
      %2148 = vmatpush1.msra.mxu0 0.0
      %2149 = vmatprep.subr.mxu0 0.0
      %2150 = vmatpush1.msra.mxu0 0.0
      %2151 = vmatprep.subr.mxu0 0.0
      %2152 = vmatpush1.msra.mxu0 0.0
      %2153 = vmatprep.subr.mxu0 0.0
      %2154 = vmatpush1.msra.mxu0 0.0
      %2155 = vmatprep.subr.mxu0 0.0
      %2156 = vmatpush1.msra.mxu0 0.0
      %2157 = vmatprep.subr.mxu0 0.0
      %2158 = vmatpush1.msra.mxu0 0.0
      %2159 = vmatprep.subr.mxu0 0.0
      %2160 = vmatpush1.msra.mxu0 0.0
      %2161 = vmatprep.subr.mxu0 0.0
      %2162 = vmatpush1.msra.mxu0 0.0
      %2163 = vmatprep.subr.mxu0 0.0
      %2164 = vmatpush1.msra.mxu0 0.0
      %2165 = vmatprep.subr.mxu0 0.0
      %2166 = vmatpush1.msra.mxu0 0.0
      %2167 = vmatprep.subr.mxu0 0.0
      %2168 = vmatpush1.msra.mxu0 0.0
      %2169 = vmatprep.subr.mxu0 0.0
      %2170 = vmatpush1.msra.mxu0 0.0
      %2171 = vmatprep.subr.mxu0 0.0
      %2172 = vmatpush1.msra.mxu0 0.0
      %2173 = vmatprep.subr.mxu0 0.0
      %2174 = vmatpush1.msra.mxu0 0.0
      %2175 = vmatprep.subr.mxu0 0.0
      %2176 = vmatpush1.msra.mxu0 0.0
      %2177 = vmatprep.subr.mxu0 0.0
      %2178 = vmatpush1.msra.mxu0 0.0
      %2179 = vmatprep.subr.mxu0 0.0
      %2180 = vmatpush1.msra.mxu0 0.0
      %2181 = vmatprep.subr.mxu0 0.0
      %2182 = vmatpush1.msra.mxu0 0.0
      %2183 = vmatprep.subr.mxu0 0.0
      %2184 = vmatpush1.msra.mxu0 0.0
      %2185 = vmatprep.subr.mxu0 0.0
      %2186 = vmatpush1.msra.mxu0 0.0
      %2187 = vmatprep.subr.mxu0 0.0
      %2188 = vmatpush1.msra.mxu0 0.0
      %2189 = vmatprep.subr.mxu0 0.0
      %2190 = vmatpush1.msra.mxu0 0.0
      %2191 = vmatprep.subr.mxu0 0.0
      %2192 = vmatpush1.msra.mxu0 0.0
      %2193 = vmatprep.mubr.f32.mxu0 0.0
      %2194 = vmatmul.mubr.f32.gmra.mrb[0].mxu0 %v2127
      %v2195 = vpop.f32.mrb[0].mxu0
      %v2196 = vadd.f32 0.0, %v2195
      %v2197 = vpop.f32.mrb[0].mxu0
      %2198 = vdwg.mxu0
      %v2199 = vadd.f32 %v2122, %v2196
      %v2200 = vld [vmem:[#allocation3 + $0x7] sm:$0x1]
      %v2201 = vld [vmem:[%s5 + $0x50] sm:$0xff]
      %v2202 = vld [vmem:[%s5 + $0x58] sm:$0xff]
      %v2204 = vsel %vm1745, %v2200, 0
      %2206 = vmatprep.subr.mxu0 0.0
      %2207 = vmatpush1.msra.mxu0 %v2201
      %2208 = vmatprep.subr.mxu0 0.0
      %2209 = vmatpush1.msra.mxu0 %v2202
      %2210 = vmatprep.subr.mxu0 0.0
      %2211 = vmatpush1.msra.mxu0 0.0
      %2212 = vmatprep.subr.mxu0 0.0
      %2213 = vmatpush1.msra.mxu0 0.0
      %2214 = vmatprep.subr.mxu0 0.0
      %2215 = vmatpush1.msra.mxu0 0.0
      %2216 = vmatprep.subr.mxu0 0.0
      %2217 = vmatpush1.msra.mxu0 0.0
      %2218 = vmatprep.subr.mxu0 0.0
      %2219 = vmatpush1.msra.mxu0 0.0
      %2220 = vmatprep.subr.mxu0 0.0
      %2221 = vmatpush1.msra.mxu0 0.0
      %2222 = vmatprep.subr.mxu0 0.0
      %2223 = vmatpush1.msra.mxu0 0.0
      %2224 = vmatprep.subr.mxu0 0.0
      %2225 = vmatpush1.msra.mxu0 0.0
      %2226 = vmatprep.subr.mxu0 0.0
      %2227 = vmatpush1.msra.mxu0 0.0
      %2228 = vmatprep.subr.mxu0 0.0
      %2229 = vmatpush1.msra.mxu0 0.0
      %2230 = vmatprep.subr.mxu0 0.0
      %2231 = vmatpush1.msra.mxu0 0.0
      %2232 = vmatprep.subr.mxu0 0.0
      %2233 = vmatpush1.msra.mxu0 0.0
      %2234 = vmatprep.subr.mxu0 0.0
      %2235 = vmatpush1.msra.mxu0 0.0
      %2236 = vmatprep.subr.mxu0 0.0
      %2237 = vmatpush1.msra.mxu0 0.0
      %2238 = vmatprep.subr.mxu0 0.0
      %2239 = vmatpush1.msra.mxu0 0.0
      %2240 = vmatprep.subr.mxu0 0.0
      %2241 = vmatpush1.msra.mxu0 0.0
      %2242 = vmatprep.subr.mxu0 0.0
      %2243 = vmatpush1.msra.mxu0 0.0
      %2244 = vmatprep.subr.mxu0 0.0
      %2245 = vmatpush1.msra.mxu0 0.0
      %2246 = vmatprep.subr.mxu0 0.0
      %2247 = vmatpush1.msra.mxu0 0.0
      %2248 = vmatprep.subr.mxu0 0.0
      %2249 = vmatpush1.msra.mxu0 0.0
      %2250 = vmatprep.subr.mxu0 0.0
      %2251 = vmatpush1.msra.mxu0 0.0
      %2252 = vmatprep.subr.mxu0 0.0
      %2253 = vmatpush1.msra.mxu0 0.0
      %2254 = vmatprep.subr.mxu0 0.0
      %2255 = vmatpush1.msra.mxu0 0.0
      %2256 = vmatprep.subr.mxu0 0.0
      %2257 = vmatpush1.msra.mxu0 0.0
      %2258 = vmatprep.subr.mxu0 0.0
      %2259 = vmatpush1.msra.mxu0 0.0
      %2260 = vmatprep.subr.mxu0 0.0
      %2261 = vmatpush1.msra.mxu0 0.0
      %2262 = vmatprep.subr.mxu0 0.0
      %2263 = vmatpush1.msra.mxu0 0.0
      %2264 = vmatprep.subr.mxu0 0.0
      %2265 = vmatpush1.msra.mxu0 0.0
      %2266 = vmatprep.subr.mxu0 0.0
      %2267 = vmatpush1.msra.mxu0 0.0
      %2268 = vmatprep.subr.mxu0 0.0
      %2269 = vmatpush1.msra.mxu0 0.0
      %2270 = vmatprep.mubr.f32.mxu0 0.0
      %2271 = vmatmul.mubr.f32.gmra.mrb[0].mxu0 %v2204
      %v2272 = vpop.f32.mrb[0].mxu0
      %v2273 = vadd.f32 0.0, %v2272
      %v2274 = vpop.f32.mrb[0].mxu0
      %2275 = vdwg.mxu0
      %v2276 = vadd.f32 %v2199, %v2273
      %v2277 = vld [vmem:[#allocation3 + $0x8] sm:$0x1]
      %v2278 = vld [vmem:[%s5 + $0x60] sm:$0xff]
      %v2279 = vld [vmem:[%s5 + $0x68] sm:$0xff]
      %v2281 = vsel %vm1745, %v2277, 0
      %2283 = vmatprep.subr.mxu0 0.0
      %2284 = vmatpush1.msra.mxu0 %v2278
      %2285 = vmatprep.subr.mxu0 0.0
      %2286 = vmatpush1.msra.mxu0 %v2279
      %2287 = vmatprep.subr.mxu0 0.0
      %2288 = vmatpush1.msra.mxu0 0.0
      %2289 = vmatprep.subr.mxu0 0.0
      %2290 = vmatpush1.msra.mxu0 0.0
      %2291 = vmatprep.subr.mxu0 0.0
      %2292 = vmatpush1.msra.mxu0 0.0
      %2293 = vmatprep.subr.mxu0 0.0
      %2294 = vmatpush1.msra.mxu0 0.0
      %2295 = vmatprep.subr.mxu0 0.0
      %2296 = vmatpush1.msra.mxu0 0.0
      %2297 = vmatprep.subr.mxu0 0.0
      %2298 = vmatpush1.msra.mxu0 0.0
      %2299 = vmatprep.subr.mxu0 0.0
      %2300 = vmatpush1.msra.mxu0 0.0
      %2301 = vmatprep.subr.mxu0 0.0
      %2302 = vmatpush1.msra.mxu0 0.0
      %2303 = vmatprep.subr.mxu0 0.0
      %2304 = vmatpush1.msra.mxu0 0.0
      %2305 = vmatprep.subr.mxu0 0.0
      %2306 = vmatpush1.msra.mxu0 0.0
      %2307 = vmatprep.subr.mxu0 0.0
      %2308 = vmatpush1.msra.mxu0 0.0
      %2309 = vmatprep.subr.mxu0 0.0
      %2310 = vmatpush1.msra.mxu0 0.0
      %2311 = vmatprep.subr.mxu0 0.0
      %2312 = vmatpush1.msra.mxu0 0.0
      %2313 = vmatprep.subr.mxu0 0.0
      %2314 = vmatpush1.msra.mxu0 0.0
      %2315 = vmatprep.subr.mxu0 0.0
      %2316 = vmatpush1.msra.mxu0 0.0
      %2317 = vmatprep.subr.mxu0 0.0
      %2318 = vmatpush1.msra.mxu0 0.0
      %2319 = vmatprep.subr.mxu0 0.0
      %2320 = vmatpush1.msra.mxu0 0.0
      %2321 = vmatprep.subr.mxu0 0.0
      %2322 = vmatpush1.msra.mxu0 0.0
      %2323 = vmatprep.subr.mxu0 0.0
      %2324 = vmatpush1.msra.mxu0 0.0
      %2325 = vmatprep.subr.mxu0 0.0
      %2326 = vmatpush1.msra.mxu0 0.0
      %2327 = vmatprep.subr.mxu0 0.0
      %2328 = vmatpush1.msra.mxu0 0.0
      %2329 = vmatprep.subr.mxu0 0.0
      %2330 = vmatpush1.msra.mxu0 0.0
      %2331 = vmatprep.subr.mxu0 0.0
      %2332 = vmatpush1.msra.mxu0 0.0
      %2333 = vmatprep.subr.mxu0 0.0
      %2334 = vmatpush1.msra.mxu0 0.0
      %2335 = vmatprep.subr.mxu0 0.0
      %2336 = vmatpush1.msra.mxu0 0.0
      %2337 = vmatprep.subr.mxu0 0.0
      %2338 = vmatpush1.msra.mxu0 0.0
      %2339 = vmatprep.subr.mxu0 0.0
      %2340 = vmatpush1.msra.mxu0 0.0
      %2341 = vmatprep.subr.mxu0 0.0
      %2342 = vmatpush1.msra.mxu0 0.0
      %2343 = vmatprep.subr.mxu0 0.0
      %2344 = vmatpush1.msra.mxu0 0.0
      %2345 = vmatprep.subr.mxu0 0.0
      %2346 = vmatpush1.msra.mxu0 0.0
      %2347 = vmatprep.mubr.f32.mxu0 0.0
      %2348 = vmatmul.mubr.f32.gmra.mrb[0].mxu0 %v2281
      %v2349 = vpop.f32.mrb[0].mxu0
      %v2350 = vadd.f32 0.0, %v2349
      %v2351 = vpop.f32.mrb[0].mxu0
      %2352 = vdwg.mxu0
      %v2353 = vadd.f32 %v2276, %v2350
      %v2354 = vld [vmem:[#allocation3 + $0x9] sm:$0x1]
      %v2355 = vld [vmem:[%s5 + $0x70] sm:$0xff]
      %v2356 = vld [vmem:[%s5 + $0x78] sm:$0xff]
      %v2358 = vsel %vm1745, %v2354, 0
      %2360 = vmatprep.subr.mxu0 0.0
      %2361 = vmatpush1.msra.mxu0 %v2355
      %2362 = vmatprep.subr.mxu0 0.0
      %2363 = vmatpush1.msra.mxu0 %v2356
      %2364 = vmatprep.subr.mxu0 0.0
      %2365 = vmatpush1.msra.mxu0 0.0
      %2366 = vmatprep.subr.mxu0 0.0
      %2367 = vmatpush1.msra.mxu0 0.0
      %2368 = vmatprep.subr.mxu0 0.0
      %2369 = vmatpush1.msra.mxu0 0.0
      %2370 = vmatprep.subr.mxu0 0.0
      %2371 = vmatpush1.msra.mxu0 0.0
      %2372 = vmatprep.subr.mxu0 0.0
      %2373 = vmatpush1.msra.mxu0 0.0
      %2374 = vmatprep.subr.mxu0 0.0
      %2375 = vmatpush1.msra.mxu0 0.0
      %2376 = vmatprep.subr.mxu0 0.0
      %2377 = vmatpush1.msra.mxu0 0.0
      %2378 = vmatprep.subr.mxu0 0.0
      %2379 = vmatpush1.msra.mxu0 0.0
      %2380 = vmatprep.subr.mxu0 0.0
      %2381 = vmatpush1.msra.mxu0 0.0
      %2382 = vmatprep.subr.mxu0 0.0
      %2383 = vmatpush1.msra.mxu0 0.0
      %2384 = vmatprep.subr.mxu0 0.0
      %2385 = vmatpush1.msra.mxu0 0.0
      %2386 = vmatprep.subr.mxu0 0.0
      %2387 = vmatpush1.msra.mxu0 0.0
      %2388 = vmatprep.subr.mxu0 0.0
      %2389 = vmatpush1.msra.mxu0 0.0
      %2390 = vmatprep.subr.mxu0 0.0
      %2391 = vmatpush1.msra.mxu0 0.0
      %2392 = vmatprep.subr.mxu0 0.0
      %2393 = vmatpush1.msra.mxu0 0.0
      %2394 = vmatprep.subr.mxu0 0.0
      %2395 = vmatpush1.msra.mxu0 0.0
      %2396 = vmatprep.subr.mxu0 0.0
      %2397 = vmatpush1.msra.mxu0 0.0
      %2398 = vmatprep.subr.mxu0 0.0
      %2399 = vmatpush1.msra.mxu0 0.0
      %2400 = vmatprep.subr.mxu0 0.0
      %2401 = vmatpush1.msra.mxu0 0.0
      %2402 = vmatprep.subr.mxu0 0.0
      %2403 = vmatpush1.msra.mxu0 0.0
      %2404 = vmatprep.subr.mxu0 0.0
      %2405 = vmatpush1.msra.mxu0 0.0
      %2406 = vmatprep.subr.mxu0 0.0
      %2407 = vmatpush1.msra.mxu0 0.0
      %2408 = vmatprep.subr.mxu0 0.0
      %2409 = vmatpush1.msra.mxu0 0.0
      %2410 = vmatprep.subr.mxu0 0.0
      %2411 = vmatpush1.msra.mxu0 0.0
      %2412 = vmatprep.subr.mxu0 0.0
      %2413 = vmatpush1.msra.mxu0 0.0
      %2414 = vmatprep.subr.mxu0 0.0
      %2415 = vmatpush1.msra.mxu0 0.0
      %2416 = vmatprep.subr.mxu0 0.0
      %2417 = vmatpush1.msra.mxu0 0.0
      %2418 = vmatprep.subr.mxu0 0.0
      %2419 = vmatpush1.msra.mxu0 0.0
      %2420 = vmatprep.subr.mxu0 0.0
      %2421 = vmatpush1.msra.mxu0 0.0
      %2422 = vmatprep.subr.mxu0 0.0
      %2423 = vmatpush1.msra.mxu0 0.0
      %2424 = vmatprep.mubr.f32.mxu0 0.0
      %2425 = vmatmul.mubr.f32.gmra.mrb[0].mxu0 %v2358
      %v2426 = vpop.f32.mrb[0].mxu0
      %v2427 = vadd.f32 0.0, %v2426
      %v2428 = vpop.f32.mrb[0].mxu0
      %2429 = vdwg.mxu0
      %v2430 = vadd.f32 %v2353, %v2427
      %v2431 = vld [vmem:[#allocation3 + $0xa] sm:$0x1]
      %v2432 = vld [vmem:[%s5 + $0x80] sm:$0xff]
      %v2433 = vld [vmem:[%s5 + $0x88] sm:$0xff]
      %v2435 = vsel %vm1745, %v2431, 0
      %2437 = vmatprep.subr.mxu0 0.0
      %2438 = vmatpush1.msra.mxu0 %v2432
      %2439 = vmatprep.subr.mxu0 0.0
      %2440 = vmatpush1.msra.mxu0 %v2433
      %2441 = vmatprep.subr.mxu0 0.0
      %2442 = vmatpush1.msra.mxu0 0.0
      %2443 = vmatprep.subr.mxu0 0.0
      %2444 = vmatpush1.msra.mxu0 0.0
      %2445 = vmatprep.subr.mxu0 0.0
      %2446 = vmatpush1.msra.mxu0 0.0
      %2447 = vmatprep.subr.mxu0 0.0
      %2448 = vmatpush1.msra.mxu0 0.0
      %2449 = vmatprep.subr.mxu0 0.0
      %2450 = vmatpush1.msra.mxu0 0.0
      %2451 = vmatprep.subr.mxu0 0.0
      %2452 = vmatpush1.msra.mxu0 0.0
      %2453 = vmatprep.subr.mxu0 0.0
      %2454 = vmatpush1.msra.mxu0 0.0
      %2455 = vmatprep.subr.mxu0 0.0
      %2456 = vmatpush1.msra.mxu0 0.0
      %2457 = vmatprep.subr.mxu0 0.0
      %2458 = vmatpush1.msra.mxu0 0.0
      %2459 = vmatprep.subr.mxu0 0.0
      %2460 = vmatpush1.msra.mxu0 0.0
      %2461 = vmatprep.subr.mxu0 0.0
      %2462 = vmatpush1.msra.mxu0 0.0
      %2463 = vmatprep.subr.mxu0 0.0
      %2464 = vmatpush1.msra.mxu0 0.0
      %2465 = vmatprep.subr.mxu0 0.0
      %2466 = vmatpush1.msra.mxu0 0.0
      %2467 = vmatprep.subr.mxu0 0.0
      %2468 = vmatpush1.msra.mxu0 0.0
      %2469 = vmatprep.subr.mxu0 0.0
      %2470 = vmatpush1.msra.mxu0 0.0
      %2471 = vmatprep.subr.mxu0 0.0
      %2472 = vmatpush1.msra.mxu0 0.0
      %2473 = vmatprep.subr.mxu0 0.0
      %2474 = vmatpush1.msra.mxu0 0.0
      %2475 = vmatprep.subr.mxu0 0.0
      %2476 = vmatpush1.msra.mxu0 0.0
      %2477 = vmatprep.subr.mxu0 0.0
      %2478 = vmatpush1.msra.mxu0 0.0
      %2479 = vmatprep.subr.mxu0 0.0
      %2480 = vmatpush1.msra.mxu0 0.0
      %2481 = vmatprep.subr.mxu0 0.0
      %2482 = vmatpush1.msra.mxu0 0.0
      %2483 = vmatprep.subr.mxu0 0.0
      %2484 = vmatpush1.msra.mxu0 0.0
      %2485 = vmatprep.subr.mxu0 0.0
      %2486 = vmatpush1.msra.mxu0 0.0
      %2487 = vmatprep.subr.mxu0 0.0
      %2488 = vmatpush1.msra.mxu0 0.0
      %2489 = vmatprep.subr.mxu0 0.0
      %2490 = vmatpush1.msra.mxu0 0.0
      %2491 = vmatprep.subr.mxu0 0.0
      %2492 = vmatpush1.msra.mxu0 0.0
      %2493 = vmatprep.subr.mxu0 0.0
      %2494 = vmatpush1.msra.mxu0 0.0
      %2495 = vmatprep.subr.mxu0 0.0
      %2496 = vmatpush1.msra.mxu0 0.0
      %2497 = vmatprep.subr.mxu0 0.0
      %2498 = vmatpush1.msra.mxu0 0.0
      %2499 = vmatprep.subr.mxu0 0.0
      %2500 = vmatpush1.msra.mxu0 0.0
      %2501 = vmatprep.mubr.f32.mxu0 0.0
      %2502 = vmatmul.mubr.f32.gmra.mrb[0].mxu0 %v2435
      %v2503 = vpop.f32.mrb[0].mxu0
      %v2504 = vadd.f32 0.0, %v2503
      %v2505 = vpop.f32.mrb[0].mxu0
      %2506 = vdwg.mxu0
      %v2507 = vadd.f32 %v2430, %v2504
      %v2508 = vld [vmem:[#allocation3 + $0xb] sm:$0x1]
      %v2509 = vld [vmem:[%s5 + $0x90] sm:$0xff]
      %v2510 = vld [vmem:[%s5 + $0x98] sm:$0xff]
      %v2512 = vsel %vm1745, %v2508, 0
      %2514 = vmatprep.subr.mxu0 0.0
      %2515 = vmatpush1.msra.mxu0 %v2509
      %2516 = vmatprep.subr.mxu0 0.0
      %2517 = vmatpush1.msra.mxu0 %v2510
      %2518 = vmatprep.subr.mxu0 0.0
      %2519 = vmatpush1.msra.mxu0 0.0
      %2520 = vmatprep.subr.mxu0 0.0
      %2521 = vmatpush1.msra.mxu0 0.0
      %2522 = vmatprep.subr.mxu0 0.0
      %2523 = vmatpush1.msra.mxu0 0.0
      %2524 = vmatprep.subr.mxu0 0.0
      %2525 = vmatpush1.msra.mxu0 0.0
      %2526 = vmatprep.subr.mxu0 0.0
      %2527 = vmatpush1.msra.mxu0 0.0
      %2528 = vmatprep.subr.mxu0 0.0
      %2529 = vmatpush1.msra.mxu0 0.0
      %2530 = vmatprep.subr.mxu0 0.0
      %2531 = vmatpush1.msra.mxu0 0.0
      %2532 = vmatprep.subr.mxu0 0.0
      %2533 = vmatpush1.msra.mxu0 0.0
      %2534 = vmatprep.subr.mxu0 0.0
      %2535 = vmatpush1.msra.mxu0 0.0
      %2536 = vmatprep.subr.mxu0 0.0
      %2537 = vmatpush1.msra.mxu0 0.0
      %2538 = vmatprep.subr.mxu0 0.0
      %2539 = vmatpush1.msra.mxu0 0.0
      %2540 = vmatprep.subr.mxu0 0.0
      %2541 = vmatpush1.msra.mxu0 0.0
      %2542 = vmatprep.subr.mxu0 0.0
      %2543 = vmatpush1.msra.mxu0 0.0
      %2544 = vmatprep.subr.mxu0 0.0
      %2545 = vmatpush1.msra.mxu0 0.0
      %2546 = vmatprep.subr.mxu0 0.0
      %2547 = vmatpush1.msra.mxu0 0.0
      %2548 = vmatprep.subr.mxu0 0.0
      %2549 = vmatpush1.msra.mxu0 0.0
      %2550 = vmatprep.subr.mxu0 0.0
      %2551 = vmatpush1.msra.mxu0 0.0
      %2552 = vmatprep.subr.mxu0 0.0
      %2553 = vmatpush1.msra.mxu0 0.0
      %2554 = vmatprep.subr.mxu0 0.0
      %2555 = vmatpush1.msra.mxu0 0.0
      %2556 = vmatprep.subr.mxu0 0.0
      %2557 = vmatpush1.msra.mxu0 0.0
      %2558 = vmatprep.subr.mxu0 0.0
      %2559 = vmatpush1.msra.mxu0 0.0
      %2560 = vmatprep.subr.mxu0 0.0
      %2561 = vmatpush1.msra.mxu0 0.0
      %2562 = vmatprep.subr.mxu0 0.0
      %2563 = vmatpush1.msra.mxu0 0.0
      %2564 = vmatprep.subr.mxu0 0.0
      %2565 = vmatpush1.msra.mxu0 0.0
      %2566 = vmatprep.subr.mxu0 0.0
      %2567 = vmatpush1.msra.mxu0 0.0
      %2568 = vmatprep.subr.mxu0 0.0
      %2569 = vmatpush1.msra.mxu0 0.0
      %2570 = vmatprep.subr.mxu0 0.0
      %2571 = vmatpush1.msra.mxu0 0.0
      %2572 = vmatprep.subr.mxu0 0.0
      %2573 = vmatpush1.msra.mxu0 0.0
      %2574 = vmatprep.subr.mxu0 0.0
      %2575 = vmatpush1.msra.mxu0 0.0
      %2576 = vmatprep.subr.mxu0 0.0
      %2577 = vmatpush1.msra.mxu0 0.0
      %2578 = vmatprep.mubr.f32.mxu0 0.0
      %2579 = vmatmul.mubr.f32.gmra.mrb[0].mxu0 %v2512
      %v2580 = vpop.f32.mrb[0].mxu0
      %v2581 = vadd.f32 0.0, %v2580
      %v2582 = vpop.f32.mrb[0].mxu0
      %2583 = vdwg.mxu0
      %v2584 = vadd.f32 %v2507, %v2581
      %v2585 = vld [vmem:[#allocation3 + $0xe] sm:$0x1]
      %v2586 = vld [vmem:[%s5 + $0xa0] sm:$0xff]
      %v2587 = vld [vmem:[%s5 + $0xa8] sm:$0xff]
      %v2589 = vsel %vm1745, %v2585, 0
      %2591 = vmatprep.subr.mxu0 0.0
      %2592 = vmatpush1.msra.mxu0 %v2586
      %2593 = vmatprep.subr.mxu0 0.0
      %2594 = vmatpush1.msra.mxu0 %v2587
      %2595 = vmatprep.subr.mxu0 0.0
      %2596 = vmatpush1.msra.mxu0 0.0
      %2597 = vmatprep.subr.mxu0 0.0
      %2598 = vmatpush1.msra.mxu0 0.0
      %2599 = vmatprep.subr.mxu0 0.0
      %2600 = vmatpush1.msra.mxu0 0.0
      %2601 = vmatprep.subr.mxu0 0.0
      %2602 = vmatpush1.msra.mxu0 0.0
      %2603 = vmatprep.subr.mxu0 0.0
      %2604 = vmatpush1.msra.mxu0 0.0
      %2605 = vmatprep.subr.mxu0 0.0
      %2606 = vmatpush1.msra.mxu0 0.0
      %2607 = vmatprep.subr.mxu0 0.0
      %2608 = vmatpush1.msra.mxu0 0.0
      %2609 = vmatprep.subr.mxu0 0.0
      %2610 = vmatpush1.msra.mxu0 0.0
      %2611 = vmatprep.subr.mxu0 0.0
      %2612 = vmatpush1.msra.mxu0 0.0
      %2613 = vmatprep.subr.mxu0 0.0
      %2614 = vmatpush1.msra.mxu0 0.0
      %2615 = vmatprep.subr.mxu0 0.0
      %2616 = vmatpush1.msra.mxu0 0.0
      %2617 = vmatprep.subr.mxu0 0.0
      %2618 = vmatpush1.msra.mxu0 0.0
      %2619 = vmatprep.subr.mxu0 0.0
      %2620 = vmatpush1.msra.mxu0 0.0
      %2621 = vmatprep.subr.mxu0 0.0
      %2622 = vmatpush1.msra.mxu0 0.0
      %2623 = vmatprep.subr.mxu0 0.0
      %2624 = vmatpush1.msra.mxu0 0.0
      %2625 = vmatprep.subr.mxu0 0.0
      %2626 = vmatpush1.msra.mxu0 0.0
      %2627 = vmatprep.subr.mxu0 0.0
      %2628 = vmatpush1.msra.mxu0 0.0
      %2629 = vmatprep.subr.mxu0 0.0
      %2630 = vmatpush1.msra.mxu0 0.0
      %2631 = vmatprep.subr.mxu0 0.0
      %2632 = vmatpush1.msra.mxu0 0.0
      %2633 = vmatprep.subr.mxu0 0.0
      %2634 = vmatpush1.msra.mxu0 0.0
      %2635 = vmatprep.subr.mxu0 0.0
      %2636 = vmatpush1.msra.mxu0 0.0
      %2637 = vmatprep.subr.mxu0 0.0
      %2638 = vmatpush1.msra.mxu0 0.0
      %2639 = vmatprep.subr.mxu0 0.0
      %2640 = vmatpush1.msra.mxu0 0.0
      %2641 = vmatprep.subr.mxu0 0.0
      %2642 = vmatpush1.msra.mxu0 0.0
      %2643 = vmatprep.subr.mxu0 0.0
      %2644 = vmatpush1.msra.mxu0 0.0
      %2645 = vmatprep.subr.mxu0 0.0
      %2646 = vmatpush1.msra.mxu0 0.0
      %2647 = vmatprep.subr.mxu0 0.0
      %2648 = vmatpush1.msra.mxu0 0.0
      %2649 = vmatprep.subr.mxu0 0.0
      %2650 = vmatpush1.msra.mxu0 0.0
      %2651 = vmatprep.subr.mxu0 0.0
      %2652 = vmatpush1.msra.mxu0 0.0
      %2653 = vmatprep.subr.mxu0 0.0
      %2654 = vmatpush1.msra.mxu0 0.0
      %2655 = vmatprep.mubr.f32.mxu0 0.0
      %2656 = vmatmul.mubr.f32.gmra.mrb[0].mxu0 %v2589
      %v2657 = vpop.f32.mrb[0].mxu0
      %v2658 = vadd.f32 0.0, %v2657
      %v2659 = vpop.f32.mrb[0].mxu0
      %2660 = vdwg.mxu0
      %v2661 = vadd.f32 %v2584, %v2658
      %v2662 = vld [vmem:[#allocation3 + $0xf] sm:$0x1]
      %v2663 = vld [vmem:[%s5 + $0xb0] sm:$0xff]
      %v2664 = vld [vmem:[%s5 + $0xb8] sm:$0xff]
      %v2666 = vsel %vm1745, %v2662, 0
      %2668 = vmatprep.subr.mxu0 0.0
      %2669 = vmatpush1.msra.mxu0 %v2663
      %2670 = vmatprep.subr.mxu0 0.0
      %2671 = vmatpush1.msra.mxu0 %v2664
      %2672 = vmatprep.subr.mxu0 0.0
      %2673 = vmatpush1.msra.mxu0 0.0
      %2674 = vmatprep.subr.mxu0 0.0
      %2675 = vmatpush1.msra.mxu0 0.0
      %2676 = vmatprep.subr.mxu0 0.0
      %2677 = vmatpush1.msra.mxu0 0.0
      %2678 = vmatprep.subr.mxu0 0.0
      %2679 = vmatpush1.msra.mxu0 0.0
      %2680 = vmatprep.subr.mxu0 0.0
      %2681 = vmatpush1.msra.mxu0 0.0
      %2682 = vmatprep.subr.mxu0 0.0
      %2683 = vmatpush1.msra.mxu0 0.0
      %2684 = vmatprep.subr.mxu0 0.0
      %2685 = vmatpush1.msra.mxu0 0.0
      %2686 = vmatprep.subr.mxu0 0.0
      %2687 = vmatpush1.msra.mxu0 0.0
      %2688 = vmatprep.subr.mxu0 0.0
      %2689 = vmatpush1.msra.mxu0 0.0
      %2690 = vmatprep.subr.mxu0 0.0
      %2691 = vmatpush1.msra.mxu0 0.0
      %2692 = vmatprep.subr.mxu0 0.0
      %2693 = vmatpush1.msra.mxu0 0.0
      %2694 = vmatprep.subr.mxu0 0.0
      %2695 = vmatpush1.msra.mxu0 0.0
      %2696 = vmatprep.subr.mxu0 0.0
      %2697 = vmatpush1.msra.mxu0 0.0
      %2698 = vmatprep.subr.mxu0 0.0
      %2699 = vmatpush1.msra.mxu0 0.0
      %2700 = vmatprep.subr.mxu0 0.0
      %2701 = vmatpush1.msra.mxu0 0.0
      %2702 = vmatprep.subr.mxu0 0.0
      %2703 = vmatpush1.msra.mxu0 0.0
      %2704 = vmatprep.subr.mxu0 0.0
      %2705 = vmatpush1.msra.mxu0 0.0
      %2706 = vmatprep.subr.mxu0 0.0
      %2707 = vmatpush1.msra.mxu0 0.0
      %2708 = vmatprep.subr.mxu0 0.0
      %2709 = vmatpush1.msra.mxu0 0.0
      %2710 = vmatprep.subr.mxu0 0.0
      %2711 = vmatpush1.msra.mxu0 0.0
      %2712 = vmatprep.subr.mxu0 0.0
      %2713 = vmatpush1.msra.mxu0 0.0
      %2714 = vmatprep.subr.mxu0 0.0
      %2715 = vmatpush1.msra.mxu0 0.0
      %2716 = vmatprep.subr.mxu0 0.0
      %2717 = vmatpush1.msra.mxu0 0.0
      %2718 = vmatprep.subr.mxu0 0.0
      %2719 = vmatpush1.msra.mxu0 0.0
      %2720 = vmatprep.subr.mxu0 0.0
      %2721 = vmatpush1.msra.mxu0 0.0
      %2722 = vmatprep.subr.mxu0 0.0
      %2723 = vmatpush1.msra.mxu0 0.0
      %2724 = vmatprep.subr.mxu0 0.0
      %2725 = vmatpush1.msra.mxu0 0.0
      %2726 = vmatprep.subr.mxu0 0.0
      %2727 = vmatpush1.msra.mxu0 0.0
      %2728 = vmatprep.subr.mxu0 0.0
      %2729 = vmatpush1.msra.mxu0 0.0
      %2730 = vmatprep.subr.mxu0 0.0
      %2731 = vmatpush1.msra.mxu0 0.0
      %2732 = vmatprep.mubr.f32.mxu0 0.0
      %2733 = vmatmul.mubr.f32.gmra.mrb[0].mxu0 %v2666
      %v2734 = vpop.f32.mrb[0].mxu0
      %v2735 = vadd.f32 0.0, %v2734
      %v2736 = vpop.f32.mrb[0].mxu0
      %2737 = vdwg.mxu0
      %v2738 = vadd.f32 %v2661, %v2735
      %v2739 = vld [vmem:[#allocation3 + $0x10] sm:$0x1]
      %v2740 = vld [vmem:[%s5 + $0xc0] sm:$0xff]
      %v2741 = vld [vmem:[%s5 + $0xc8] sm:$0xff]
      %v2743 = vsel %vm1745, %v2739, 0
      %2745 = vmatprep.subr.mxu0 0.0
      %2746 = vmatpush1.msra.mxu0 %v2740
      %2747 = vmatprep.subr.mxu0 0.0
      %2748 = vmatpush1.msra.mxu0 %v2741
      %2749 = vmatprep.subr.mxu0 0.0
      %2750 = vmatpush1.msra.mxu0 0.0
      %2751 = vmatprep.subr.mxu0 0.0
      %2752 = vmatpush1.msra.mxu0 0.0
      %2753 = vmatprep.subr.mxu0 0.0
      %2754 = vmatpush1.msra.mxu0 0.0
      %2755 = vmatprep.subr.mxu0 0.0
      %2756 = vmatpush1.msra.mxu0 0.0
      %2757 = vmatprep.subr.mxu0 0.0
      %2758 = vmatpush1.msra.mxu0 0.0
      %2759 = vmatprep.subr.mxu0 0.0
      %2760 = vmatpush1.msra.mxu0 0.0
      %2761 = vmatprep.subr.mxu0 0.0
      %2762 = vmatpush1.msra.mxu0 0.0
      %2763 = vmatprep.subr.mxu0 0.0
      %2764 = vmatpush1.msra.mxu0 0.0
      %2765 = vmatprep.subr.mxu0 0.0
      %2766 = vmatpush1.msra.mxu0 0.0
      %2767 = vmatprep.subr.mxu0 0.0
      %2768 = vmatpush1.msra.mxu0 0.0
      %2769 = vmatprep.subr.mxu0 0.0
      %2770 = vmatpush1.msra.mxu0 0.0
      %2771 = vmatprep.subr.mxu0 0.0
      %2772 = vmatpush1.msra.mxu0 0.0
      %2773 = vmatprep.subr.mxu0 0.0
      %2774 = vmatpush1.msra.mxu0 0.0
      %2775 = vmatprep.subr.mxu0 0.0
      %2776 = vmatpush1.msra.mxu0 0.0
      %2777 = vmatprep.subr.mxu0 0.0
      %2778 = vmatpush1.msra.mxu0 0.0
      %2779 = vmatprep.subr.mxu0 0.0
      %2780 = vmatpush1.msra.mxu0 0.0
      %2781 = vmatprep.subr.mxu0 0.0
      %2782 = vmatpush1.msra.mxu0 0.0
      %2783 = vmatprep.subr.mxu0 0.0
      %2784 = vmatpush1.msra.mxu0 0.0
      %2785 = vmatprep.subr.mxu0 0.0
      %2786 = vmatpush1.msra.mxu0 0.0
      %2787 = vmatprep.subr.mxu0 0.0
      %2788 = vmatpush1.msra.mxu0 0.0
      %2789 = vmatprep.subr.mxu0 0.0
      %2790 = vmatpush1.msra.mxu0 0.0
      %2791 = vmatprep.subr.mxu0 0.0
      %2792 = vmatpush1.msra.mxu0 0.0
      %2793 = vmatprep.subr.mxu0 0.0
      %2794 = vmatpush1.msra.mxu0 0.0
      %2795 = vmatprep.subr.mxu0 0.0
      %2796 = vmatpush1.msra.mxu0 0.0
      %2797 = vmatprep.subr.mxu0 0.0
      %2798 = vmatpush1.msra.mxu0 0.0
      %2799 = vmatprep.subr.mxu0 0.0
      %2800 = vmatpush1.msra.mxu0 0.0
      %2801 = vmatprep.subr.mxu0 0.0
      %2802 = vmatpush1.msra.mxu0 0.0
      %2803 = vmatprep.subr.mxu0 0.0
      %2804 = vmatpush1.msra.mxu0 0.0
      %2805 = vmatprep.subr.mxu0 0.0
      %2806 = vmatpush1.msra.mxu0 0.0
      %2807 = vmatprep.subr.mxu0 0.0
      %2808 = vmatpush1.msra.mxu0 0.0
      %2809 = vmatprep.mubr.f32.mxu0 0.0
      %2810 = vmatmul.mubr.f32.gmra.mrb[0].mxu0 %v2743
      %v2811 = vpop.f32.mrb[0].mxu0
      %v2812 = vadd.f32 0.0, %v2811
      %v2813 = vpop.f32.mrb[0].mxu0
      %2814 = vdwg.mxu0
      %v2815 = vadd.f32 %v2738, %v2812
      %v2816 = vld [vmem:[#allocation3 + $0x11] sm:$0x1]
      %v2817 = vld [vmem:[%s5 + $0xd0] sm:$0xff]
      %v2818 = vld [vmem:[%s5 + $0xd8] sm:$0xff]
      %v2820 = vsel %vm1745, %v2816, 0
      %2822 = vmatprep.subr.mxu0 0.0
      %2823 = vmatpush1.msra.mxu0 %v2817
      %2824 = vmatprep.subr.mxu0 0.0
      %2825 = vmatpush1.msra.mxu0 %v2818
      %2826 = vmatprep.subr.mxu0 0.0
      %2827 = vmatpush1.msra.mxu0 0.0
      %2828 = vmatprep.subr.mxu0 0.0
      %2829 = vmatpush1.msra.mxu0 0.0
      %2830 = vmatprep.subr.mxu0 0.0
      %2831 = vmatpush1.msra.mxu0 0.0
      %2832 = vmatprep.subr.mxu0 0.0
      %2833 = vmatpush1.msra.mxu0 0.0
      %2834 = vmatprep.subr.mxu0 0.0
      %2835 = vmatpush1.msra.mxu0 0.0
      %2836 = vmatprep.subr.mxu0 0.0
      %2837 = vmatpush1.msra.mxu0 0.0
      %2838 = vmatprep.subr.mxu0 0.0
      %2839 = vmatpush1.msra.mxu0 0.0
      %2840 = vmatprep.subr.mxu0 0.0
      %2841 = vmatpush1.msra.mxu0 0.0
      %2842 = vmatprep.subr.mxu0 0.0
      %2843 = vmatpush1.msra.mxu0 0.0
      %2844 = vmatprep.subr.mxu0 0.0
      %2845 = vmatpush1.msra.mxu0 0.0
      %2846 = vmatprep.subr.mxu0 0.0
      %2847 = vmatpush1.msra.mxu0 0.0
      %2848 = vmatprep.subr.mxu0 0.0
      %2849 = vmatpush1.msra.mxu0 0.0
      %2850 = vmatprep.subr.mxu0 0.0
      %2851 = vmatpush1.msra.mxu0 0.0
      %2852 = vmatprep.subr.mxu0 0.0
      %2853 = vmatpush1.msra.mxu0 0.0
      %2854 = vmatprep.subr.mxu0 0.0
      %2855 = vmatpush1.msra.mxu0 0.0
      %2856 = vmatprep.subr.mxu0 0.0
      %2857 = vmatpush1.msra.mxu0 0.0
      %2858 = vmatprep.subr.mxu0 0.0
      %2859 = vmatpush1.msra.mxu0 0.0
      %2860 = vmatprep.subr.mxu0 0.0
      %2861 = vmatpush1.msra.mxu0 0.0
      %2862 = vmatprep.subr.mxu0 0.0
      %2863 = vmatpush1.msra.mxu0 0.0
      %2864 = vmatprep.subr.mxu0 0.0
      %2865 = vmatpush1.msra.mxu0 0.0
      %2866 = vmatprep.subr.mxu0 0.0
      %2867 = vmatpush1.msra.mxu0 0.0
      %2868 = vmatprep.subr.mxu0 0.0
      %2869 = vmatpush1.msra.mxu0 0.0
      %2870 = vmatprep.subr.mxu0 0.0
      %2871 = vmatpush1.msra.mxu0 0.0
      %2872 = vmatprep.subr.mxu0 0.0
      %2873 = vmatpush1.msra.mxu0 0.0
      %2874 = vmatprep.subr.mxu0 0.0
      %2875 = vmatpush1.msra.mxu0 0.0
      %2876 = vmatprep.subr.mxu0 0.0
      %2877 = vmatpush1.msra.mxu0 0.0
      %2878 = vmatprep.subr.mxu0 0.0
      %2879 = vmatpush1.msra.mxu0 0.0
      %2880 = vmatprep.subr.mxu0 0.0
      %2881 = vmatpush1.msra.mxu0 0.0
      %2882 = vmatprep.subr.mxu0 0.0
      %2883 = vmatpush1.msra.mxu0 0.0
      %2884 = vmatprep.subr.mxu0 0.0
      %2885 = vmatpush1.msra.mxu0 0.0
      %2886 = vmatprep.mubr.f32.mxu0 0.0
      %2887 = vmatmul.mubr.f32.gmra.mrb[0].mxu0 %v2820
      %v2888 = vpop.f32.mrb[0].mxu0
      %v2889 = vadd.f32 0.0, %v2888
      %v2890 = vpop.f32.mrb[0].mxu0
      %2891 = vdwg.mxu0
      %v2892 = vadd.f32 %v2815, %v2889
      %v2893 = vld [vmem:[#allocation3 + $0x12] sm:$0x1]
      %v2894 = vld [vmem:[%s5 + $0xe0] sm:$0xff]
      %v2895 = vld [vmem:[%s5 + $0xe8] sm:$0xff]
      %v2897 = vsel %vm1745, %v2893, 0
      %2899 = vmatprep.subr.mxu0 0.0
      %2900 = vmatpush1.msra.mxu0 %v2894
      %2901 = vmatprep.subr.mxu0 0.0
      %2902 = vmatpush1.msra.mxu0 %v2895
      %2903 = vmatprep.subr.mxu0 0.0
      %2904 = vmatpush1.msra.mxu0 0.0
      %2905 = vmatprep.subr.mxu0 0.0
      %2906 = vmatpush1.msra.mxu0 0.0
      %2907 = vmatprep.subr.mxu0 0.0
      %2908 = vmatpush1.msra.mxu0 0.0
      %2909 = vmatprep.subr.mxu0 0.0
      %2910 = vmatpush1.msra.mxu0 0.0
      %2911 = vmatprep.subr.mxu0 0.0
      %2912 = vmatpush1.msra.mxu0 0.0
      %2913 = vmatprep.subr.mxu0 0.0
      %2914 = vmatpush1.msra.mxu0 0.0
      %2915 = vmatprep.subr.mxu0 0.0
      %2916 = vmatpush1.msra.mxu0 0.0
      %2917 = vmatprep.subr.mxu0 0.0
      %2918 = vmatpush1.msra.mxu0 0.0
      %2919 = vmatprep.subr.mxu0 0.0
      %2920 = vmatpush1.msra.mxu0 0.0
      %2921 = vmatprep.subr.mxu0 0.0
      %2922 = vmatpush1.msra.mxu0 0.0
      %2923 = vmatprep.subr.mxu0 0.0
      %2924 = vmatpush1.msra.mxu0 0.0
      %2925 = vmatprep.subr.mxu0 0.0
      %2926 = vmatpush1.msra.mxu0 0.0
      %2927 = vmatprep.subr.mxu0 0.0
      %2928 = vmatpush1.msra.mxu0 0.0
      %2929 = vmatprep.subr.mxu0 0.0
      %2930 = vmatpush1.msra.mxu0 0.0
      %2931 = vmatprep.subr.mxu0 0.0
      %2932 = vmatpush1.msra.mxu0 0.0
      %2933 = vmatprep.subr.mxu0 0.0
      %2934 = vmatpush1.msra.mxu0 0.0
      %2935 = vmatprep.subr.mxu0 0.0
      %2936 = vmatpush1.msra.mxu0 0.0
      %2937 = vmatprep.subr.mxu0 0.0
      %2938 = vmatpush1.msra.mxu0 0.0
      %2939 = vmatprep.subr.mxu0 0.0
      %2940 = vmatpush1.msra.mxu0 0.0
      %2941 = vmatprep.subr.mxu0 0.0
      %2942 = vmatpush1.msra.mxu0 0.0
      %2943 = vmatprep.subr.mxu0 0.0
      %2944 = vmatpush1.msra.mxu0 0.0
      %2945 = vmatprep.subr.mxu0 0.0
      %2946 = vmatpush1.msra.mxu0 0.0
      %2947 = vmatprep.subr.mxu0 0.0
      %2948 = vmatpush1.msra.mxu0 0.0
      %2949 = vmatprep.subr.mxu0 0.0
      %2950 = vmatpush1.msra.mxu0 0.0
      %2951 = vmatprep.subr.mxu0 0.0
      %2952 = vmatpush1.msra.mxu0 0.0
      %2953 = vmatprep.subr.mxu0 0.0
      %2954 = vmatpush1.msra.mxu0 0.0
      %2955 = vmatprep.subr.mxu0 0.0
      %2956 = vmatpush1.msra.mxu0 0.0
      %2957 = vmatprep.subr.mxu0 0.0
      %2958 = vmatpush1.msra.mxu0 0.0
      %2959 = vmatprep.subr.mxu0 0.0
      %2960 = vmatpush1.msra.mxu0 0.0
      %2961 = vmatprep.subr.mxu0 0.0
      %2962 = vmatpush1.msra.mxu0 0.0
      %2963 = vmatprep.mubr.f32.mxu0 0.0
      %2964 = vmatmul.mubr.f32.gmra.mrb[0].mxu0 %v2897
      %v2965 = vpop.f32.mrb[0].mxu0
      %v2966 = vadd.f32 0.0, %v2965
      %v2967 = vpop.f32.mrb[0].mxu0
      %2968 = vdwg.mxu0
      %v2969 = vadd.f32 %v2892, %v2966
      %v2970 = vld [vmem:[#allocation3 + $0x15] sm:$0x1]
      %v2971 = vld [vmem:[%s5 + $0xf0] sm:$0xff]
      %v2972 = vld [vmem:[%s5 + $0xf8] sm:$0xff]
      %v2974 = vsel %vm1745, %v2970, 0
      %2976 = vmatprep.subr.mxu0 0.0
      %2977 = vmatpush1.msra.mxu0 %v2971
      %2978 = vmatprep.subr.mxu0 0.0
      %2979 = vmatpush1.msra.mxu0 %v2972
      %2980 = vmatprep.subr.mxu0 0.0
      %2981 = vmatpush1.msra.mxu0 0.0
      %2982 = vmatprep.subr.mxu0 0.0
      %2983 = vmatpush1.msra.mxu0 0.0
      %2984 = vmatprep.subr.mxu0 0.0
      %2985 = vmatpush1.msra.mxu0 0.0
      %2986 = vmatprep.subr.mxu0 0.0
      %2987 = vmatpush1.msra.mxu0 0.0
      %2988 = vmatprep.subr.mxu0 0.0
      %2989 = vmatpush1.msra.mxu0 0.0
      %2990 = vmatprep.subr.mxu0 0.0
      %2991 = vmatpush1.msra.mxu0 0.0
      %2992 = vmatprep.subr.mxu0 0.0
      %2993 = vmatpush1.msra.mxu0 0.0
      %2994 = vmatprep.subr.mxu0 0.0
      %2995 = vmatpush1.msra.mxu0 0.0
      %2996 = vmatprep.subr.mxu0 0.0
      %2997 = vmatpush1.msra.mxu0 0.0
      %2998 = vmatprep.subr.mxu0 0.0
      %2999 = vmatpush1.msra.mxu0 0.0
      %3000 = vmatprep.subr.mxu0 0.0
      %3001 = vmatpush1.msra.mxu0 0.0
      %3002 = vmatprep.subr.mxu0 0.0
      %3003 = vmatpush1.msra.mxu0 0.0
      %3004 = vmatprep.subr.mxu0 0.0
      %3005 = vmatpush1.msra.mxu0 0.0
      %3006 = vmatprep.subr.mxu0 0.0
      %3007 = vmatpush1.msra.mxu0 0.0
      %3008 = vmatprep.subr.mxu0 0.0
      %3009 = vmatpush1.msra.mxu0 0.0
      %3010 = vmatprep.subr.mxu0 0.0
      %3011 = vmatpush1.msra.mxu0 0.0
      %3012 = vmatprep.subr.mxu0 0.0
      %3013 = vmatpush1.msra.mxu0 0.0
      %3014 = vmatprep.subr.mxu0 0.0
      %3015 = vmatpush1.msra.mxu0 0.0
      %3016 = vmatprep.subr.mxu0 0.0
      %3017 = vmatpush1.msra.mxu0 0.0
      %3018 = vmatprep.subr.mxu0 0.0
      %3019 = vmatpush1.msra.mxu0 0.0
      %3020 = vmatprep.subr.mxu0 0.0
      %3021 = vmatpush1.msra.mxu0 0.0
      %3022 = vmatprep.subr.mxu0 0.0
      %3023 = vmatpush1.msra.mxu0 0.0
      %3024 = vmatprep.subr.mxu0 0.0
      %3025 = vmatpush1.msra.mxu0 0.0
      %3026 = vmatprep.subr.mxu0 0.0
      %3027 = vmatpush1.msra.mxu0 0.0
      %3028 = vmatprep.subr.mxu0 0.0
      %3029 = vmatpush1.msra.mxu0 0.0
      %3030 = vmatprep.subr.mxu0 0.0
      %3031 = vmatpush1.msra.mxu0 0.0
      %3032 = vmatprep.subr.mxu0 0.0
      %3033 = vmatpush1.msra.mxu0 0.0
      %3034 = vmatprep.subr.mxu0 0.0
      %3035 = vmatpush1.msra.mxu0 0.0
      %3036 = vmatprep.subr.mxu0 0.0
      %3037 = vmatpush1.msra.mxu0 0.0
      %3038 = vmatprep.subr.mxu0 0.0
      %3039 = vmatpush1.msra.mxu0 0.0
      %3040 = vmatprep.mubr.f32.mxu0 0.0
      %3041 = vmatmul.mubr.f32.gmra.mrb[0].mxu0 %v2974
      %v3042 = vpop.f32.mrb[0].mxu0
      %v3043 = vadd.f32 0.0, %v3042
      %v3044 = vpop.f32.mrb[0].mxu0
      %3045 = vdwg.mxu0
      %v3046 = vadd.f32 %v2969, %v3043
      %v3047 = vld [vmem:[#allocation3 + $0x16] sm:$0x1]
      %v3048 = vld [vmem:[%s5 + $0x100] sm:$0xff]
      %v3049 = vld [vmem:[%s5 + $0x108] sm:$0xff]
      %v3051 = vsel %vm1745, %v3047, 0
      %3053 = vmatprep.subr.mxu0 0.0
      %3054 = vmatpush1.msra.mxu0 %v3048
      %3055 = vmatprep.subr.mxu0 0.0
      %3056 = vmatpush1.msra.mxu0 %v3049
      %3057 = vmatprep.subr.mxu0 0.0
      %3058 = vmatpush1.msra.mxu0 0.0
      %3059 = vmatprep.subr.mxu0 0.0
      %3060 = vmatpush1.msra.mxu0 0.0
      %3061 = vmatprep.subr.mxu0 0.0
      %3062 = vmatpush1.msra.mxu0 0.0
      %3063 = vmatprep.subr.mxu0 0.0
      %3064 = vmatpush1.msra.mxu0 0.0
      %3065 = vmatprep.subr.mxu0 0.0
      %3066 = vmatpush1.msra.mxu0 0.0
      %3067 = vmatprep.subr.mxu0 0.0
      %3068 = vmatpush1.msra.mxu0 0.0
      %3069 = vmatprep.subr.mxu0 0.0
      %3070 = vmatpush1.msra.mxu0 0.0
      %3071 = vmatprep.subr.mxu0 0.0
      %3072 = vmatpush1.msra.mxu0 0.0
      %3073 = vmatprep.subr.mxu0 0.0
      %3074 = vmatpush1.msra.mxu0 0.0
      %3075 = vmatprep.subr.mxu0 0.0
      %3076 = vmatpush1.msra.mxu0 0.0
      %3077 = vmatprep.subr.mxu0 0.0
      %3078 = vmatpush1.msra.mxu0 0.0
      %3079 = vmatprep.subr.mxu0 0.0
      %3080 = vmatpush1.msra.mxu0 0.0
      %3081 = vmatprep.subr.mxu0 0.0
      %3082 = vmatpush1.msra.mxu0 0.0
      %3083 = vmatprep.subr.mxu0 0.0
      %3084 = vmatpush1.msra.mxu0 0.0
      %3085 = vmatprep.subr.mxu0 0.0
      %3086 = vmatpush1.msra.mxu0 0.0
      %3087 = vmatprep.subr.mxu0 0.0
      %3088 = vmatpush1.msra.mxu0 0.0
      %3089 = vmatprep.subr.mxu0 0.0
      %3090 = vmatpush1.msra.mxu0 0.0
      %3091 = vmatprep.subr.mxu0 0.0
      %3092 = vmatpush1.msra.mxu0 0.0
      %3093 = vmatprep.subr.mxu0 0.0
      %3094 = vmatpush1.msra.mxu0 0.0
      %3095 = vmatprep.subr.mxu0 0.0
      %3096 = vmatpush1.msra.mxu0 0.0
      %3097 = vmatprep.subr.mxu0 0.0
      %3098 = vmatpush1.msra.mxu0 0.0
      %3099 = vmatprep.subr.mxu0 0.0
      %3100 = vmatpush1.msra.mxu0 0.0
      %3101 = vmatprep.subr.mxu0 0.0
      %3102 = vmatpush1.msra.mxu0 0.0
      %3103 = vmatprep.subr.mxu0 0.0
      %3104 = vmatpush1.msra.mxu0 0.0
      %3105 = vmatprep.subr.mxu0 0.0
      %3106 = vmatpush1.msra.mxu0 0.0
      %3107 = vmatprep.subr.mxu0 0.0
      %3108 = vmatpush1.msra.mxu0 0.0
      %3109 = vmatprep.subr.mxu0 0.0
      %3110 = vmatpush1.msra.mxu0 0.0
      %3111 = vmatprep.subr.mxu0 0.0
      %3112 = vmatpush1.msra.mxu0 0.0
      %3113 = vmatprep.subr.mxu0 0.0
      %3114 = vmatpush1.msra.mxu0 0.0
      %3115 = vmatprep.subr.mxu0 0.0
      %3116 = vmatpush1.msra.mxu0 0.0
      %3117 = vmatprep.mubr.f32.mxu0 0.0
      %3118 = vmatmul.mubr.f32.gmra.mrb[0].mxu0 %v3051
      %v3119 = vpop.f32.mrb[0].mxu0
      %v3120 = vadd.f32 0.0, %v3119
      %v3121 = vpop.f32.mrb[0].mxu0
      %3122 = vdwg.mxu0
      %v3123 = vadd.f32 %v3046, %v3120
      %v3124 = vld [vmem:[#allocation3 + $0x17] sm:$0x1]
      %v3125 = vld [vmem:[%s5 + $0x110] sm:$0xff]
      %v3126 = vld [vmem:[%s5 + $0x118] sm:$0xff]
      %v3128 = vsel %vm1745, %v3124, 0
      %3130 = vmatprep.subr.mxu0 0.0
      %3131 = vmatpush1.msra.mxu0 %v3125
      %3132 = vmatprep.subr.mxu0 0.0
      %3133 = vmatpush1.msra.mxu0 %v3126
      %3134 = vmatprep.subr.mxu0 0.0
      %3135 = vmatpush1.msra.mxu0 0.0
      %3136 = vmatprep.subr.mxu0 0.0
      %3137 = vmatpush1.msra.mxu0 0.0
      %3138 = vmatprep.subr.mxu0 0.0
      %3139 = vmatpush1.msra.mxu0 0.0
      %3140 = vmatprep.subr.mxu0 0.0
      %3141 = vmatpush1.msra.mxu0 0.0
      %3142 = vmatprep.subr.mxu0 0.0
      %3143 = vmatpush1.msra.mxu0 0.0
      %3144 = vmatprep.subr.mxu0 0.0
      %3145 = vmatpush1.msra.mxu0 0.0
      %3146 = vmatprep.subr.mxu0 0.0
      %3147 = vmatpush1.msra.mxu0 0.0
      %3148 = vmatprep.subr.mxu0 0.0
      %3149 = vmatpush1.msra.mxu0 0.0
      %3150 = vmatprep.subr.mxu0 0.0
      %3151 = vmatpush1.msra.mxu0 0.0
      %3152 = vmatprep.subr.mxu0 0.0
      %3153 = vmatpush1.msra.mxu0 0.0
      %3154 = vmatprep.subr.mxu0 0.0
      %3155 = vmatpush1.msra.mxu0 0.0
      %3156 = vmatprep.subr.mxu0 0.0
      %3157 = vmatpush1.msra.mxu0 0.0
      %3158 = vmatprep.subr.mxu0 0.0
      %3159 = vmatpush1.msra.mxu0 0.0
      %3160 = vmatprep.subr.mxu0 0.0
      %3161 = vmatpush1.msra.mxu0 0.0
      %3162 = vmatprep.subr.mxu0 0.0
      %3163 = vmatpush1.msra.mxu0 0.0
      %3164 = vmatprep.subr.mxu0 0.0
      %3165 = vmatpush1.msra.mxu0 0.0
      %3166 = vmatprep.subr.mxu0 0.0
      %3167 = vmatpush1.msra.mxu0 0.0
      %3168 = vmatprep.subr.mxu0 0.0
      %3169 = vmatpush1.msra.mxu0 0.0
      %3170 = vmatprep.subr.mxu0 0.0
      %3171 = vmatpush1.msra.mxu0 0.0
      %3172 = vmatprep.subr.mxu0 0.0
      %3173 = vmatpush1.msra.mxu0 0.0
      %3174 = vmatprep.subr.mxu0 0.0
      %3175 = vmatpush1.msra.mxu0 0.0
      %3176 = vmatprep.subr.mxu0 0.0
      %3177 = vmatpush1.msra.mxu0 0.0
      %3178 = vmatprep.subr.mxu0 0.0
      %3179 = vmatpush1.msra.mxu0 0.0
      %3180 = vmatprep.subr.mxu0 0.0
      %3181 = vmatpush1.msra.mxu0 0.0
      %3182 = vmatprep.subr.mxu0 0.0
      %3183 = vmatpush1.msra.mxu0 0.0
      %3184 = vmatprep.subr.mxu0 0.0
      %3185 = vmatpush1.msra.mxu0 0.0
      %3186 = vmatprep.subr.mxu0 0.0
      %3187 = vmatpush1.msra.mxu0 0.0
      %3188 = vmatprep.subr.mxu0 0.0
      %3189 = vmatpush1.msra.mxu0 0.0
      %3190 = vmatprep.subr.mxu0 0.0
      %3191 = vmatpush1.msra.mxu0 0.0
      %3192 = vmatprep.subr.mxu0 0.0
      %3193 = vmatpush1.msra.mxu0 0.0
      %3194 = vmatprep.mubr.f32.mxu0 0.0
      %3195 = vmatmul.mubr.f32.gmra.mrb[0].mxu0 %v3128
      %v3196 = vpop.f32.mrb[0].mxu0
      %v3197 = vadd.f32 0.0, %v3196
      %v3198 = vpop.f32.mrb[0].mxu0
      %3199 = vdwg.mxu0
      %v3200 = vadd.f32 %v3123, %v3197
      %v3201 = vld [vmem:[#allocation3 + $0x18] sm:$0x1]
      %v3202 = vld [vmem:[%s5 + $0x120] sm:$0xff]
      %v3203 = vld [vmem:[%s5 + $0x128] sm:$0xff]
      %v3205 = vsel %vm1745, %v3201, 0
      %3207 = vmatprep.subr.mxu0 0.0
      %3208 = vmatpush1.msra.mxu0 %v3202
      %3209 = vmatprep.subr.mxu0 0.0
      %3210 = vmatpush1.msra.mxu0 %v3203
      %3211 = vmatprep.subr.mxu0 0.0
      %3212 = vmatpush1.msra.mxu0 0.0
      %3213 = vmatprep.subr.mxu0 0.0
      %3214 = vmatpush1.msra.mxu0 0.0
      %3215 = vmatprep.subr.mxu0 0.0
      %3216 = vmatpush1.msra.mxu0 0.0
      %3217 = vmatprep.subr.mxu0 0.0
      %3218 = vmatpush1.msra.mxu0 0.0
      %3219 = vmatprep.subr.mxu0 0.0
      %3220 = vmatpush1.msra.mxu0 0.0
      %3221 = vmatprep.subr.mxu0 0.0
      %3222 = vmatpush1.msra.mxu0 0.0
      %3223 = vmatprep.subr.mxu0 0.0
      %3224 = vmatpush1.msra.mxu0 0.0
      %3225 = vmatprep.subr.mxu0 0.0
      %3226 = vmatpush1.msra.mxu0 0.0
      %3227 = vmatprep.subr.mxu0 0.0
      %3228 = vmatpush1.msra.mxu0 0.0
      %3229 = vmatprep.subr.mxu0 0.0
      %3230 = vmatpush1.msra.mxu0 0.0
      %3231 = vmatprep.subr.mxu0 0.0
      %3232 = vmatpush1.msra.mxu0 0.0
      %3233 = vmatprep.subr.mxu0 0.0
      %3234 = vmatpush1.msra.mxu0 0.0
      %3235 = vmatprep.subr.mxu0 0.0
      %3236 = vmatpush1.msra.mxu0 0.0
      %3237 = vmatprep.subr.mxu0 0.0
      %3238 = vmatpush1.msra.mxu0 0.0
      %3239 = vmatprep.subr.mxu0 0.0
      %3240 = vmatpush1.msra.mxu0 0.0
      %3241 = vmatprep.subr.mxu0 0.0
      %3242 = vmatpush1.msra.mxu0 0.0
      %3243 = vmatprep.subr.mxu0 0.0
      %3244 = vmatpush1.msra.mxu0 0.0
      %3245 = vmatprep.subr.mxu0 0.0
      %3246 = vmatpush1.msra.mxu0 0.0
      %3247 = vmatprep.subr.mxu0 0.0
      %3248 = vmatpush1.msra.mxu0 0.0
      %3249 = vmatprep.subr.mxu0 0.0
      %3250 = vmatpush1.msra.mxu0 0.0
      %3251 = vmatprep.subr.mxu0 0.0
      %3252 = vmatpush1.msra.mxu0 0.0
      %3253 = vmatprep.subr.mxu0 0.0
      %3254 = vmatpush1.msra.mxu0 0.0
      %3255 = vmatprep.subr.mxu0 0.0
      %3256 = vmatpush1.msra.mxu0 0.0
      %3257 = vmatprep.subr.mxu0 0.0
      %3258 = vmatpush1.msra.mxu0 0.0
      %3259 = vmatprep.subr.mxu0 0.0
      %3260 = vmatpush1.msra.mxu0 0.0
      %3261 = vmatprep.subr.mxu0 0.0
      %3262 = vmatpush1.msra.mxu0 0.0
      %3263 = vmatprep.subr.mxu0 0.0
      %3264 = vmatpush1.msra.mxu0 0.0
      %3265 = vmatprep.subr.mxu0 0.0
      %3266 = vmatpush1.msra.mxu0 0.0
      %3267 = vmatprep.subr.mxu0 0.0
      %3268 = vmatpush1.msra.mxu0 0.0
      %3269 = vmatprep.subr.mxu0 0.0
      %3270 = vmatpush1.msra.mxu0 0.0
      %3271 = vmatprep.mubr.f32.mxu0 0.0
      %3272 = vmatmul.mubr.f32.gmra.mrb[0].mxu0 %v3205
      %v3273 = vpop.f32.mrb[0].mxu0
      %v3274 = vadd.f32 0.0, %v3273
      %v3275 = vpop.f32.mrb[0].mxu0
      %3276 = vdwg.mxu0
      %v3277 = vadd.f32 %v3200, %v3274
      %v3278 = vld [vmem:[#allocation3 + $0x19] sm:$0x1]
      %v3279 = vld [vmem:[%s5 + $0x130] sm:$0xff]
      %v3280 = vld [vmem:[%s5 + $0x138] sm:$0xff]
      %v3282 = vsel %vm1745, %v3278, 0
      %3284 = vmatprep.subr.mxu0 0.0
      %3285 = vmatpush1.msra.mxu0 %v3279
      %3286 = vmatprep.subr.mxu0 0.0
      %3287 = vmatpush1.msra.mxu0 %v3280
      %3288 = vmatprep.subr.mxu0 0.0
      %3289 = vmatpush1.msra.mxu0 0.0
      %3290 = vmatprep.subr.mxu0 0.0
      %3291 = vmatpush1.msra.mxu0 0.0
      %3292 = vmatprep.subr.mxu0 0.0
      %3293 = vmatpush1.msra.mxu0 0.0
      %3294 = vmatprep.subr.mxu0 0.0
      %3295 = vmatpush1.msra.mxu0 0.0
      %3296 = vmatprep.subr.mxu0 0.0
      %3297 = vmatpush1.msra.mxu0 0.0
      %3298 = vmatprep.subr.mxu0 0.0
      %3299 = vmatpush1.msra.mxu0 0.0
      %3300 = vmatprep.subr.mxu0 0.0
      %3301 = vmatpush1.msra.mxu0 0.0
      %3302 = vmatprep.subr.mxu0 0.0
      %3303 = vmatpush1.msra.mxu0 0.0
      %3304 = vmatprep.subr.mxu0 0.0
      %3305 = vmatpush1.msra.mxu0 0.0
      %3306 = vmatprep.subr.mxu0 0.0
      %3307 = vmatpush1.msra.mxu0 0.0
      %3308 = vmatprep.subr.mxu0 0.0
      %3309 = vmatpush1.msra.mxu0 0.0
      %3310 = vmatprep.subr.mxu0 0.0
      %3311 = vmatpush1.msra.mxu0 0.0
      %3312 = vmatprep.subr.mxu0 0.0
      %3313 = vmatpush1.msra.mxu0 0.0
      %3314 = vmatprep.subr.mxu0 0.0
      %3315 = vmatpush1.msra.mxu0 0.0
      %3316 = vmatprep.subr.mxu0 0.0
      %3317 = vmatpush1.msra.mxu0 0.0
      %3318 = vmatprep.subr.mxu0 0.0
      %3319 = vmatpush1.msra.mxu0 0.0
      %3320 = vmatprep.subr.mxu0 0.0
      %3321 = vmatpush1.msra.mxu0 0.0
      %3322 = vmatprep.subr.mxu0 0.0
      %3323 = vmatpush1.msra.mxu0 0.0
      %3324 = vmatprep.subr.mxu0 0.0
      %3325 = vmatpush1.msra.mxu0 0.0
      %3326 = vmatprep.subr.mxu0 0.0
      %3327 = vmatpush1.msra.mxu0 0.0
      %3328 = vmatprep.subr.mxu0 0.0
      %3329 = vmatpush1.msra.mxu0 0.0
      %3330 = vmatprep.subr.mxu0 0.0
      %3331 = vmatpush1.msra.mxu0 0.0
      %3332 = vmatprep.subr.mxu0 0.0
      %3333 = vmatpush1.msra.mxu0 0.0
      %3334 = vmatprep.subr.mxu0 0.0
      %3335 = vmatpush1.msra.mxu0 0.0
      %3336 = vmatprep.subr.mxu0 0.0
      %3337 = vmatpush1.msra.mxu0 0.0
      %3338 = vmatprep.subr.mxu0 0.0
      %3339 = vmatpush1.msra.mxu0 0.0
      %3340 = vmatprep.subr.mxu0 0.0
      %3341 = vmatpush1.msra.mxu0 0.0
      %3342 = vmatprep.subr.mxu0 0.0
      %3343 = vmatpush1.msra.mxu0 0.0
      %3344 = vmatprep.subr.mxu0 0.0
      %3345 = vmatpush1.msra.mxu0 0.0
      %3346 = vmatprep.subr.mxu0 0.0
      %3347 = vmatpush1.msra.mxu0 0.0
      %3348 = vmatprep.mubr.f32.mxu0 0.0
      %3349 = vmatmul.mubr.f32.gmra.mrb[0].mxu0 %v3282
      %v3350 = vpop.f32.mrb[0].mxu0
      %v3351 = vadd.f32 0.0, %v3350
      %v3352 = vpop.f32.mrb[0].mxu0
      %3353 = vdwg.mxu0
      %v3354 = vadd.f32 %v3277, %v3351
      %v3355 = vld [vmem:[#allocation3 + $0x1c] sm:$0x1]
      %v3356 = vld [vmem:[%s5 + $0x140] sm:$0xff]
      %v3357 = vld [vmem:[%s5 + $0x148] sm:$0xff]
      %v3359 = vsel %vm1745, %v3355, 0
      %3361 = vmatprep.subr.mxu0 0.0
      %3362 = vmatpush1.msra.mxu0 %v3356
      %3363 = vmatprep.subr.mxu0 0.0
      %3364 = vmatpush1.msra.mxu0 %v3357
      %3365 = vmatprep.subr.mxu0 0.0
      %3366 = vmatpush1.msra.mxu0 0.0
      %3367 = vmatprep.subr.mxu0 0.0
      %3368 = vmatpush1.msra.mxu0 0.0
      %3369 = vmatprep.subr.mxu0 0.0
      %3370 = vmatpush1.msra.mxu0 0.0
      %3371 = vmatprep.subr.mxu0 0.0
      %3372 = vmatpush1.msra.mxu0 0.0
      %3373 = vmatprep.subr.mxu0 0.0
      %3374 = vmatpush1.msra.mxu0 0.0
      %3375 = vmatprep.subr.mxu0 0.0
      %3376 = vmatpush1.msra.mxu0 0.0
      %3377 = vmatprep.subr.mxu0 0.0
      %3378 = vmatpush1.msra.mxu0 0.0
      %3379 = vmatprep.subr.mxu0 0.0
      %3380 = vmatpush1.msra.mxu0 0.0
      %3381 = vmatprep.subr.mxu0 0.0
      %3382 = vmatpush1.msra.mxu0 0.0
      %3383 = vmatprep.subr.mxu0 0.0
      %3384 = vmatpush1.msra.mxu0 0.0
      %3385 = vmatprep.subr.mxu0 0.0
      %3386 = vmatpush1.msra.mxu0 0.0
      %3387 = vmatprep.subr.mxu0 0.0
      %3388 = vmatpush1.msra.mxu0 0.0
      %3389 = vmatprep.subr.mxu0 0.0
      %3390 = vmatpush1.msra.mxu0 0.0
      %3391 = vmatprep.subr.mxu0 0.0
      %3392 = vmatpush1.msra.mxu0 0.0
      %3393 = vmatprep.subr.mxu0 0.0
      %3394 = vmatpush1.msra.mxu0 0.0
      %3395 = vmatprep.subr.mxu0 0.0
      %3396 = vmatpush1.msra.mxu0 0.0
      %3397 = vmatprep.subr.mxu0 0.0
      %3398 = vmatpush1.msra.mxu0 0.0
      %3399 = vmatprep.subr.mxu0 0.0
      %3400 = vmatpush1.msra.mxu0 0.0
      %3401 = vmatprep.subr.mxu0 0.0
      %3402 = vmatpush1.msra.mxu0 0.0
      %3403 = vmatprep.subr.mxu0 0.0
      %3404 = vmatpush1.msra.mxu0 0.0
      %3405 = vmatprep.subr.mxu0 0.0
      %3406 = vmatpush1.msra.mxu0 0.0
      %3407 = vmatprep.subr.mxu0 0.0
      %3408 = vmatpush1.msra.mxu0 0.0
      %3409 = vmatprep.subr.mxu0 0.0
      %3410 = vmatpush1.msra.mxu0 0.0
      %3411 = vmatprep.subr.mxu0 0.0
      %3412 = vmatpush1.msra.mxu0 0.0
      %3413 = vmatprep.subr.mxu0 0.0
      %3414 = vmatpush1.msra.mxu0 0.0
      %3415 = vmatprep.subr.mxu0 0.0
      %3416 = vmatpush1.msra.mxu0 0.0
      %3417 = vmatprep.subr.mxu0 0.0
      %3418 = vmatpush1.msra.mxu0 0.0
      %3419 = vmatprep.subr.mxu0 0.0
      %3420 = vmatpush1.msra.mxu0 0.0
      %3421 = vmatprep.subr.mxu0 0.0
      %3422 = vmatpush1.msra.mxu0 0.0
      %3423 = vmatprep.subr.mxu0 0.0
      %3424 = vmatpush1.msra.mxu0 0.0
      %3425 = vmatprep.mubr.f32.mxu0 0.0
      %3426 = vmatmul.mubr.f32.gmra.mrb[0].mxu0 %v3359
      %v3427 = vpop.f32.mrb[0].mxu0
      %v3428 = vadd.f32 0.0, %v3427
      %v3429 = vpop.f32.mrb[0].mxu0
      %3430 = vdwg.mxu0
      %v3431 = vadd.f32 %v3354, %v3428
      %v3432 = vld [vmem:[#allocation3 + $0x1d] sm:$0x1]
      %v3433 = vld [vmem:[%s5 + $0x150] sm:$0xff]
      %v3434 = vld [vmem:[%s5 + $0x158] sm:$0xff]
      %v3436 = vsel %vm1745, %v3432, 0
      %3438 = vmatprep.subr.mxu0 0.0
      %3439 = vmatpush1.msra.mxu0 %v3433
      %3440 = vmatprep.subr.mxu0 0.0
      %3441 = vmatpush1.msra.mxu0 %v3434
      %3442 = vmatprep.subr.mxu0 0.0
      %3443 = vmatpush1.msra.mxu0 0.0
      %3444 = vmatprep.subr.mxu0 0.0
      %3445 = vmatpush1.msra.mxu0 0.0
      %3446 = vmatprep.subr.mxu0 0.0
      %3447 = vmatpush1.msra.mxu0 0.0
      %3448 = vmatprep.subr.mxu0 0.0
      %3449 = vmatpush1.msra.mxu0 0.0
      %3450 = vmatprep.subr.mxu0 0.0
      %3451 = vmatpush1.msra.mxu0 0.0
      %3452 = vmatprep.subr.mxu0 0.0
      %3453 = vmatpush1.msra.mxu0 0.0
      %3454 = vmatprep.subr.mxu0 0.0
      %3455 = vmatpush1.msra.mxu0 0.0
      %3456 = vmatprep.subr.mxu0 0.0
      %3457 = vmatpush1.msra.mxu0 0.0
      %3458 = vmatprep.subr.mxu0 0.0
      %3459 = vmatpush1.msra.mxu0 0.0
      %3460 = vmatprep.subr.mxu0 0.0
      %3461 = vmatpush1.msra.mxu0 0.0
      %3462 = vmatprep.subr.mxu0 0.0
      %3463 = vmatpush1.msra.mxu0 0.0
      %3464 = vmatprep.subr.mxu0 0.0
      %3465 = vmatpush1.msra.mxu0 0.0
      %3466 = vmatprep.subr.mxu0 0.0
      %3467 = vmatpush1.msra.mxu0 0.0
      %3468 = vmatprep.subr.mxu0 0.0
      %3469 = vmatpush1.msra.mxu0 0.0
      %3470 = vmatprep.subr.mxu0 0.0
      %3471 = vmatpush1.msra.mxu0 0.0
      %3472 = vmatprep.subr.mxu0 0.0
      %3473 = vmatpush1.msra.mxu0 0.0
      %3474 = vmatprep.subr.mxu0 0.0
      %3475 = vmatpush1.msra.mxu0 0.0
      %3476 = vmatprep.subr.mxu0 0.0
      %3477 = vmatpush1.msra.mxu0 0.0
      %3478 = vmatprep.subr.mxu0 0.0
      %3479 = vmatpush1.msra.mxu0 0.0
      %3480 = vmatprep.subr.mxu0 0.0
      %3481 = vmatpush1.msra.mxu0 0.0
      %3482 = vmatprep.subr.mxu0 0.0
      %3483 = vmatpush1.msra.mxu0 0.0
      %3484 = vmatprep.subr.mxu0 0.0
      %3485 = vmatpush1.msra.mxu0 0.0
      %3486 = vmatprep.subr.mxu0 0.0
      %3487 = vmatpush1.msra.mxu0 0.0
      %3488 = vmatprep.subr.mxu0 0.0
      %3489 = vmatpush1.msra.mxu0 0.0
      %3490 = vmatprep.subr.mxu0 0.0
      %3491 = vmatpush1.msra.mxu0 0.0
      %3492 = vmatprep.subr.mxu0 0.0
      %3493 = vmatpush1.msra.mxu0 0.0
      %3494 = vmatprep.subr.mxu0 0.0
      %3495 = vmatpush1.msra.mxu0 0.0
      %3496 = vmatprep.subr.mxu0 0.0
      %3497 = vmatpush1.msra.mxu0 0.0
      %3498 = vmatprep.subr.mxu0 0.0
      %3499 = vmatpush1.msra.mxu0 0.0
      %3500 = vmatprep.subr.mxu0 0.0
      %3501 = vmatpush1.msra.mxu0 0.0
      %3502 = vmatprep.mubr.f32.mxu0 0.0
      %3503 = vmatmul.mubr.f32.gmra.mrb[0].mxu0 %v3436
      %v3504 = vpop.f32.mrb[0].mxu0
      %v3505 = vadd.f32 0.0, %v3504
      %v3506 = vpop.f32.mrb[0].mxu0
      %3507 = vdwg.mxu0
      %v3508 = vadd.f32 %v3431, %v3505
      %v3509 = vld [vmem:[#allocation3 + $0x1e] sm:$0x1]
      %v3510 = vld [vmem:[%s5 + $0x160] sm:$0xff]
      %v3511 = vld [vmem:[%s5 + $0x168] sm:$0xff]
      %v3513 = vsel %vm1745, %v3509, 0
      %3515 = vmatprep.subr.mxu0 0.0
      %3516 = vmatpush1.msra.mxu0 %v3510
      %3517 = vmatprep.subr.mxu0 0.0
      %3518 = vmatpush1.msra.mxu0 %v3511
      %3519 = vmatprep.subr.mxu0 0.0
      %3520 = vmatpush1.msra.mxu0 0.0
      %3521 = vmatprep.subr.mxu0 0.0
      %3522 = vmatpush1.msra.mxu0 0.0
      %3523 = vmatprep.subr.mxu0 0.0
      %3524 = vmatpush1.msra.mxu0 0.0
      %3525 = vmatprep.subr.mxu0 0.0
      %3526 = vmatpush1.msra.mxu0 0.0
      %3527 = vmatprep.subr.mxu0 0.0
      %3528 = vmatpush1.msra.mxu0 0.0
      %3529 = vmatprep.subr.mxu0 0.0
      %3530 = vmatpush1.msra.mxu0 0.0
      %3531 = vmatprep.subr.mxu0 0.0
      %3532 = vmatpush1.msra.mxu0 0.0
      %3533 = vmatprep.subr.mxu0 0.0
      %3534 = vmatpush1.msra.mxu0 0.0
      %3535 = vmatprep.subr.mxu0 0.0
      %3536 = vmatpush1.msra.mxu0 0.0
      %3537 = vmatprep.subr.mxu0 0.0
      %3538 = vmatpush1.msra.mxu0 0.0
      %3539 = vmatprep.subr.mxu0 0.0
      %3540 = vmatpush1.msra.mxu0 0.0
      %3541 = vmatprep.subr.mxu0 0.0
      %3542 = vmatpush1.msra.mxu0 0.0
      %3543 = vmatprep.subr.mxu0 0.0
      %3544 = vmatpush1.msra.mxu0 0.0
      %3545 = vmatprep.subr.mxu0 0.0
      %3546 = vmatpush1.msra.mxu0 0.0
      %3547 = vmatprep.subr.mxu0 0.0
      %3548 = vmatpush1.msra.mxu0 0.0
      %3549 = vmatprep.subr.mxu0 0.0
      %3550 = vmatpush1.msra.mxu0 0.0
      %3551 = vmatprep.subr.mxu0 0.0
      %3552 = vmatpush1.msra.mxu0 0.0
      %3553 = vmatprep.subr.mxu0 0.0
      %3554 = vmatpush1.msra.mxu0 0.0
      %3555 = vmatprep.subr.mxu0 0.0
      %3556 = vmatpush1.msra.mxu0 0.0
      %3557 = vmatprep.subr.mxu0 0.0
      %3558 = vmatpush1.msra.mxu0 0.0
      %3559 = vmatprep.subr.mxu0 0.0
      %3560 = vmatpush1.msra.mxu0 0.0
      %3561 = vmatprep.subr.mxu0 0.0
      %3562 = vmatpush1.msra.mxu0 0.0
      %3563 = vmatprep.subr.mxu0 0.0
      %3564 = vmatpush1.msra.mxu0 0.0
      %3565 = vmatprep.subr.mxu0 0.0
      %3566 = vmatpush1.msra.mxu0 0.0
      %3567 = vmatprep.subr.mxu0 0.0
      %3568 = vmatpush1.msra.mxu0 0.0
      %3569 = vmatprep.subr.mxu0 0.0
      %3570 = vmatpush1.msra.mxu0 0.0
      %3571 = vmatprep.subr.mxu0 0.0
      %3572 = vmatpush1.msra.mxu0 0.0
      %3573 = vmatprep.subr.mxu0 0.0
      %3574 = vmatpush1.msra.mxu0 0.0
      %3575 = vmatprep.subr.mxu0 0.0
      %3576 = vmatpush1.msra.mxu0 0.0
      %3577 = vmatprep.subr.mxu0 0.0
      %3578 = vmatpush1.msra.mxu0 0.0
      %3579 = vmatprep.mubr.f32.mxu0 0.0
      %3580 = vmatmul.mubr.f32.gmra.mrb[0].mxu0 %v3513
      %v3581 = vpop.f32.mrb[0].mxu0
      %v3582 = vadd.f32 0.0, %v3581
      %v3583 = vpop.f32.mrb[0].mxu0
      %3584 = vdwg.mxu0
      %v3585 = vadd.f32 %v3508, %v3582
      %v3586 = vld [vmem:[#allocation3 + $0x1f] sm:$0x1]
      %v3587 = vld [vmem:[%s5 + $0x170] sm:$0xff]
      %v3588 = vld [vmem:[%s5 + $0x178] sm:$0xff]
      %v3590 = vsel %vm1745, %v3586, 0
      %3592 = vmatprep.subr.mxu0 0.0
      %3593 = vmatpush1.msra.mxu0 %v3587
      %3594 = vmatprep.subr.mxu0 0.0
      %3595 = vmatpush1.msra.mxu0 %v3588
      %3596 = vmatprep.subr.mxu0 0.0
      %3597 = vmatpush1.msra.mxu0 0.0
      %3598 = vmatprep.subr.mxu0 0.0
      %3599 = vmatpush1.msra.mxu0 0.0
      %3600 = vmatprep.subr.mxu0 0.0
      %3601 = vmatpush1.msra.mxu0 0.0
      %3602 = vmatprep.subr.mxu0 0.0
      %3603 = vmatpush1.msra.mxu0 0.0
      %3604 = vmatprep.subr.mxu0 0.0
      %3605 = vmatpush1.msra.mxu0 0.0
      %3606 = vmatprep.subr.mxu0 0.0
      %3607 = vmatpush1.msra.mxu0 0.0
      %3608 = vmatprep.subr.mxu0 0.0
      %3609 = vmatpush1.msra.mxu0 0.0
      %3610 = vmatprep.subr.mxu0 0.0
      %3611 = vmatpush1.msra.mxu0 0.0
      %3612 = vmatprep.subr.mxu0 0.0
      %3613 = vmatpush1.msra.mxu0 0.0
      %3614 = vmatprep.subr.mxu0 0.0
      %3615 = vmatpush1.msra.mxu0 0.0
      %3616 = vmatprep.subr.mxu0 0.0
      %3617 = vmatpush1.msra.mxu0 0.0
      %3618 = vmatprep.subr.mxu0 0.0
      %3619 = vmatpush1.msra.mxu0 0.0
      %3620 = vmatprep.subr.mxu0 0.0
      %3621 = vmatpush1.msra.mxu0 0.0
      %3622 = vmatprep.subr.mxu0 0.0
      %3623 = vmatpush1.msra.mxu0 0.0
      %3624 = vmatprep.subr.mxu0 0.0
      %3625 = vmatpush1.msra.mxu0 0.0
      %3626 = vmatprep.subr.mxu0 0.0
      %3627 = vmatpush1.msra.mxu0 0.0
      %3628 = vmatprep.subr.mxu0 0.0
      %3629 = vmatpush1.msra.mxu0 0.0
      %3630 = vmatprep.subr.mxu0 0.0
      %3631 = vmatpush1.msra.mxu0 0.0
      %3632 = vmatprep.subr.mxu0 0.0
      %3633 = vmatpush1.msra.mxu0 0.0
      %3634 = vmatprep.subr.mxu0 0.0
      %3635 = vmatpush1.msra.mxu0 0.0
      %3636 = vmatprep.subr.mxu0 0.0
      %3637 = vmatpush1.msra.mxu0 0.0
      %3638 = vmatprep.subr.mxu0 0.0
      %3639 = vmatpush1.msra.mxu0 0.0
      %3640 = vmatprep.subr.mxu0 0.0
      %3641 = vmatpush1.msra.mxu0 0.0
      %3642 = vmatprep.subr.mxu0 0.0
      %3643 = vmatpush1.msra.mxu0 0.0
      %3644 = vmatprep.subr.mxu0 0.0
      %3645 = vmatpush1.msra.mxu0 0.0
      %3646 = vmatprep.subr.mxu0 0.0
      %3647 = vmatpush1.msra.mxu0 0.0
      %3648 = vmatprep.subr.mxu0 0.0
      %3649 = vmatpush1.msra.mxu0 0.0
      %3650 = vmatprep.subr.mxu0 0.0
      %3651 = vmatpush1.msra.mxu0 0.0
      %3652 = vmatprep.subr.mxu0 0.0
      %3653 = vmatpush1.msra.mxu0 0.0
      %3654 = vmatprep.subr.mxu0 0.0
      %3655 = vmatpush1.msra.mxu0 0.0
      %3656 = vmatprep.mubr.f32.mxu0 0.0
      %3657 = vmatmul.mubr.f32.gmra.mrb[0].mxu0 %v3590
      %v3658 = vpop.f32.mrb[0].mxu0
      %v3659 = vadd.f32 0.0, %v3658
      %v3660 = vpop.f32.mrb[0].mxu0
      %3661 = vdwg.mxu0
      %v3662 = vadd.f32 %v3585, %v3659
      %v3663 = vld [vmem:[#allocation3 + $0x20] sm:$0x1]
      %v3664 = vld [vmem:[%s5 + $0x180] sm:$0xff]
      %v3665 = vld [vmem:[%s5 + $0x188] sm:$0xff]
      %v3667 = vsel %vm1745, %v3663, 0
      %3669 = vmatprep.subr.mxu0 0.0
      %3670 = vmatpush1.msra.mxu0 %v3664
      %3671 = vmatprep.subr.mxu0 0.0
      %3672 = vmatpush1.msra.mxu0 %v3665
      %3673 = vmatprep.subr.mxu0 0.0
      %3674 = vmatpush1.msra.mxu0 0.0
      %3675 = vmatprep.subr.mxu0 0.0
      %3676 = vmatpush1.msra.mxu0 0.0
      %3677 = vmatprep.subr.mxu0 0.0
      %3678 = vmatpush1.msra.mxu0 0.0
      %3679 = vmatprep.subr.mxu0 0.0
      %3680 = vmatpush1.msra.mxu0 0.0
      %3681 = vmatprep.subr.mxu0 0.0
      %3682 = vmatpush1.msra.mxu0 0.0
      %3683 = vmatprep.subr.mxu0 0.0
      %3684 = vmatpush1.msra.mxu0 0.0
      %3685 = vmatprep.subr.mxu0 0.0
      %3686 = vmatpush1.msra.mxu0 0.0
      %3687 = vmatprep.subr.mxu0 0.0
      %3688 = vmatpush1.msra.mxu0 0.0
      %3689 = vmatprep.subr.mxu0 0.0
      %3690 = vmatpush1.msra.mxu0 0.0
      %3691 = vmatprep.subr.mxu0 0.0
      %3692 = vmatpush1.msra.mxu0 0.0
      %3693 = vmatprep.subr.mxu0 0.0
      %3694 = vmatpush1.msra.mxu0 0.0
      %3695 = vmatprep.subr.mxu0 0.0
      %3696 = vmatpush1.msra.mxu0 0.0
      %3697 = vmatprep.subr.mxu0 0.0
      %3698 = vmatpush1.msra.mxu0 0.0
      %3699 = vmatprep.subr.mxu0 0.0
      %3700 = vmatpush1.msra.mxu0 0.0
      %3701 = vmatprep.subr.mxu0 0.0
      %3702 = vmatpush1.msra.mxu0 0.0
      %3703 = vmatprep.subr.mxu0 0.0
      %3704 = vmatpush1.msra.mxu0 0.0
      %3705 = vmatprep.subr.mxu0 0.0
      %3706 = vmatpush1.msra.mxu0 0.0
      %3707 = vmatprep.subr.mxu0 0.0
      %3708 = vmatpush1.msra.mxu0 0.0
      %3709 = vmatprep.subr.mxu0 0.0
      %3710 = vmatpush1.msra.mxu0 0.0
      %3711 = vmatprep.subr.mxu0 0.0
      %3712 = vmatpush1.msra.mxu0 0.0
      %3713 = vmatprep.subr.mxu0 0.0
      %3714 = vmatpush1.msra.mxu0 0.0
      %3715 = vmatprep.subr.mxu0 0.0
      %3716 = vmatpush1.msra.mxu0 0.0
      %3717 = vmatprep.subr.mxu0 0.0
      %3718 = vmatpush1.msra.mxu0 0.0
      %3719 = vmatprep.subr.mxu0 0.0
      %3720 = vmatpush1.msra.mxu0 0.0
      %3721 = vmatprep.subr.mxu0 0.0
      %3722 = vmatpush1.msra.mxu0 0.0
      %3723 = vmatprep.subr.mxu0 0.0
      %3724 = vmatpush1.msra.mxu0 0.0
      %3725 = vmatprep.subr.mxu0 0.0
      %3726 = vmatpush1.msra.mxu0 0.0
      %3727 = vmatprep.subr.mxu0 0.0
      %3728 = vmatpush1.msra.mxu0 0.0
      %3729 = vmatprep.subr.mxu0 0.0
      %3730 = vmatpush1.msra.mxu0 0.0
      %3731 = vmatprep.subr.mxu0 0.0
      %3732 = vmatpush1.msra.mxu0 0.0
      %3733 = vmatprep.mubr.f32.mxu0 0.0
      %3734 = vmatmul.mubr.f32.gmra.mrb[0].mxu0 %v3667
      %v3735 = vpop.f32.mrb[0].mxu0
      %v3736 = vadd.f32 0.0, %v3735
      %v3737 = vpop.f32.mrb[0].mxu0
      %3738 = vdwg.mxu0
      %v3739 = vadd.f32 %v3662, %v3736
      %v3740 = vld [vmem:[%s6] sm:$0x1]
      %v3741 = vadd.f32 %v3739, %v3740
      %vm3742 = vcmp.gt.f32.partialorder %v3741, 0.0
      %v3743 = vmin.f32 %v3741, 0.0
      %v3744 = vmul.f32 %v3743, 1.442695
      %v3745 = vpow.pop %v3744
      %v3746 = vsub.f32 %v3745, 1.0
      %v3747 = vsel %vm3742, %v3741, %v3746
      %v3748 = vld [vmem:[%s7] sm:$0x1]
      %v3749 = vmul.f32 %v3747, %v3748
      %vm3750 = vcmask 253952
      %v3751 = vsel %vm3750, %v3749, 0.0
      %3752 = vadd.xlane.f32.xlu0 %v3751
      %v3753 = vpop.xlane.xlu0 %3752
      %v3754 = vld [vmem:[#allocation4] sm:$0x1]
      %v3755 = vadd.f32 %v3753, %v3754
      %vm3756 = vcmask 0
      %3757 = vst.msk [vmem:[%s330] sm:$0x1] %vm3756, %v3755
      %p3758 = scmp.lt.s32.totalorder %s22, 1
      %s3759 = scalar_select %p3758, %s22, 1
      %s3760 = scalar_lea.vmem %s9, %s3759
      // Predicated region
      $region57: #{cnn_critic_forward.1} parent=55 // pred_check
        %p3761 = pneg %p234
      $region58: #{cnn_critic_forward.1} parent=55 // pred_check_branch
        %3763 = sbr.rel (%p3761) target = $region60
      $region59: #{cnn_critic_forward.1} parent=55 // pred_region
        _
      $region60: #{cnn_critic_forward.1} parent=55 // pred_fallthru
        _
    $region56: #{cnn_critic_forward.1} parent=5 // pred_fallthru
      _
    %p3764 = scmp.le.s32.totalorder 2, %s17
    // Predicated region
    $region61: #{cnn_critic_forward.1} parent=5 // pred_check
      %p3765 = pneg %p3764
    $region62: #{cnn_critic_forward.1} parent=5 // pred_check_branch
      %3767 = sbr.rel (%p3765) target = $region64
    $region63: #{cnn_critic_forward.1} parent=5 // pred_region
      %s3768 = ssub.s32 %s17, 2
      // Predicated region
      $region65: #{cnn_critic_forward.1} parent=63 // pred_check
        %p3769 = pneg %p240
      $region66: #{cnn_critic_forward.1} parent=63 // pred_check_branch
        %3771 = sbr.rel (%p3769) target = $region68
      $region67: #{cnn_critic_forward.1} parent=63 // pred_region
        %p3772 = scmp.lt.s32.totalorder %s23, 1
        %s3773 = scalar_select %p3772, %s23, 1
        %s3774 = scalar_lea.vmem %s9, %s3773
      $region68: #{cnn_critic_forward.1} parent=63 // pred_fallthru
        _
    $region64: #{cnn_critic_forward.1} parent=5 // pred_fallthru
      _
  $region6: #{cnn_critic_forward.1} parent=0 // loop_footer
    %s21 = sadd.s32 1, %s17
  $region7: #{cnn_critic_forward.1} parent=0 // loop_footer_branch
    %16 = sbr.rel target = $region3
  $region8: #{cnn_critic_forward.1} parent=0 // loop_exit
    _

</llo_original>
